<compile_context>
chip_gen: v6e
topology: v6e:2x2x1
jax: 0.10.0
libtpu: 0.0.40
codegen_flags: <defaults>
</compile_context>

<pallas_src>
import functools

import jax
import jax.numpy as jnp
from jax import lax
from jax.experimental import pallas as pl
from jax.experimental.pallas import tpu as pltpu

EPS = 1e-6  # CosineSimilarity eps


def _device_flags():
    """bf16 transcendentals + D-split settings, derived from the attached TPU."""
    try:
        kind = jax.devices()[0].device_kind.lower()
    except Exception:  # pragma: no cover
        kind = ""
    use_bf16 = ("v6" in kind) or ("v7" in kind)   # bf16 EUP/VPU only on v6e/v7x
    n_d_blocks = 2 if "v7" in kind else 1         # v7x has 2 TensorCores per chip
    return use_bf16, n_d_blocks


def _neg_attn_kernel(neg_aug_ref, pos_ref, phi_ref, bias_ref, wt_ref, out_ref,
                     *, use_bf16):
    """One grid step handles a contiguous slice of the D=768 attention rows.

    neg_aug_ref : (N+1, E) f32  negative samples + trailing all-ones row
    pos_ref     : (N,   E) f32  positive samples
    phi_ref     : (Dblk, 1) f32 slice of phi
    bias_ref    : (1, 1)  f32   scalar bias
    wt_ref      : (Dblk, 2) f32 slice of Linear(768, 2).weight.T
    out_ref     : (1, N, 2) f32 partial classifier output for this D slice
    """
    neg_aug = neg_aug_ref[...]                       # (N+1, E)
    pos = pos_ref[...]                               # (N, E)
    n = pos.shape[0]
    neg = neg_aug[:n, :]                             # (N, E) — drop the ones row

    # CosineSimilarity(dim=0, eps=1e-6): reduce over the sample (sublane) axis.
    # Matches the in-file reference form w12 / sqrt(max(w1*w2, eps^2)).
    # (Current PyTorch clamps each norm separately; differs only near zero norms.)
    w12 = jnp.sum(neg * pos, axis=0, keepdims=True)
    w1 = jnp.sum(neg * neg, axis=0, keepdims=True)
    w2 = jnp.sum(pos * pos, axis=0, keepdims=True)
    sim = w12 * lax.rsqrt(jnp.maximum(w1 * w2, EPS * EPS))        # (1, E)

    # z = phi * sim + bias : (Dblk, 1) * (1, E) -> (Dblk, E)
    z = phi_ref[...] * sim + bias_ref[...]
    if use_bf16:
        # bf16 transcendentals roughly halve the EUP stream (the binding slot).
        z = z.astype(jnp.bfloat16)

    # Unnormalized softmax numerator. tanh(z) in [-1, 1] so exp() cannot
    # overflow -> the usual max-subtraction is a mathematical no-op (dropped).
    p = jnp.exp(jnp.tanh(z))                                      # (Dblk, E)

    # Fold the softmax row-sum into the MXU matmul: the trailing all-ones row of
    # neg_aug makes the last output row equal L[d] = sum_e p[d, e].
    #   out_aug[m, d] = sum_e neg_aug[m, e] * p[d, e]  -> (N+1, Dblk) lane-dense
    out_aug = lax.dot_general(
        neg_aug.astype(p.dtype), p,
        (((1,), (1,)), ((), ())),
        preferred_element_type=jnp.float32)                       # (N+1, Dblk)

    num = out_aug[:n, :]                                          # (N, Dblk)
    denom = out_aug[n:, :]                                        # (1, Dblk) == L
    scaled = num / denom                                          # deferred softmax normalization

    # Linear(768, 2) partial contribution of this D slice: (N, Dblk) @ (Dblk, 2)
    out_ref[0] = lax.dot_general(
        scaled, wt_ref[...],
        (((1,), (0,)), ((), ())),
        preferred_element_type=jnp.float32)


def negative_samples_attention(negative, positive, phi, bias, w_cls, b_cls):
    """negative/positive: (N, E) f32; phi: (768, 1); bias: (1,);
    w_cls: (2, 768) (nn.Linear weight layout); b_cls: (2,). Returns (N, 2)."""
    negative = negative.astype(jnp.float32)
    positive = positive.astype(jnp.float32)
    N, E = negative.shape
    D = phi.shape[0]

    use_bf16, n_d_blocks = _device_flags()
    if D % n_d_blocks != 0:
        n_d_blocks = 1
    d_blk = D // n_d_blocks

    # Negative samples augmented with a trailing all-ones row so the softmax
    # denominator falls out of the same MXU matmul as the attention output.
    neg_aug = jnp.concatenate([negative, jnp.ones((1, E), jnp.float32)], axis=0)

    wt = w_cls.T.astype(jnp.float32)                  # (D, 2)
    bias2d = bias.reshape(1, 1).astype(jnp.float32)   # (1, 1)

    cost = pl.CostEstimate(
        flops=2 * D * E * (N + 1) + 2 * N * D * 2,
        transcendentals=2 * D * E,
        bytes_accessed=(2 * N + 1) * E * 4 + D * 4 + D * 2 * 4 + n_d_blocks * N * 2 * 4,
    )

    # TODO(synk): if N grows large, tile negative/positive over an extra grid
    # axis (multiples of (8,128)) and accumulate the cosine sums / p@neg_aug
    # contraction with pl.when init/finalize; at N=8 single full blocks fit
    # comfortably in VMEM on all generations.
    partials = pl.pallas_call(
        functools.partial(_neg_attn_kernel, use_bf16=use_bf16),
        out_shape=jax.ShapeDtypeStruct((n_d_blocks, N, 2), jnp.float32),
        grid=(n_d_blocks,),
        in_specs=[
            pl.BlockSpec((N + 1, E), lambda i: (0, 0)),   # neg_aug (constant block)
            pl.BlockSpec((N, E), lambda i: (0, 0)),       # positive (constant block)
            pl.BlockSpec((d_blk, 1), lambda i: (i, 0)),   # phi slice over D
            pl.BlockSpec((1, 1), lambda i: (0, 0)),       # bias
            pl.BlockSpec((d_blk, 2), lambda i: (i, 0)),   # w_cls.T slice over D
        ],
        out_specs=pl.BlockSpec((1, N, 2), lambda i: (i, 0, 0)),
        compiler_params=pltpu.CompilerParams(
            dimension_semantics=("parallel",)),
        cost_estimate=cost,
    )(neg_aug, positive, phi.astype(jnp.float32), bias2d, wt)

    # Sum per-D-block partial classifier outputs; add the Linear bias once.
    out = partials.sum(axis=0) + b_cls.astype(jnp.float32)
    return out.reshape(-1, 2)


def _reference(negative, positive, phi, bias, w_cls, b_cls):
    w12 = jnp.sum(negative * positive, axis=0)
    w1 = jnp.sum(negative * negative, axis=0)
    w2 = jnp.sum(positive * positive, axis=0)
    sim = w12 / jnp.sqrt(jnp.maximum(w1 * w2, EPS * EPS))
    z = jnp.tanh(phi * sim[None, :] + bias[0])
    attn = jax.nn.softmax(z, axis=1)
    out = attn @ negative.T                       # (768, N)
    out = out.T @ w_cls.T + b_cls                 # (N, 2)
    return out.reshape(-1, 2)


if __name__ == "__main__":
    D = 768            # embedding_dim (forced by nn.Linear(768, 2))
    N, E = 8, 768      # number of samples x feature dim of negative/positive

    key = jax.random.PRNGKey(0)
    k1, k2, k3, k4, k5 = jax.random.split(key, 5)

    negative = jax.random.normal(k1, (N, E), jnp.float32)
    positive = jax.random.normal(k2, (N, E), jnp.float32)

    # xavier_uniform_ on (D, 1): fan_in=1, fan_out=D -> bound = sqrt(6/(D+1))
    bound_phi = (6.0 / (D + 1)) ** 0.5
    phi = jax.random.uniform(k3, (D, 1), jnp.float32, -bound_phi, bound_phi)
    bias = jnp.zeros((1,), jnp.float32)           # nn.Parameter(torch.Tensor([0]))

    # deterministic stand-in for the nn.Linear(768, 2) created inside forward()
    bound_lin = 1.0 / (D ** 0.5)
    w_cls = jax.random.uniform(k4, (2, D), jnp.float32, -bound_lin, bound_lin)
    b_cls = jax.random.uniform(k5, (2,), jnp.float32, -bound_lin, bound_lin)

    out = negative_samples_attention(negative, positive, phi, bias, w_cls, b_cls)
    out = jax.block_until_ready(out)

    ref = _reference(negative, positive, phi, bias, w_cls, b_cls)
    use_bf16, _ = _device_flags()
    # bf16 tanh/exp path (v6e/v7x) carries ~0.5% relative error; f32 path stays
    # within the original 1e-4 tolerance.
    tol = 2e-2 if use_bf16 else 1e-4
    assert out.shape == (N, 2)
    assert jnp.allclose(out, ref, atol=tol, rtol=tol), "mismatch vs JAX reference"

    print("KERNEL_OK")
</pallas_src>

<mosaic_0001>
module attributes {stable_mosaic.version = 11 : i64} {
  func.func @_neg_attn_kernel(%arg0: i32, %arg1: memref<9x768xf32, #tpu.memory_space<vmem>>, %arg2: memref<8x768xf32, #tpu.memory_space<vmem>>, %arg3: memref<768x1xf32, #tpu.memory_space<vmem>>, %arg4: memref<1x1xf32, #tpu.memory_space<vmem>>, %arg5: memref<768x2xf32, #tpu.memory_space<vmem>>, %arg6: memref<1x8x2xf32, #tpu.memory_space<vmem>>) attributes {dimension_semantics = [#tpu.dimension_semantics<parallel>], iteration_bounds = array<i64: 1>, scalar_prefetch = 0 : i64, scratch_operands = 0 : i64, tpu.core_type = #tpu.core_type<tc>, window_params = [{pipeline_mode = #tpu.pipeline_mode<synchronous>, transform_indices = @transform_0, window_bounds = array<i64: 9, 768>}, {pipeline_mode = #tpu.pipeline_mode<synchronous>, transform_indices = @transform_1, window_bounds = array<i64: 8, 768>}, {transform_indices = @transform_2, window_bounds = array<i64: 768, 1>}, {pipeline_mode = #tpu.pipeline_mode<synchronous>, transform_indices = @transform_3, window_bounds = array<i64: 1, 1>}, {transform_indices = @transform_4, window_bounds = array<i64: 768, 2>}, {transform_indices = @transform_5, window_bounds = array<i64: 1, 8, 2>}]} {
    %c0 = arith.constant 0 : index
    %c0_0 = arith.constant 0 : index
    %0 = vector.load %arg1[%c0, %c0_0] : memref<9x768xf32, #tpu.memory_space<vmem>>, vector<9x768xf32>
    %c0_1 = arith.constant 0 : index
    %c0_2 = arith.constant 0 : index
    %1 = vector.load %arg2[%c0_1, %c0_2] : memref<8x768xf32, #tpu.memory_space<vmem>>, vector<8x768xf32>
    %2 = vector.extract_strided_slice %0 {offsets = [0, 0], sizes = [8, 768], strides = [1, 1]} : vector<9x768xf32> to vector<8x768xf32>
    %3 = arith.mulf %2, %1 : vector<8x768xf32>
    %cst = arith.constant dense<0.000000e+00> : vector<768xf32>
    %4 = vector.multi_reduction <add>, %3, %cst [0] : vector<8x768xf32> to vector<768xf32>
    %5 = vector.shape_cast %4 : vector<768xf32> to vector<1x768xf32>
    %6 = arith.mulf %2, %2 : vector<8x768xf32>
    %cst_3 = arith.constant dense<0.000000e+00> : vector<768xf32>
    %7 = vector.multi_reduction <add>, %6, %cst_3 [0] : vector<8x768xf32> to vector<768xf32>
    %8 = vector.shape_cast %7 : vector<768xf32> to vector<1x768xf32>
    %9 = arith.mulf %1, %1 : vector<8x768xf32>
    %cst_4 = arith.constant dense<0.000000e+00> : vector<768xf32>
    %10 = vector.multi_reduction <add>, %9, %cst_4 [0] : vector<8x768xf32> to vector<768xf32>
    %11 = vector.shape_cast %10 : vector<768xf32> to vector<1x768xf32>
    %12 = arith.mulf %8, %11 : vector<1x768xf32>
    %cst_5 = arith.constant 9.99999996E-13 : f32
    %13 = vector.broadcast %cst_5 : f32 to vector<1x768xf32>
    %14 = arith.maximumf %12, %13 : vector<1x768xf32>
    %15 = math.rsqrt %14 : vector<1x768xf32>
    %16 = arith.mulf %5, %15 : vector<1x768xf32>
    %c0_6 = arith.constant 0 : index
    %c0_7 = arith.constant 0 : index
    %17 = vector.load %arg3[%c0_6, %c0_7] : memref<768x1xf32, #tpu.memory_space<vmem>>, vector<768x1xf32>
    %18 = vector.broadcast %17 : vector<768x1xf32> to vector<768x768xf32>
    %19 = vector.broadcast %16 : vector<1x768xf32> to vector<768x768xf32>
    %20 = arith.mulf %18, %19 : vector<768x768xf32>
    %c0_8 = arith.constant 0 : index
    %c0_9 = arith.constant 0 : index
    %21 = vector.load %arg4[%c0_8, %c0_9] : memref<1x1xf32, #tpu.memory_space<vmem>>, vector<1x1xf32>
    %22 = vector.broadcast %21 : vector<1x1xf32> to vector<768x768xf32>
    %23 = arith.addf %20, %22 : vector<768x768xf32>
    %24 = math.tanh %23 : vector<768x768xf32>
    %25 = math.exp %24 : vector<768x768xf32>
    %cst_10 = arith.constant dense<0.000000e+00> : vector<9x768xf32>
    %26 = tpu.matmul %0, %25, %cst_10 {dimension_numbers = #tpu.dot_dimension_numbers<[1], [1], [0], [0], [0, 0, 1, 0], [], []>} : vector<9x768xf32>, vector<768x768xf32>, vector<9x768xf32> -> vector<9x768xf32>
    %27 = vector.extract_strided_slice %26 {offsets = [0, 0], sizes = [8, 768], strides = [1, 1]} : vector<9x768xf32> to vector<8x768xf32>
    %28 = vector.extract_strided_slice %26 {offsets = [8, 0], sizes = [1, 768], strides = [1, 1]} : vector<9x768xf32> to vector<1x768xf32>
    %29 = vector.broadcast %28 : vector<1x768xf32> to vector<8x768xf32>
    %30 = arith.divf %27, %29 : vector<8x768xf32>
    %c0_11 = arith.constant 0 : index
    %c0_12 = arith.constant 0 : index
    %31 = vector.load %arg5[%c0_11, %c0_12] : memref<768x2xf32, #tpu.memory_space<vmem>>, vector<768x2xf32>
    %cst_13 = arith.constant dense<0.000000e+00> : vector<8x2xf32>
    %32 = tpu.matmul %30, %31, %cst_13 {dimension_numbers = #tpu.dot_dimension_numbers<[1], [0], [0], [1], [0, 0, 1, 1], [], []>} : vector<8x768xf32>, vector<768x2xf32>, vector<8x2xf32> -> vector<8x2xf32>
    %c0_14 = arith.constant 0 : index
    %c0_15 = arith.constant 0 : index
    %c0_16 = arith.constant 0 : index
    %33 = vector.load %arg6[%c0_14, %c0_15, %c0_16] : memref<1x8x2xf32, #tpu.memory_space<vmem>>, vector<1x8x2xf32>
    %34 = vector.shape_cast %33 : vector<1x8x2xf32> to vector<8x2xf32>
    %35 = vector.shape_cast %32 : vector<8x2xf32> to vector<1x8x2xf32>
    tpu.vector_store %arg6[%c0_14, %c0_15, %c0_16], %35 {strides = array<i32>} : memref<1x8x2xf32, #tpu.memory_space<vmem>>, vector<1x8x2xf32>,
    return
  }
  func.func @transform_0(%arg0: i32) -> (i32, i32) {
    %c0_i32 = arith.constant 0 : i32
    %c0_i32_0 = arith.constant 0 : i32
    %c0_i32_1 = arith.constant 0 : i32
    return %c0_i32, %c0_i32_0 : i32, i32
  }
  func.func @transform_1(%arg0: i32) -> (i32, i32) {
    %c0_i32 = arith.constant 0 : i32
    %c0_i32_0 = arith.constant 0 : i32
    %c0_i32_1 = arith.constant 0 : i32
    return %c0_i32, %c0_i32_0 : i32, i32
  }
  func.func @transform_2(%arg0: i32) -> (i32, i32) {
    %c0_i32 = arith.constant 0 : i32
    %c0_i32_0 = arith.constant 0 : i32
    return %arg0, %c0_i32 : i32, i32
  }
  func.func @transform_3(%arg0: i32) -> (i32, i32) {
    %c0_i32 = arith.constant 0 : i32
    %c0_i32_0 = arith.constant 0 : i32
    %c0_i32_1 = arith.constant 0 : i32
    return %c0_i32, %c0_i32_0 : i32, i32
  }
  func.func @transform_4(%arg0: i32) -> (i32, i32) {
    %c0_i32 = arith.constant 0 : i32
    %c0_i32_0 = arith.constant 0 : i32
    return %arg0, %c0_i32 : i32, i32
  }
  func.func @transform_5(%arg0: i32) -> (i32, i32, i32) {
    %c0_i32 = arith.constant 0 : i32
    %c0_i32_0 = arith.constant 0 : i32
    %c0_i32_1 = arith.constant 0 : i32
    return %arg0, %c0_i32, %c0_i32_0 : i32, i32, i32
  }
}

</mosaic_0001>

<llo_original>
// kernel: tpu_custom_call.1
$region0: #{tpu_custom_call.1}
  #allocation0 [shape = 'u32[]', space=smem, size = 0x4, offset = 0x4, fixed_abs, tag = 'smem constant byte address 0x4 - core index']
  #allocation1 [shape = 'u32[144,128]{1,0:T(1,128)}', space=vmem, size = 0x12000, scoped, tag = 'internal scratch']
  #allocation2 [shape = 'f32[1,1]{1,0:T(1,128)S(1)}', space=vmem, size = 0x200, scoped, tag = 'scoped memory for tpu_custom_call.1']
  %s0 = inlined_call_operand.vmem [shape: f32[9,768], index: 0, kind: input, shape index: {}]
  %s1 = inlined_call_operand.vmem [shape: f32[8,768], index: 1, kind: input, shape index: {}]
  %s2 = inlined_call_operand.vmem [shape: f32[768,1], index: 2, kind: input, shape index: {}]
  %s3 = inlined_call_operand.<no memory space> [shape: f32[1,1], index: 3, kind: input, shape index: {}]
  %s4 = inlined_call_operand.vmem [shape: f32[768,2], index: 4, kind: input, shape index: {}]
  %s5 = inlined_call_operand.vmem [shape: f32[1,8,2], index: 5, kind: output, shape index: {}]
  %s6 = sld [smem:[#allocation0]]
  $region30: #{tpu_custom_call.1} parent=0
    _
  %s8 = ssub.s32 1, %s6
  %s9 = scalar_select 0, %s8, %s6
  %v10 = vstv %s3
  %11 = vst [vmem:[#allocation2] sm:$0x1] %v10
  // Predicated region
  $region2: #{tpu_custom_call.1} parent=0 // pred_check
    _
  $region3: #{tpu_custom_call.1} parent=0 // pred_check_branch
    %13 = sbr.rel (0) target = $region5
  $region4: #{tpu_custom_call.1} parent=0 // pred_region
    _
  $region5: #{tpu_custom_call.1} parent=0 // pred_fallthru
    _
  // Predicated region
  $region6: #{tpu_custom_call.1} parent=0 // pred_check
    _
  $region7: #{tpu_custom_call.1} parent=0 // pred_check_branch
    %15 = sbr.rel (0) target = $region9
  $region8: #{tpu_custom_call.1} parent=0 // pred_region
    _
  $region9: #{tpu_custom_call.1} parent=0 // pred_fallthru
    _
  // Predicated region
  $region10: #{tpu_custom_call.1} parent=0 // pred_check
    _
  $region11: #{tpu_custom_call.1} parent=0 // pred_check_branch
    %17 = sbr.rel (0) target = $region13
  $region12: #{tpu_custom_call.1} parent=0 // pred_region
    _
  $region13: #{tpu_custom_call.1} parent=0 // pred_fallthru
    _
  // Predicated region
  $region14: #{tpu_custom_call.1} parent=0 // pred_check
    _
  $region15: #{tpu_custom_call.1} parent=0 // pred_check_branch
    %19 = sbr.rel (0) target = $region17
  $region16: #{tpu_custom_call.1} parent=0 // pred_region
    _
  $region17: #{tpu_custom_call.1} parent=0 // pred_fallthru
    _
  // Predicated region
  $region18: #{tpu_custom_call.1} parent=0 // pred_check
    _
  $region19: #{tpu_custom_call.1} parent=0 // pred_check_branch
    %21 = sbr.rel (0) target = $region21
  $region20: #{tpu_custom_call.1} parent=0 // pred_region
    _
  $region21: #{tpu_custom_call.1} parent=0 // pred_fallthru
    _
  %v22 = vld [vmem:[%s0] sm:$0xff]
  %v23 = vld [vmem:[%s0 + $0x8] sm:$0xff]
  %v24 = vld [vmem:[%s0 + $0x10] sm:$0xff]
  %v25 = vld [vmem:[%s0 + $0x18] sm:$0xff]
  %v26 = vld [vmem:[%s0 + $0x20] sm:$0xff]
  %v27 = vld [vmem:[%s0 + $0x28] sm:$0xff]
  %v28 = vld [vmem:[%s0 + $0x30] sm:$0x1]
  %v29 = vld [vmem:[%s0 + $0x38] sm:$0x1]
  %v30 = vld [vmem:[%s0 + $0x40] sm:$0x1]
  %v31 = vld [vmem:[%s0 + $0x48] sm:$0x1]
  %v32 = vld [vmem:[%s0 + $0x50] sm:$0x1]
  %v33 = vld [vmem:[%s0 + $0x58] sm:$0x1]
  %v34 = vld [vmem:[%s1] sm:$0xff]
  %v35 = vld [vmem:[%s1 + $0x8] sm:$0xff]
  %v36 = vld [vmem:[%s1 + $0x10] sm:$0xff]
  %v37 = vld [vmem:[%s1 + $0x18] sm:$0xff]
  %v38 = vld [vmem:[%s1 + $0x20] sm:$0xff]
  %v39 = vld [vmem:[%s1 + $0x28] sm:$0xff]
  %v40 = vmul.f32 %v22, %v34
  %v41 = vmul.f32 %v23, %v35
  %v42 = vmul.f32 %v24, %v36
  %v43 = vmul.f32 %v25, %v37
  %v44 = vmul.f32 %v26, %v38
  %v45 = vmul.f32 %v27, %v39
  %v46 = vrot.slane %v40, 4
  %v47 = vadd.f32 %v40, %v46
  %v48 = vrot.slane %v47, 2
  %v49 = vadd.f32 %v47, %v48
  %v50 = vrot.slane %v49, 1
  %v51 = vadd.f32 %v49, %v50
  %v52 = vrot.slane %v41, 4
  %v53 = vadd.f32 %v41, %v52
  %v54 = vrot.slane %v53, 2
  %v55 = vadd.f32 %v53, %v54
  %v56 = vrot.slane %v55, 1
  %v57 = vadd.f32 %v55, %v56
  %v58 = vrot.slane %v42, 4
  %v59 = vadd.f32 %v42, %v58
  %v60 = vrot.slane %v59, 2
  %v61 = vadd.f32 %v59, %v60
  %v62 = vrot.slane %v61, 1
  %v63 = vadd.f32 %v61, %v62
  %v64 = vrot.slane %v43, 4
  %v65 = vadd.f32 %v43, %v64
  %v66 = vrot.slane %v65, 2
  %v67 = vadd.f32 %v65, %v66
  %v68 = vrot.slane %v67, 1
  %v69 = vadd.f32 %v67, %v68
  %v70 = vrot.slane %v44, 4
  %v71 = vadd.f32 %v44, %v70
  %v72 = vrot.slane %v71, 2
  %v73 = vadd.f32 %v71, %v72
  %v74 = vrot.slane %v73, 1
  %v75 = vadd.f32 %v73, %v74
  %v76 = vrot.slane %v45, 4
  %v77 = vadd.f32 %v45, %v76
  %v78 = vrot.slane %v77, 2
  %v79 = vadd.f32 %v77, %v78
  %v80 = vrot.slane %v79, 1
  %v81 = vadd.f32 %v79, %v80
  %v82 = vmul.f32 %v22, %v22
  %v83 = vmul.f32 %v23, %v23
  %v84 = vmul.f32 %v24, %v24
  %v85 = vmul.f32 %v25, %v25
  %v86 = vmul.f32 %v26, %v26
  %v87 = vmul.f32 %v27, %v27
  %v88 = vrot.slane %v82, 4
  %v89 = vadd.f32 %v82, %v88
  %v90 = vrot.slane %v89, 2
  %v91 = vadd.f32 %v89, %v90
  %v92 = vrot.slane %v91, 1
  %v93 = vadd.f32 %v91, %v92
  %v94 = vrot.slane %v83, 4
  %v95 = vadd.f32 %v83, %v94
  %v96 = vrot.slane %v95, 2
  %v97 = vadd.f32 %v95, %v96
  %v98 = vrot.slane %v97, 1
  %v99 = vadd.f32 %v97, %v98
  %v100 = vrot.slane %v84, 4
  %v101 = vadd.f32 %v84, %v100
  %v102 = vrot.slane %v101, 2
  %v103 = vadd.f32 %v101, %v102
  %v104 = vrot.slane %v103, 1
  %v105 = vadd.f32 %v103, %v104
  %v106 = vrot.slane %v85, 4
  %v107 = vadd.f32 %v85, %v106
  %v108 = vrot.slane %v107, 2
  %v109 = vadd.f32 %v107, %v108
  %v110 = vrot.slane %v109, 1
  %v111 = vadd.f32 %v109, %v110
  %v112 = vrot.slane %v86, 4
  %v113 = vadd.f32 %v86, %v112
  %v114 = vrot.slane %v113, 2
  %v115 = vadd.f32 %v113, %v114
  %v116 = vrot.slane %v115, 1
  %v117 = vadd.f32 %v115, %v116
  %v118 = vrot.slane %v87, 4
  %v119 = vadd.f32 %v87, %v118
  %v120 = vrot.slane %v119, 2
  %v121 = vadd.f32 %v119, %v120
  %v122 = vrot.slane %v121, 1
  %v123 = vadd.f32 %v121, %v122
  %v124 = vmul.f32 %v34, %v34
  %v125 = vmul.f32 %v35, %v35
  %v126 = vmul.f32 %v36, %v36
  %v127 = vmul.f32 %v37, %v37
  %v128 = vmul.f32 %v38, %v38
  %v129 = vmul.f32 %v39, %v39
  %v130 = vrot.slane %v124, 4
  %v131 = vadd.f32 %v124, %v130
  %v132 = vrot.slane %v131, 2
  %v133 = vadd.f32 %v131, %v132
  %v134 = vrot.slane %v133, 1
  %v135 = vadd.f32 %v133, %v134
  %v136 = vrot.slane %v125, 4
  %v137 = vadd.f32 %v125, %v136
  %v138 = vrot.slane %v137, 2
  %v139 = vadd.f32 %v137, %v138
  %v140 = vrot.slane %v139, 1
  %v141 = vadd.f32 %v139, %v140
  %v142 = vrot.slane %v126, 4
  %v143 = vadd.f32 %v126, %v142
  %v144 = vrot.slane %v143, 2
  %v145 = vadd.f32 %v143, %v144
  %v146 = vrot.slane %v145, 1
  %v147 = vadd.f32 %v145, %v146
  %v148 = vrot.slane %v127, 4
  %v149 = vadd.f32 %v127, %v148
  %v150 = vrot.slane %v149, 2
  %v151 = vadd.f32 %v149, %v150
  %v152 = vrot.slane %v151, 1
  %v153 = vadd.f32 %v151, %v152
  %v154 = vrot.slane %v128, 4
  %v155 = vadd.f32 %v128, %v154
  %v156 = vrot.slane %v155, 2
  %v157 = vadd.f32 %v155, %v156
  %v158 = vrot.slane %v157, 1
  %v159 = vadd.f32 %v157, %v158
  %v160 = vrot.slane %v129, 4
  %v161 = vadd.f32 %v129, %v160
  %v162 = vrot.slane %v161, 2
  %v163 = vadd.f32 %v161, %v162
  %v164 = vrot.slane %v163, 1
  %v165 = vadd.f32 %v163, %v164
  %v166 = vmul.f32 %v93, %v135
  %v167 = vmul.f32 %v99, %v141
  %v168 = vmul.f32 %v105, %v147
  %v169 = vmul.f32 %v111, %v153
  %v170 = vmul.f32 %v117, %v159
  %v171 = vmul.f32 %v123, %v165
  %v172 = vmax.f32 %v166, 1e-12
  %v173 = vmax.f32 %v167, 1e-12
  %v174 = vmax.f32 %v168, 1e-12
  %v175 = vmax.f32 %v169, 1e-12
  %v176 = vmax.f32 %v170, 1e-12
  %v177 = vmax.f32 %v171, 1e-12
  %v178 = vrsqrt.pop %v172
  %v179 = vrsqrt.pop %v173
  %v180 = vrsqrt.pop %v174
  %v181 = vrsqrt.pop %v175
  %v182 = vrsqrt.pop %v176
  %v183 = vrsqrt.pop %v177
  %v184 = vmul.f32 %v51, %v178
  %v185 = vmul.f32 %v57, %v179
  %v186 = vmul.f32 %v63, %v180
  %v187 = vmul.f32 %v69, %v181
  %v188 = vmul.f32 %v75, %v182
  %v189 = vmul.f32 %v81, %v183
  %v190 = vld [vmem:[%s2] sm:$0xff]
  %v191 = vld [vmem:[%s2 + $0x8] sm:$0xff]
  %v192 = vld [vmem:[%s2 + $0x10] sm:$0xff]
  %v193 = vld [vmem:[%s2 + $0x18] sm:$0xff]
  %v194 = vld [vmem:[%s2 + $0x20] sm:$0xff]
  %v195 = vld [vmem:[%s2 + $0x28] sm:$0xff]
  %v196 = vld [vmem:[%s2 + $0x30] sm:$0xff]
  %v197 = vld [vmem:[%s2 + $0x38] sm:$0xff]
  %v198 = vld [vmem:[%s2 + $0x40] sm:$0xff]
  %v199 = vld [vmem:[%s2 + $0x48] sm:$0xff]
  %v200 = vld [vmem:[%s2 + $0x50] sm:$0xff]
  %v201 = vld [vmem:[%s2 + $0x58] sm:$0xff]
  %v202 = vld [vmem:[%s2 + $0x60] sm:$0xff]
  %v203 = vld [vmem:[%s2 + $0x68] sm:$0xff]
  %v204 = vld [vmem:[%s2 + $0x70] sm:$0xff]
  %v205 = vld [vmem:[%s2 + $0x78] sm:$0xff]
  %v206 = vld [vmem:[%s2 + $0x80] sm:$0xff]
  %v207 = vld [vmem:[%s2 + $0x88] sm:$0xff]
  %v208 = vld [vmem:[%s2 + $0x90] sm:$0xff]
  %v209 = vld [vmem:[%s2 + $0x98] sm:$0xff]
  %v210 = vld [vmem:[%s2 + $0xa0] sm:$0xff]
  %v211 = vld [vmem:[%s2 + $0xa8] sm:$0xff]
  %v212 = vld [vmem:[%s2 + $0xb0] sm:$0xff]
  %v213 = vld [vmem:[%s2 + $0xb8] sm:$0xff]
  %v214 = vld [vmem:[%s2 + $0xc0] sm:$0xff]
  %v215 = vld [vmem:[%s2 + $0xc8] sm:$0xff]
  %v216 = vld [vmem:[%s2 + $0xd0] sm:$0xff]
  %v217 = vld [vmem:[%s2 + $0xd8] sm:$0xff]
  %v218 = vld [vmem:[%s2 + $0xe0] sm:$0xff]
  %v219 = vld [vmem:[%s2 + $0xe8] sm:$0xff]
  %v220 = vld [vmem:[%s2 + $0xf0] sm:$0xff]
  %v221 = vld [vmem:[%s2 + $0xf8] sm:$0xff]
  %v222 = vld [vmem:[%s2 + $0x100] sm:$0xff]
  %v223 = vld [vmem:[%s2 + $0x108] sm:$0xff]
  %v224 = vld [vmem:[%s2 + $0x110] sm:$0xff]
  %v225 = vld [vmem:[%s2 + $0x118] sm:$0xff]
  %v226 = vld [vmem:[%s2 + $0x120] sm:$0xff]
  %v227 = vld [vmem:[%s2 + $0x128] sm:$0xff]
  %v228 = vld [vmem:[%s2 + $0x130] sm:$0xff]
  %v229 = vld [vmem:[%s2 + $0x138] sm:$0xff]
  %v230 = vld [vmem:[%s2 + $0x140] sm:$0xff]
  %v231 = vld [vmem:[%s2 + $0x148] sm:$0xff]
  %v232 = vld [vmem:[%s2 + $0x150] sm:$0xff]
  %v233 = vld [vmem:[%s2 + $0x158] sm:$0xff]
  %v234 = vld [vmem:[%s2 + $0x160] sm:$0xff]
  %v235 = vld [vmem:[%s2 + $0x168] sm:$0xff]
  %v236 = vld [vmem:[%s2 + $0x170] sm:$0xff]
  %v237 = vld [vmem:[%s2 + $0x178] sm:$0xff]
  %v238 = vld [vmem:[%s2 + $0x180] sm:$0xff]
  %v239 = vld [vmem:[%s2 + $0x188] sm:$0xff]
  %v240 = vld [vmem:[%s2 + $0x190] sm:$0xff]
  %v241 = vld [vmem:[%s2 + $0x198] sm:$0xff]
  %v242 = vld [vmem:[%s2 + $0x1a0] sm:$0xff]
  %v243 = vld [vmem:[%s2 + $0x1a8] sm:$0xff]
  %v244 = vld [vmem:[%s2 + $0x1b0] sm:$0xff]
  %v245 = vld [vmem:[%s2 + $0x1b8] sm:$0xff]
  %v246 = vld [vmem:[%s2 + $0x1c0] sm:$0xff]
  %v247 = vld [vmem:[%s2 + $0x1c8] sm:$0xff]
  %v248 = vld [vmem:[%s2 + $0x1d0] sm:$0xff]
  %v249 = vld [vmem:[%s2 + $0x1d8] sm:$0xff]
  %v250 = vld [vmem:[%s2 + $0x1e0] sm:$0xff]
  %v251 = vld [vmem:[%s2 + $0x1e8] sm:$0xff]
  %v252 = vld [vmem:[%s2 + $0x1f0] sm:$0xff]
  %v253 = vld [vmem:[%s2 + $0x1f8] sm:$0xff]
  %v254 = vld [vmem:[%s2 + $0x200] sm:$0xff]
  %v255 = vld [vmem:[%s2 + $0x208] sm:$0xff]
  %v256 = vld [vmem:[%s2 + $0x210] sm:$0xff]
  %v257 = vld [vmem:[%s2 + $0x218] sm:$0xff]
  %v258 = vld [vmem:[%s2 + $0x220] sm:$0xff]
  %v259 = vld [vmem:[%s2 + $0x228] sm:$0xff]
  %v260 = vld [vmem:[%s2 + $0x230] sm:$0xff]
  %v261 = vld [vmem:[%s2 + $0x238] sm:$0xff]
  %v262 = vld [vmem:[%s2 + $0x240] sm:$0xff]
  %v263 = vld [vmem:[%s2 + $0x248] sm:$0xff]
  %v264 = vld [vmem:[%s2 + $0x250] sm:$0xff]
  %v265 = vld [vmem:[%s2 + $0x258] sm:$0xff]
  %v266 = vld [vmem:[%s2 + $0x260] sm:$0xff]
  %v267 = vld [vmem:[%s2 + $0x268] sm:$0xff]
  %v268 = vld [vmem:[%s2 + $0x270] sm:$0xff]
  %v269 = vld [vmem:[%s2 + $0x278] sm:$0xff]
  %v270 = vld [vmem:[%s2 + $0x280] sm:$0xff]
  %v271 = vld [vmem:[%s2 + $0x288] sm:$0xff]
  %v272 = vld [vmem:[%s2 + $0x290] sm:$0xff]
  %v273 = vld [vmem:[%s2 + $0x298] sm:$0xff]
  %v274 = vld [vmem:[%s2 + $0x2a0] sm:$0xff]
  %v275 = vld [vmem:[%s2 + $0x2a8] sm:$0xff]
  %v276 = vld [vmem:[%s2 + $0x2b0] sm:$0xff]
  %v277 = vld [vmem:[%s2 + $0x2b8] sm:$0xff]
  %v278 = vld [vmem:[%s2 + $0x2c0] sm:$0xff]
  %v279 = vld [vmem:[%s2 + $0x2c8] sm:$0xff]
  %v280 = vld [vmem:[%s2 + $0x2d0] sm:$0xff]
  %v281 = vld [vmem:[%s2 + $0x2d8] sm:$0xff]
  %v282 = vld [vmem:[%s2 + $0x2e0] sm:$0xff]
  %v283 = vld [vmem:[%s2 + $0x2e8] sm:$0xff]
  %v284 = vld [vmem:[%s2 + $0x2f0] sm:$0xff]
  %v285 = vld [vmem:[%s2 + $0x2f8] sm:$0xff]
  %287 = vset.pattern.permute.xlu0 0
  %288 = vperm.xlu0 %287, %v190
  %v289 = vpop.permute.xlu0 %288
  %292 = vset.pattern.permute.xlu0 0
  %293 = vperm.xlu0 %292, %v191
  %v294 = vpop.permute.xlu0 %293
  %297 = vset.pattern.permute.xlu0 0
  %298 = vperm.xlu0 %297, %v192
  %v299 = vpop.permute.xlu0 %298
  %302 = vset.pattern.permute.xlu0 0
  %303 = vperm.xlu0 %302, %v193
  %v304 = vpop.permute.xlu0 %303
  %307 = vset.pattern.permute.xlu0 0
  %308 = vperm.xlu0 %307, %v194
  %v309 = vpop.permute.xlu0 %308
  %312 = vset.pattern.permute.xlu0 0
  %313 = vperm.xlu0 %312, %v195
  %v314 = vpop.permute.xlu0 %313
  %317 = vset.pattern.permute.xlu0 0
  %318 = vperm.xlu0 %317, %v196
  %v319 = vpop.permute.xlu0 %318
  %322 = vset.pattern.permute.xlu0 0
  %323 = vperm.xlu0 %322, %v197
  %v324 = vpop.permute.xlu0 %323
  %327 = vset.pattern.permute.xlu0 0
  %328 = vperm.xlu0 %327, %v198
  %v329 = vpop.permute.xlu0 %328
  %332 = vset.pattern.permute.xlu0 0
  %333 = vperm.xlu0 %332, %v199
  %v334 = vpop.permute.xlu0 %333
  %337 = vset.pattern.permute.xlu0 0
  %338 = vperm.xlu0 %337, %v200
  %v339 = vpop.permute.xlu0 %338
  %342 = vset.pattern.permute.xlu0 0
  %343 = vperm.xlu0 %342, %v201
  %v344 = vpop.permute.xlu0 %343
  %347 = vset.pattern.permute.xlu0 0
  %348 = vperm.xlu0 %347, %v202
  %v349 = vpop.permute.xlu0 %348
  %352 = vset.pattern.permute.xlu0 0
  %353 = vperm.xlu0 %352, %v203
  %v354 = vpop.permute.xlu0 %353
  %357 = vset.pattern.permute.xlu0 0
  %358 = vperm.xlu0 %357, %v204
  %v359 = vpop.permute.xlu0 %358
  %362 = vset.pattern.permute.xlu0 0
  %363 = vperm.xlu0 %362, %v205
  %v364 = vpop.permute.xlu0 %363
  %367 = vset.pattern.permute.xlu0 0
  %368 = vperm.xlu0 %367, %v206
  %v369 = vpop.permute.xlu0 %368
  %372 = vset.pattern.permute.xlu0 0
  %373 = vperm.xlu0 %372, %v207
  %v374 = vpop.permute.xlu0 %373
  %377 = vset.pattern.permute.xlu0 0
  %378 = vperm.xlu0 %377, %v208
  %v379 = vpop.permute.xlu0 %378
  %382 = vset.pattern.permute.xlu0 0
  %383 = vperm.xlu0 %382, %v209
  %v384 = vpop.permute.xlu0 %383
  %387 = vset.pattern.permute.xlu0 0
  %388 = vperm.xlu0 %387, %v210
  %v389 = vpop.permute.xlu0 %388
  %392 = vset.pattern.permute.xlu0 0
  %393 = vperm.xlu0 %392, %v211
  %v394 = vpop.permute.xlu0 %393
  %397 = vset.pattern.permute.xlu0 0
  %398 = vperm.xlu0 %397, %v212
  %v399 = vpop.permute.xlu0 %398
  %402 = vset.pattern.permute.xlu0 0
  %403 = vperm.xlu0 %402, %v213
  %v404 = vpop.permute.xlu0 %403
  %407 = vset.pattern.permute.xlu0 0
  %408 = vperm.xlu0 %407, %v214
  %v409 = vpop.permute.xlu0 %408
  %412 = vset.pattern.permute.xlu0 0
  %413 = vperm.xlu0 %412, %v215
  %v414 = vpop.permute.xlu0 %413
  %417 = vset.pattern.permute.xlu0 0
  %418 = vperm.xlu0 %417, %v216
  %v419 = vpop.permute.xlu0 %418
  %422 = vset.pattern.permute.xlu0 0
  %423 = vperm.xlu0 %422, %v217
  %v424 = vpop.permute.xlu0 %423
  %427 = vset.pattern.permute.xlu0 0
  %428 = vperm.xlu0 %427, %v218
  %v429 = vpop.permute.xlu0 %428
  %432 = vset.pattern.permute.xlu0 0
  %433 = vperm.xlu0 %432, %v219
  %v434 = vpop.permute.xlu0 %433
  %437 = vset.pattern.permute.xlu0 0
  %438 = vperm.xlu0 %437, %v220
  %v439 = vpop.permute.xlu0 %438
  %442 = vset.pattern.permute.xlu0 0
  %443 = vperm.xlu0 %442, %v221
  %v444 = vpop.permute.xlu0 %443
  %447 = vset.pattern.permute.xlu0 0
  %448 = vperm.xlu0 %447, %v222
  %v449 = vpop.permute.xlu0 %448
  %452 = vset.pattern.permute.xlu0 0
  %453 = vperm.xlu0 %452, %v223
  %v454 = vpop.permute.xlu0 %453
  %457 = vset.pattern.permute.xlu0 0
  %458 = vperm.xlu0 %457, %v224
  %v459 = vpop.permute.xlu0 %458
  %462 = vset.pattern.permute.xlu0 0
  %463 = vperm.xlu0 %462, %v225
  %v464 = vpop.permute.xlu0 %463
  %467 = vset.pattern.permute.xlu0 0
  %468 = vperm.xlu0 %467, %v226
  %v469 = vpop.permute.xlu0 %468
  %472 = vset.pattern.permute.xlu0 0
  %473 = vperm.xlu0 %472, %v227
  %v474 = vpop.permute.xlu0 %473
  %477 = vset.pattern.permute.xlu0 0
  %478 = vperm.xlu0 %477, %v228
  %v479 = vpop.permute.xlu0 %478
  %482 = vset.pattern.permute.xlu0 0
  %483 = vperm.xlu0 %482, %v229
  %v484 = vpop.permute.xlu0 %483
  %487 = vset.pattern.permute.xlu0 0
  %488 = vperm.xlu0 %487, %v230
  %v489 = vpop.permute.xlu0 %488
  %492 = vset.pattern.permute.xlu0 0
  %493 = vperm.xlu0 %492, %v231
  %v494 = vpop.permute.xlu0 %493
  %497 = vset.pattern.permute.xlu0 0
  %498 = vperm.xlu0 %497, %v232
  %v499 = vpop.permute.xlu0 %498
  %502 = vset.pattern.permute.xlu0 0
  %503 = vperm.xlu0 %502, %v233
  %v504 = vpop.permute.xlu0 %503
  %507 = vset.pattern.permute.xlu0 0
  %508 = vperm.xlu0 %507, %v234
  %v509 = vpop.permute.xlu0 %508
  %512 = vset.pattern.permute.xlu0 0
  %513 = vperm.xlu0 %512, %v235
  %v514 = vpop.permute.xlu0 %513
  %517 = vset.pattern.permute.xlu0 0
  %518 = vperm.xlu0 %517, %v236
  %v519 = vpop.permute.xlu0 %518
  %522 = vset.pattern.permute.xlu0 0
  %523 = vperm.xlu0 %522, %v237
  %v524 = vpop.permute.xlu0 %523
  %527 = vset.pattern.permute.xlu0 0
  %528 = vperm.xlu0 %527, %v238
  %v529 = vpop.permute.xlu0 %528
  %532 = vset.pattern.permute.xlu0 0
  %533 = vperm.xlu0 %532, %v239
  %v534 = vpop.permute.xlu0 %533
  %537 = vset.pattern.permute.xlu0 0
  %538 = vperm.xlu0 %537, %v240
  %v539 = vpop.permute.xlu0 %538
  %542 = vset.pattern.permute.xlu0 0
  %543 = vperm.xlu0 %542, %v241
  %v544 = vpop.permute.xlu0 %543
  %547 = vset.pattern.permute.xlu0 0
  %548 = vperm.xlu0 %547, %v242
  %v549 = vpop.permute.xlu0 %548
  %552 = vset.pattern.permute.xlu0 0
  %553 = vperm.xlu0 %552, %v243
  %v554 = vpop.permute.xlu0 %553
  %557 = vset.pattern.permute.xlu0 0
  %558 = vperm.xlu0 %557, %v244
  %v559 = vpop.permute.xlu0 %558
  %562 = vset.pattern.permute.xlu0 0
  %563 = vperm.xlu0 %562, %v245
  %v564 = vpop.permute.xlu0 %563
  %567 = vset.pattern.permute.xlu0 0
  %568 = vperm.xlu0 %567, %v246
  %v569 = vpop.permute.xlu0 %568
  %572 = vset.pattern.permute.xlu0 0
  %573 = vperm.xlu0 %572, %v247
  %v574 = vpop.permute.xlu0 %573
  %577 = vset.pattern.permute.xlu0 0
  %578 = vperm.xlu0 %577, %v248
  %v579 = vpop.permute.xlu0 %578
  %582 = vset.pattern.permute.xlu0 0
  %583 = vperm.xlu0 %582, %v249
  %v584 = vpop.permute.xlu0 %583
  %587 = vset.pattern.permute.xlu0 0
  %588 = vperm.xlu0 %587, %v250
  %v589 = vpop.permute.xlu0 %588
  %592 = vset.pattern.permute.xlu0 0
  %593 = vperm.xlu0 %592, %v251
  %v594 = vpop.permute.xlu0 %593
  %597 = vset.pattern.permute.xlu0 0
  %598 = vperm.xlu0 %597, %v252
  %v599 = vpop.permute.xlu0 %598
  %602 = vset.pattern.permute.xlu0 0
  %603 = vperm.xlu0 %602, %v253
  %v604 = vpop.permute.xlu0 %603
  %607 = vset.pattern.permute.xlu0 0
  %608 = vperm.xlu0 %607, %v254
  %v609 = vpop.permute.xlu0 %608
  %612 = vset.pattern.permute.xlu0 0
  %613 = vperm.xlu0 %612, %v255
  %v614 = vpop.permute.xlu0 %613
  %617 = vset.pattern.permute.xlu0 0
  %618 = vperm.xlu0 %617, %v256
  %v619 = vpop.permute.xlu0 %618
  %622 = vset.pattern.permute.xlu0 0
  %623 = vperm.xlu0 %622, %v257
  %v624 = vpop.permute.xlu0 %623
  %627 = vset.pattern.permute.xlu0 0
  %628 = vperm.xlu0 %627, %v258
  %v629 = vpop.permute.xlu0 %628
  %632 = vset.pattern.permute.xlu0 0
  %633 = vperm.xlu0 %632, %v259
  %v634 = vpop.permute.xlu0 %633
  %637 = vset.pattern.permute.xlu0 0
  %638 = vperm.xlu0 %637, %v260
  %v639 = vpop.permute.xlu0 %638
  %642 = vset.pattern.permute.xlu0 0
  %643 = vperm.xlu0 %642, %v261
  %v644 = vpop.permute.xlu0 %643
  %647 = vset.pattern.permute.xlu0 0
  %648 = vperm.xlu0 %647, %v262
  %v649 = vpop.permute.xlu0 %648
  %652 = vset.pattern.permute.xlu0 0
  %653 = vperm.xlu0 %652, %v263
  %v654 = vpop.permute.xlu0 %653
  %657 = vset.pattern.permute.xlu0 0
  %658 = vperm.xlu0 %657, %v264
  %v659 = vpop.permute.xlu0 %658
  %662 = vset.pattern.permute.xlu0 0
  %663 = vperm.xlu0 %662, %v265
  %v664 = vpop.permute.xlu0 %663
  %667 = vset.pattern.permute.xlu0 0
  %668 = vperm.xlu0 %667, %v266
  %v669 = vpop.permute.xlu0 %668
  %672 = vset.pattern.permute.xlu0 0
  %673 = vperm.xlu0 %672, %v267
  %v674 = vpop.permute.xlu0 %673
  %677 = vset.pattern.permute.xlu0 0
  %678 = vperm.xlu0 %677, %v268
  %v679 = vpop.permute.xlu0 %678
  %682 = vset.pattern.permute.xlu0 0
  %683 = vperm.xlu0 %682, %v269
  %v684 = vpop.permute.xlu0 %683
  %687 = vset.pattern.permute.xlu0 0
  %688 = vperm.xlu0 %687, %v270
  %v689 = vpop.permute.xlu0 %688
  %692 = vset.pattern.permute.xlu0 0
  %693 = vperm.xlu0 %692, %v271
  %v694 = vpop.permute.xlu0 %693
  %697 = vset.pattern.permute.xlu0 0
  %698 = vperm.xlu0 %697, %v272
  %v699 = vpop.permute.xlu0 %698
  %702 = vset.pattern.permute.xlu0 0
  %703 = vperm.xlu0 %702, %v273
  %v704 = vpop.permute.xlu0 %703
  %707 = vset.pattern.permute.xlu0 0
  %708 = vperm.xlu0 %707, %v274
  %v709 = vpop.permute.xlu0 %708
  %712 = vset.pattern.permute.xlu0 0
  %713 = vperm.xlu0 %712, %v275
  %v714 = vpop.permute.xlu0 %713
  %717 = vset.pattern.permute.xlu0 0
  %718 = vperm.xlu0 %717, %v276
  %v719 = vpop.permute.xlu0 %718
  %722 = vset.pattern.permute.xlu0 0
  %723 = vperm.xlu0 %722, %v277
  %v724 = vpop.permute.xlu0 %723
  %727 = vset.pattern.permute.xlu0 0
  %728 = vperm.xlu0 %727, %v278
  %v729 = vpop.permute.xlu0 %728
  %732 = vset.pattern.permute.xlu0 0
  %733 = vperm.xlu0 %732, %v279
  %v734 = vpop.permute.xlu0 %733
  %737 = vset.pattern.permute.xlu0 0
  %738 = vperm.xlu0 %737, %v280
  %v739 = vpop.permute.xlu0 %738
  %742 = vset.pattern.permute.xlu0 0
  %743 = vperm.xlu0 %742, %v281
  %v744 = vpop.permute.xlu0 %743
  %747 = vset.pattern.permute.xlu0 0
  %748 = vperm.xlu0 %747, %v282
  %v749 = vpop.permute.xlu0 %748
  %752 = vset.pattern.permute.xlu0 0
  %753 = vperm.xlu0 %752, %v283
  %v754 = vpop.permute.xlu0 %753
  %757 = vset.pattern.permute.xlu0 0
  %758 = vperm.xlu0 %757, %v284
  %v759 = vpop.permute.xlu0 %758
  %762 = vset.pattern.permute.xlu0 0
  %763 = vperm.xlu0 %762, %v285
  %v764 = vpop.permute.xlu0 %763
  %v766 = vmul.f32 %v289, %v184
  %v767 = vmul.f32 %v289, %v185
  %v768 = vmul.f32 %v289, %v186
  %v769 = vmul.f32 %v289, %v187
  %v770 = vmul.f32 %v289, %v188
  %v771 = vmul.f32 %v289, %v189
  %v772 = vmul.f32 %v294, %v184
  %v773 = vmul.f32 %v294, %v185
  %v774 = vmul.f32 %v294, %v186
  %v775 = vmul.f32 %v294, %v187
  %v776 = vmul.f32 %v294, %v188
  %v777 = vmul.f32 %v294, %v189
  %v778 = vmul.f32 %v299, %v184
  %v779 = vmul.f32 %v299, %v185
  %v780 = vmul.f32 %v299, %v186
  %v781 = vmul.f32 %v299, %v187
  %v782 = vmul.f32 %v299, %v188
  %v783 = vmul.f32 %v299, %v189
  %v784 = vmul.f32 %v304, %v184
  %v785 = vmul.f32 %v304, %v185
  %v786 = vmul.f32 %v304, %v186
  %v787 = vmul.f32 %v304, %v187
  %v788 = vmul.f32 %v304, %v188
  %v789 = vmul.f32 %v304, %v189
  %v790 = vmul.f32 %v309, %v184
  %v791 = vmul.f32 %v309, %v185
  %v792 = vmul.f32 %v309, %v186
  %v793 = vmul.f32 %v309, %v187
  %v794 = vmul.f32 %v309, %v188
  %v795 = vmul.f32 %v309, %v189
  %v796 = vmul.f32 %v314, %v184
  %v797 = vmul.f32 %v314, %v185
  %v798 = vmul.f32 %v314, %v186
  %v799 = vmul.f32 %v314, %v187
  %v800 = vmul.f32 %v314, %v188
  %v801 = vmul.f32 %v314, %v189
  %v802 = vmul.f32 %v319, %v184
  %v803 = vmul.f32 %v319, %v185
  %v804 = vmul.f32 %v319, %v186
  %v805 = vmul.f32 %v319, %v187
  %v806 = vmul.f32 %v319, %v188
  %v807 = vmul.f32 %v319, %v189
  %v808 = vmul.f32 %v324, %v184
  %v809 = vmul.f32 %v324, %v185
  %v810 = vmul.f32 %v324, %v186
  %v811 = vmul.f32 %v324, %v187
  %v812 = vmul.f32 %v324, %v188
  %v813 = vmul.f32 %v324, %v189
  %v814 = vmul.f32 %v329, %v184
  %v815 = vmul.f32 %v329, %v185
  %v816 = vmul.f32 %v329, %v186
  %v817 = vmul.f32 %v329, %v187
  %v818 = vmul.f32 %v329, %v188
  %v819 = vmul.f32 %v329, %v189
  %v820 = vmul.f32 %v334, %v184
  %v821 = vmul.f32 %v334, %v185
  %v822 = vmul.f32 %v334, %v186
  %v823 = vmul.f32 %v334, %v187
  %v824 = vmul.f32 %v334, %v188
  %v825 = vmul.f32 %v334, %v189
  %v826 = vmul.f32 %v339, %v184
  %v827 = vmul.f32 %v339, %v185
  %v828 = vmul.f32 %v339, %v186
  %v829 = vmul.f32 %v339, %v187
  %v830 = vmul.f32 %v339, %v188
  %v831 = vmul.f32 %v339, %v189
  %v832 = vmul.f32 %v344, %v184
  %v833 = vmul.f32 %v344, %v185
  %v834 = vmul.f32 %v344, %v186
  %v835 = vmul.f32 %v344, %v187
  %v836 = vmul.f32 %v344, %v188
  %v837 = vmul.f32 %v344, %v189
  %v838 = vmul.f32 %v349, %v184
  %v839 = vmul.f32 %v349, %v185
  %v840 = vmul.f32 %v349, %v186
  %v841 = vmul.f32 %v349, %v187
  %v842 = vmul.f32 %v349, %v188
  %v843 = vmul.f32 %v349, %v189
  %v844 = vmul.f32 %v354, %v184
  %v845 = vmul.f32 %v354, %v185
  %v846 = vmul.f32 %v354, %v186
  %v847 = vmul.f32 %v354, %v187
  %v848 = vmul.f32 %v354, %v188
  %v849 = vmul.f32 %v354, %v189
  %v850 = vmul.f32 %v359, %v184
  %v851 = vmul.f32 %v359, %v185
  %v852 = vmul.f32 %v359, %v186
  %v853 = vmul.f32 %v359, %v187
  %v854 = vmul.f32 %v359, %v188
  %v855 = vmul.f32 %v359, %v189
  %v856 = vmul.f32 %v364, %v184
  %v857 = vmul.f32 %v364, %v185
  %v858 = vmul.f32 %v364, %v186
  %v859 = vmul.f32 %v364, %v187
  %v860 = vmul.f32 %v364, %v188
  %v861 = vmul.f32 %v364, %v189
  %v862 = vmul.f32 %v369, %v184
  %v863 = vmul.f32 %v369, %v185
  %v864 = vmul.f32 %v369, %v186
  %v865 = vmul.f32 %v369, %v187
  %v866 = vmul.f32 %v369, %v188
  %v867 = vmul.f32 %v369, %v189
  %v868 = vmul.f32 %v374, %v184
  %v869 = vmul.f32 %v374, %v185
  %v870 = vmul.f32 %v374, %v186
  %v871 = vmul.f32 %v374, %v187
  %v872 = vmul.f32 %v374, %v188
  %v873 = vmul.f32 %v374, %v189
  %v874 = vmul.f32 %v379, %v184
  %v875 = vmul.f32 %v379, %v185
  %v876 = vmul.f32 %v379, %v186
  %v877 = vmul.f32 %v379, %v187
  %v878 = vmul.f32 %v379, %v188
  %v879 = vmul.f32 %v379, %v189
  %v880 = vmul.f32 %v384, %v184
  %v881 = vmul.f32 %v384, %v185
  %v882 = vmul.f32 %v384, %v186
  %v883 = vmul.f32 %v384, %v187
  %v884 = vmul.f32 %v384, %v188
  %v885 = vmul.f32 %v384, %v189
  %v886 = vmul.f32 %v389, %v184
  %v887 = vmul.f32 %v389, %v185
  %v888 = vmul.f32 %v389, %v186
  %v889 = vmul.f32 %v389, %v187
  %v890 = vmul.f32 %v389, %v188
  %v891 = vmul.f32 %v389, %v189
  %v892 = vmul.f32 %v394, %v184
  %v893 = vmul.f32 %v394, %v185
  %v894 = vmul.f32 %v394, %v186
  %v895 = vmul.f32 %v394, %v187
  %v896 = vmul.f32 %v394, %v188
  %v897 = vmul.f32 %v394, %v189
  %v898 = vmul.f32 %v399, %v184
  %v899 = vmul.f32 %v399, %v185
  %v900 = vmul.f32 %v399, %v186
  %v901 = vmul.f32 %v399, %v187
  %v902 = vmul.f32 %v399, %v188
  %v903 = vmul.f32 %v399, %v189
  %v904 = vmul.f32 %v404, %v184
  %v905 = vmul.f32 %v404, %v185
  %v906 = vmul.f32 %v404, %v186
  %v907 = vmul.f32 %v404, %v187
  %v908 = vmul.f32 %v404, %v188
  %v909 = vmul.f32 %v404, %v189
  %v910 = vmul.f32 %v409, %v184
  %v911 = vmul.f32 %v409, %v185
  %v912 = vmul.f32 %v409, %v186
  %v913 = vmul.f32 %v409, %v187
  %v914 = vmul.f32 %v409, %v188
  %v915 = vmul.f32 %v409, %v189
  %v916 = vmul.f32 %v414, %v184
  %v917 = vmul.f32 %v414, %v185
  %v918 = vmul.f32 %v414, %v186
  %v919 = vmul.f32 %v414, %v187
  %v920 = vmul.f32 %v414, %v188
  %v921 = vmul.f32 %v414, %v189
  %v922 = vmul.f32 %v419, %v184
  %v923 = vmul.f32 %v419, %v185
  %v924 = vmul.f32 %v419, %v186
  %v925 = vmul.f32 %v419, %v187
  %v926 = vmul.f32 %v419, %v188
  %v927 = vmul.f32 %v419, %v189
  %v928 = vmul.f32 %v424, %v184
  %v929 = vmul.f32 %v424, %v185
  %v930 = vmul.f32 %v424, %v186
  %v931 = vmul.f32 %v424, %v187
  %v932 = vmul.f32 %v424, %v188
  %v933 = vmul.f32 %v424, %v189
  %v934 = vmul.f32 %v429, %v184
  %v935 = vmul.f32 %v429, %v185
  %v936 = vmul.f32 %v429, %v186
  %v937 = vmul.f32 %v429, %v187
  %v938 = vmul.f32 %v429, %v188
  %v939 = vmul.f32 %v429, %v189
  %v940 = vmul.f32 %v434, %v184
  %v941 = vmul.f32 %v434, %v185
  %v942 = vmul.f32 %v434, %v186
  %v943 = vmul.f32 %v434, %v187
  %v944 = vmul.f32 %v434, %v188
  %v945 = vmul.f32 %v434, %v189
  %v946 = vmul.f32 %v439, %v184
  %v947 = vmul.f32 %v439, %v185
  %v948 = vmul.f32 %v439, %v186
  %v949 = vmul.f32 %v439, %v187
  %v950 = vmul.f32 %v439, %v188
  %v951 = vmul.f32 %v439, %v189
  %v952 = vmul.f32 %v444, %v184
  %v953 = vmul.f32 %v444, %v185
  %v954 = vmul.f32 %v444, %v186
  %v955 = vmul.f32 %v444, %v187
  %v956 = vmul.f32 %v444, %v188
  %v957 = vmul.f32 %v444, %v189
  %v958 = vmul.f32 %v449, %v184
  %v959 = vmul.f32 %v449, %v185
  %v960 = vmul.f32 %v449, %v186
  %v961 = vmul.f32 %v449, %v187
  %v962 = vmul.f32 %v449, %v188
  %v963 = vmul.f32 %v449, %v189
  %v964 = vmul.f32 %v454, %v184
  %v965 = vmul.f32 %v454, %v185
  %v966 = vmul.f32 %v454, %v186
  %v967 = vmul.f32 %v454, %v187
  %v968 = vmul.f32 %v454, %v188
  %v969 = vmul.f32 %v454, %v189
  %v970 = vmul.f32 %v459, %v184
  %v971 = vmul.f32 %v459, %v185
  %v972 = vmul.f32 %v459, %v186
  %v973 = vmul.f32 %v459, %v187
  %v974 = vmul.f32 %v459, %v188
  %v975 = vmul.f32 %v459, %v189
  %v976 = vmul.f32 %v464, %v184
  %v977 = vmul.f32 %v464, %v185
  %v978 = vmul.f32 %v464, %v186
  %v979 = vmul.f32 %v464, %v187
  %v980 = vmul.f32 %v464, %v188
  %v981 = vmul.f32 %v464, %v189
  %v982 = vmul.f32 %v469, %v184
  %v983 = vmul.f32 %v469, %v185
  %v984 = vmul.f32 %v469, %v186
  %v985 = vmul.f32 %v469, %v187
  %v986 = vmul.f32 %v469, %v188
  %v987 = vmul.f32 %v469, %v189
  %v988 = vmul.f32 %v474, %v184
  %v989 = vmul.f32 %v474, %v185
  %v990 = vmul.f32 %v474, %v186
  %v991 = vmul.f32 %v474, %v187
  %v992 = vmul.f32 %v474, %v188
  %v993 = vmul.f32 %v474, %v189
  %v994 = vmul.f32 %v479, %v184
  %v995 = vmul.f32 %v479, %v185
  %v996 = vmul.f32 %v479, %v186
  %v997 = vmul.f32 %v479, %v187
  %v998 = vmul.f32 %v479, %v188
  %v999 = vmul.f32 %v479, %v189
  %v1000 = vmul.f32 %v484, %v184
  %v1001 = vmul.f32 %v484, %v185
  %v1002 = vmul.f32 %v484, %v186
  %v1003 = vmul.f32 %v484, %v187
  %v1004 = vmul.f32 %v484, %v188
  %v1005 = vmul.f32 %v484, %v189
  %v1006 = vmul.f32 %v489, %v184
  %v1007 = vmul.f32 %v489, %v185
  %v1008 = vmul.f32 %v489, %v186
  %v1009 = vmul.f32 %v489, %v187
  %v1010 = vmul.f32 %v489, %v188
  %v1011 = vmul.f32 %v489, %v189
  %v1012 = vmul.f32 %v494, %v184
  %v1013 = vmul.f32 %v494, %v185
  %v1014 = vmul.f32 %v494, %v186
  %v1015 = vmul.f32 %v494, %v187
  %v1016 = vmul.f32 %v494, %v188
  %v1017 = vmul.f32 %v494, %v189
  %v1018 = vmul.f32 %v499, %v184
  %v1019 = vmul.f32 %v499, %v185
  %v1020 = vmul.f32 %v499, %v186
  %v1021 = vmul.f32 %v499, %v187
  %v1022 = vmul.f32 %v499, %v188
  %v1023 = vmul.f32 %v499, %v189
  %v1024 = vmul.f32 %v504, %v184
  %v1025 = vmul.f32 %v504, %v185
  %v1026 = vmul.f32 %v504, %v186
  %v1027 = vmul.f32 %v504, %v187
  %v1028 = vmul.f32 %v504, %v188
  %v1029 = vmul.f32 %v504, %v189
  %v1030 = vmul.f32 %v509, %v184
  %v1031 = vmul.f32 %v509, %v185
  %v1032 = vmul.f32 %v509, %v186
  %v1033 = vmul.f32 %v509, %v187
  %v1034 = vmul.f32 %v509, %v188
  %v1035 = vmul.f32 %v509, %v189
  %v1036 = vmul.f32 %v514, %v184
  %v1037 = vmul.f32 %v514, %v185
  %v1038 = vmul.f32 %v514, %v186
  %v1039 = vmul.f32 %v514, %v187
  %v1040 = vmul.f32 %v514, %v188
  %v1041 = vmul.f32 %v514, %v189
  %v1042 = vmul.f32 %v519, %v184
  %v1043 = vmul.f32 %v519, %v185
  %v1044 = vmul.f32 %v519, %v186
  %v1045 = vmul.f32 %v519, %v187
  %v1046 = vmul.f32 %v519, %v188
  %v1047 = vmul.f32 %v519, %v189
  %v1048 = vmul.f32 %v524, %v184
  %v1049 = vmul.f32 %v524, %v185
  %v1050 = vmul.f32 %v524, %v186
  %v1051 = vmul.f32 %v524, %v187
  %v1052 = vmul.f32 %v524, %v188
  %v1053 = vmul.f32 %v524, %v189
  %v1054 = vmul.f32 %v529, %v184
  %v1055 = vmul.f32 %v529, %v185
  %v1056 = vmul.f32 %v529, %v186
  %v1057 = vmul.f32 %v529, %v187
  %v1058 = vmul.f32 %v529, %v188
  %v1059 = vmul.f32 %v529, %v189
  %v1060 = vmul.f32 %v534, %v184
  %v1061 = vmul.f32 %v534, %v185
  %v1062 = vmul.f32 %v534, %v186
  %v1063 = vmul.f32 %v534, %v187
  %v1064 = vmul.f32 %v534, %v188
  %v1065 = vmul.f32 %v534, %v189
  %v1066 = vmul.f32 %v539, %v184
  %v1067 = vmul.f32 %v539, %v185
  %v1068 = vmul.f32 %v539, %v186
  %v1069 = vmul.f32 %v539, %v187
  %v1070 = vmul.f32 %v539, %v188
  %v1071 = vmul.f32 %v539, %v189
  %v1072 = vmul.f32 %v544, %v184
  %v1073 = vmul.f32 %v544, %v185
  %v1074 = vmul.f32 %v544, %v186
  %v1075 = vmul.f32 %v544, %v187
  %v1076 = vmul.f32 %v544, %v188
  %v1077 = vmul.f32 %v544, %v189
  %v1078 = vmul.f32 %v549, %v184
  %v1079 = vmul.f32 %v549, %v185
  %v1080 = vmul.f32 %v549, %v186
  %v1081 = vmul.f32 %v549, %v187
  %v1082 = vmul.f32 %v549, %v188
  %v1083 = vmul.f32 %v549, %v189
  %v1084 = vmul.f32 %v554, %v184
  %v1085 = vmul.f32 %v554, %v185
  %v1086 = vmul.f32 %v554, %v186
  %v1087 = vmul.f32 %v554, %v187
  %v1088 = vmul.f32 %v554, %v188
  %v1089 = vmul.f32 %v554, %v189
  %v1090 = vmul.f32 %v559, %v184
  %v1091 = vmul.f32 %v559, %v185
  %v1092 = vmul.f32 %v559, %v186
  %v1093 = vmul.f32 %v559, %v187
  %v1094 = vmul.f32 %v559, %v188
  %v1095 = vmul.f32 %v559, %v189
  %v1096 = vmul.f32 %v564, %v184
  %v1097 = vmul.f32 %v564, %v185
  %v1098 = vmul.f32 %v564, %v186
  %v1099 = vmul.f32 %v564, %v187
  %v1100 = vmul.f32 %v564, %v188
  %v1101 = vmul.f32 %v564, %v189
  %v1102 = vmul.f32 %v569, %v184
  %v1103 = vmul.f32 %v569, %v185
  %v1104 = vmul.f32 %v569, %v186
  %v1105 = vmul.f32 %v569, %v187
  %v1106 = vmul.f32 %v569, %v188
  %v1107 = vmul.f32 %v569, %v189
  %v1108 = vmul.f32 %v574, %v184
  %v1109 = vmul.f32 %v574, %v185
  %v1110 = vmul.f32 %v574, %v186
  %v1111 = vmul.f32 %v574, %v187
  %v1112 = vmul.f32 %v574, %v188
  %v1113 = vmul.f32 %v574, %v189
  %v1114 = vmul.f32 %v579, %v184
  %v1115 = vmul.f32 %v579, %v185
  %v1116 = vmul.f32 %v579, %v186
  %v1117 = vmul.f32 %v579, %v187
  %v1118 = vmul.f32 %v579, %v188
  %v1119 = vmul.f32 %v579, %v189
  %v1120 = vmul.f32 %v584, %v184
  %v1121 = vmul.f32 %v584, %v185
  %v1122 = vmul.f32 %v584, %v186
  %v1123 = vmul.f32 %v584, %v187
  %v1124 = vmul.f32 %v584, %v188
  %v1125 = vmul.f32 %v584, %v189
  %v1126 = vmul.f32 %v589, %v184
  %v1127 = vmul.f32 %v589, %v185
  %v1128 = vmul.f32 %v589, %v186
  %v1129 = vmul.f32 %v589, %v187
  %v1130 = vmul.f32 %v589, %v188
  %v1131 = vmul.f32 %v589, %v189
  %v1132 = vmul.f32 %v594, %v184
  %v1133 = vmul.f32 %v594, %v185
  %v1134 = vmul.f32 %v594, %v186
  %v1135 = vmul.f32 %v594, %v187
  %v1136 = vmul.f32 %v594, %v188
  %v1137 = vmul.f32 %v594, %v189
  %v1138 = vmul.f32 %v599, %v184
  %v1139 = vmul.f32 %v599, %v185
  %v1140 = vmul.f32 %v599, %v186
  %v1141 = vmul.f32 %v599, %v187
  %v1142 = vmul.f32 %v599, %v188
  %v1143 = vmul.f32 %v599, %v189
  %v1144 = vmul.f32 %v604, %v184
  %v1145 = vmul.f32 %v604, %v185
  %v1146 = vmul.f32 %v604, %v186
  %v1147 = vmul.f32 %v604, %v187
  %v1148 = vmul.f32 %v604, %v188
  %v1149 = vmul.f32 %v604, %v189
  %v1150 = vmul.f32 %v609, %v184
  %v1151 = vmul.f32 %v609, %v185
  %v1152 = vmul.f32 %v609, %v186
  %v1153 = vmul.f32 %v609, %v187
  %v1154 = vmul.f32 %v609, %v188
  %v1155 = vmul.f32 %v609, %v189
  %v1156 = vmul.f32 %v614, %v184
  %v1157 = vmul.f32 %v614, %v185
  %v1158 = vmul.f32 %v614, %v186
  %v1159 = vmul.f32 %v614, %v187
  %v1160 = vmul.f32 %v614, %v188
  %v1161 = vmul.f32 %v614, %v189
  %v1162 = vmul.f32 %v619, %v184
  %v1163 = vmul.f32 %v619, %v185
  %v1164 = vmul.f32 %v619, %v186
  %v1165 = vmul.f32 %v619, %v187
  %v1166 = vmul.f32 %v619, %v188
  %v1167 = vmul.f32 %v619, %v189
  %v1168 = vmul.f32 %v624, %v184
  %v1169 = vmul.f32 %v624, %v185
  %v1170 = vmul.f32 %v624, %v186
  %v1171 = vmul.f32 %v624, %v187
  %v1172 = vmul.f32 %v624, %v188
  %v1173 = vmul.f32 %v624, %v189
  %v1174 = vmul.f32 %v629, %v184
  %v1175 = vmul.f32 %v629, %v185
  %v1176 = vmul.f32 %v629, %v186
  %v1177 = vmul.f32 %v629, %v187
  %v1178 = vmul.f32 %v629, %v188
  %v1179 = vmul.f32 %v629, %v189
  %v1180 = vmul.f32 %v634, %v184
  %v1181 = vmul.f32 %v634, %v185
  %v1182 = vmul.f32 %v634, %v186
  %v1183 = vmul.f32 %v634, %v187
  %v1184 = vmul.f32 %v634, %v188
  %v1185 = vmul.f32 %v634, %v189
  %v1186 = vmul.f32 %v639, %v184
  %v1187 = vmul.f32 %v639, %v185
  %v1188 = vmul.f32 %v639, %v186
  %v1189 = vmul.f32 %v639, %v187
  %v1190 = vmul.f32 %v639, %v188
  %v1191 = vmul.f32 %v639, %v189
  %v1192 = vmul.f32 %v644, %v184
  %v1193 = vmul.f32 %v644, %v185
  %v1194 = vmul.f32 %v644, %v186
  %v1195 = vmul.f32 %v644, %v187
  %v1196 = vmul.f32 %v644, %v188
  %v1197 = vmul.f32 %v644, %v189
  %v1198 = vmul.f32 %v649, %v184
  %v1199 = vmul.f32 %v649, %v185
  %v1200 = vmul.f32 %v649, %v186
  %v1201 = vmul.f32 %v649, %v187
  %v1202 = vmul.f32 %v649, %v188
  %v1203 = vmul.f32 %v649, %v189
  %v1204 = vmul.f32 %v654, %v184
  %v1205 = vmul.f32 %v654, %v185
  %v1206 = vmul.f32 %v654, %v186
  %v1207 = vmul.f32 %v654, %v187
  %v1208 = vmul.f32 %v654, %v188
  %v1209 = vmul.f32 %v654, %v189
  %v1210 = vmul.f32 %v659, %v184
  %v1211 = vmul.f32 %v659, %v185
  %v1212 = vmul.f32 %v659, %v186
  %v1213 = vmul.f32 %v659, %v187
  %v1214 = vmul.f32 %v659, %v188
  %v1215 = vmul.f32 %v659, %v189
  %v1216 = vmul.f32 %v664, %v184
  %v1217 = vmul.f32 %v664, %v185
  %v1218 = vmul.f32 %v664, %v186
  %v1219 = vmul.f32 %v664, %v187
  %v1220 = vmul.f32 %v664, %v188
  %v1221 = vmul.f32 %v664, %v189
  %v1222 = vmul.f32 %v669, %v184
  %v1223 = vmul.f32 %v669, %v185
  %v1224 = vmul.f32 %v669, %v186
  %v1225 = vmul.f32 %v669, %v187
  %v1226 = vmul.f32 %v669, %v188
  %v1227 = vmul.f32 %v669, %v189
  %v1228 = vmul.f32 %v674, %v184
  %v1229 = vmul.f32 %v674, %v185
  %v1230 = vmul.f32 %v674, %v186
  %v1231 = vmul.f32 %v674, %v187
  %v1232 = vmul.f32 %v674, %v188
  %v1233 = vmul.f32 %v674, %v189
  %v1234 = vmul.f32 %v679, %v184
  %v1235 = vmul.f32 %v679, %v185
  %v1236 = vmul.f32 %v679, %v186
  %v1237 = vmul.f32 %v679, %v187
  %v1238 = vmul.f32 %v679, %v188
  %v1239 = vmul.f32 %v679, %v189
  %v1240 = vmul.f32 %v684, %v184
  %v1241 = vmul.f32 %v684, %v185
  %v1242 = vmul.f32 %v684, %v186
  %v1243 = vmul.f32 %v684, %v187
  %v1244 = vmul.f32 %v684, %v188
  %v1245 = vmul.f32 %v684, %v189
  %v1246 = vmul.f32 %v689, %v184
  %v1247 = vmul.f32 %v689, %v185
  %v1248 = vmul.f32 %v689, %v186
  %v1249 = vmul.f32 %v689, %v187
  %v1250 = vmul.f32 %v689, %v188
  %v1251 = vmul.f32 %v689, %v189
  %v1252 = vmul.f32 %v694, %v184
  %v1253 = vmul.f32 %v694, %v185
  %v1254 = vmul.f32 %v694, %v186
  %v1255 = vmul.f32 %v694, %v187
  %v1256 = vmul.f32 %v694, %v188
  %v1257 = vmul.f32 %v694, %v189
  %v1258 = vmul.f32 %v699, %v184
  %v1259 = vmul.f32 %v699, %v185
  %v1260 = vmul.f32 %v699, %v186
  %v1261 = vmul.f32 %v699, %v187
  %v1262 = vmul.f32 %v699, %v188
  %v1263 = vmul.f32 %v699, %v189
  %v1264 = vmul.f32 %v704, %v184
  %v1265 = vmul.f32 %v704, %v185
  %v1266 = vmul.f32 %v704, %v186
  %v1267 = vmul.f32 %v704, %v187
  %v1268 = vmul.f32 %v704, %v188
  %v1269 = vmul.f32 %v704, %v189
  %v1270 = vmul.f32 %v709, %v184
  %v1271 = vmul.f32 %v709, %v185
  %v1272 = vmul.f32 %v709, %v186
  %v1273 = vmul.f32 %v709, %v187
  %v1274 = vmul.f32 %v709, %v188
  %v1275 = vmul.f32 %v709, %v189
  %v1276 = vmul.f32 %v714, %v184
  %v1277 = vmul.f32 %v714, %v185
  %v1278 = vmul.f32 %v714, %v186
  %v1279 = vmul.f32 %v714, %v187
  %v1280 = vmul.f32 %v714, %v188
  %v1281 = vmul.f32 %v714, %v189
  %v1282 = vmul.f32 %v719, %v184
  %v1283 = vmul.f32 %v719, %v185
  %v1284 = vmul.f32 %v719, %v186
  %v1285 = vmul.f32 %v719, %v187
  %v1286 = vmul.f32 %v719, %v188
  %v1287 = vmul.f32 %v719, %v189
  %v1288 = vmul.f32 %v724, %v184
  %v1289 = vmul.f32 %v724, %v185
  %v1290 = vmul.f32 %v724, %v186
  %v1291 = vmul.f32 %v724, %v187
  %v1292 = vmul.f32 %v724, %v188
  %v1293 = vmul.f32 %v724, %v189
  %v1294 = vmul.f32 %v729, %v184
  %v1295 = vmul.f32 %v729, %v185
  %v1296 = vmul.f32 %v729, %v186
  %v1297 = vmul.f32 %v729, %v187
  %v1298 = vmul.f32 %v729, %v188
  %v1299 = vmul.f32 %v729, %v189
  %v1300 = vmul.f32 %v734, %v184
  %v1301 = vmul.f32 %v734, %v185
  %v1302 = vmul.f32 %v734, %v186
  %v1303 = vmul.f32 %v734, %v187
  %v1304 = vmul.f32 %v734, %v188
  %v1305 = vmul.f32 %v734, %v189
  %v1306 = vmul.f32 %v739, %v184
  %v1307 = vmul.f32 %v739, %v185
  %v1308 = vmul.f32 %v739, %v186
  %v1309 = vmul.f32 %v739, %v187
  %v1310 = vmul.f32 %v739, %v188
  %v1311 = vmul.f32 %v739, %v189
  %v1312 = vmul.f32 %v744, %v184
  %v1313 = vmul.f32 %v744, %v185
  %v1314 = vmul.f32 %v744, %v186
  %v1315 = vmul.f32 %v744, %v187
  %v1316 = vmul.f32 %v744, %v188
  %v1317 = vmul.f32 %v744, %v189
  %v1318 = vmul.f32 %v749, %v184
  %v1319 = vmul.f32 %v749, %v185
  %v1320 = vmul.f32 %v749, %v186
  %v1321 = vmul.f32 %v749, %v187
  %v1322 = vmul.f32 %v749, %v188
  %v1323 = vmul.f32 %v749, %v189
  %v1324 = vmul.f32 %v754, %v184
  %v1325 = vmul.f32 %v754, %v185
  %v1326 = vmul.f32 %v754, %v186
  %v1327 = vmul.f32 %v754, %v187
  %v1328 = vmul.f32 %v754, %v188
  %v1329 = vmul.f32 %v754, %v189
  %v1330 = vmul.f32 %v759, %v184
  %v1331 = vmul.f32 %v759, %v185
  %v1332 = vmul.f32 %v759, %v186
  %v1333 = vmul.f32 %v759, %v187
  %v1334 = vmul.f32 %v759, %v188
  %v1335 = vmul.f32 %v759, %v189
  %v1336 = vmul.f32 %v764, %v184
  %v1337 = vmul.f32 %v764, %v185
  %v1338 = vmul.f32 %v764, %v186
  %v1339 = vmul.f32 %v764, %v187
  %v1340 = vmul.f32 %v764, %v188
  %v1341 = vmul.f32 %v764, %v189
  %v1342 = vld [vmem:[#allocation2] sm:$0x1]
  %v1344 = vlaneseq
  %v1345 = vshrl.u32 %v1344, 7
  %v1346 = vsub.s32 0, %v1345
  %v1347 = vrot.slane %v1342, %v1346
  %1348 = vset.pattern.permute.xlu0 0
  %1349 = vperm.xlu0 %1348, %v1347
  %v1350 = vpop.permute.xlu0 %1349
  %v1352 = vadd.f32 %v766, %v1350
  %v1353 = vadd.f32 %v767, %v1350
  %v1354 = vadd.f32 %v768, %v1350
  %v1355 = vadd.f32 %v769, %v1350
  %v1356 = vadd.f32 %v770, %v1350
  %v1357 = vadd.f32 %v771, %v1350
  %v1358 = vadd.f32 %v772, %v1350
  %v1359 = vadd.f32 %v773, %v1350
  %v1360 = vadd.f32 %v774, %v1350
  %v1361 = vadd.f32 %v775, %v1350
  %v1362 = vadd.f32 %v776, %v1350
  %v1363 = vadd.f32 %v777, %v1350
  %v1364 = vadd.f32 %v778, %v1350
  %v1365 = vadd.f32 %v779, %v1350
  %v1366 = vadd.f32 %v780, %v1350
  %v1367 = vadd.f32 %v781, %v1350
  %v1368 = vadd.f32 %v782, %v1350
  %v1369 = vadd.f32 %v783, %v1350
  %v1370 = vadd.f32 %v784, %v1350
  %v1371 = vadd.f32 %v785, %v1350
  %v1372 = vadd.f32 %v786, %v1350
  %v1373 = vadd.f32 %v787, %v1350
  %v1374 = vadd.f32 %v788, %v1350
  %v1375 = vadd.f32 %v789, %v1350
  %v1376 = vadd.f32 %v790, %v1350
  %v1377 = vadd.f32 %v791, %v1350
  %v1378 = vadd.f32 %v792, %v1350
  %v1379 = vadd.f32 %v793, %v1350
  %v1380 = vadd.f32 %v794, %v1350
  %v1381 = vadd.f32 %v795, %v1350
  %v1382 = vadd.f32 %v796, %v1350
  %v1383 = vadd.f32 %v797, %v1350
  %v1384 = vadd.f32 %v798, %v1350
  %v1385 = vadd.f32 %v799, %v1350
  %v1386 = vadd.f32 %v800, %v1350
  %v1387 = vadd.f32 %v801, %v1350
  %v1388 = vadd.f32 %v802, %v1350
  %v1389 = vadd.f32 %v803, %v1350
  %v1390 = vadd.f32 %v804, %v1350
  %v1391 = vadd.f32 %v805, %v1350
  %v1392 = vadd.f32 %v806, %v1350
  %v1393 = vadd.f32 %v807, %v1350
  %v1394 = vadd.f32 %v808, %v1350
  %v1395 = vadd.f32 %v809, %v1350
  %v1396 = vadd.f32 %v810, %v1350
  %v1397 = vadd.f32 %v811, %v1350
  %v1398 = vadd.f32 %v812, %v1350
  %v1399 = vadd.f32 %v813, %v1350
  %v1400 = vadd.f32 %v814, %v1350
  %v1401 = vadd.f32 %v815, %v1350
  %v1402 = vadd.f32 %v816, %v1350
  %v1403 = vadd.f32 %v817, %v1350
  %v1404 = vadd.f32 %v818, %v1350
  %v1405 = vadd.f32 %v819, %v1350
  %v1406 = vadd.f32 %v820, %v1350
  %v1407 = vadd.f32 %v821, %v1350
  %v1408 = vadd.f32 %v822, %v1350
  %v1409 = vadd.f32 %v823, %v1350
  %v1410 = vadd.f32 %v824, %v1350
  %v1411 = vadd.f32 %v825, %v1350
  %v1412 = vadd.f32 %v826, %v1350
  %v1413 = vadd.f32 %v827, %v1350
  %v1414 = vadd.f32 %v828, %v1350
  %v1415 = vadd.f32 %v829, %v1350
  %v1416 = vadd.f32 %v830, %v1350
  %v1417 = vadd.f32 %v831, %v1350
  %v1418 = vadd.f32 %v832, %v1350
  %v1419 = vadd.f32 %v833, %v1350
  %v1420 = vadd.f32 %v834, %v1350
  %v1421 = vadd.f32 %v835, %v1350
  %v1422 = vadd.f32 %v836, %v1350
  %v1423 = vadd.f32 %v837, %v1350
  %v1424 = vadd.f32 %v838, %v1350
  %v1425 = vadd.f32 %v839, %v1350
  %v1426 = vadd.f32 %v840, %v1350
  %v1427 = vadd.f32 %v841, %v1350
  %v1428 = vadd.f32 %v842, %v1350
  %v1429 = vadd.f32 %v843, %v1350
  %v1430 = vadd.f32 %v844, %v1350
  %v1431 = vadd.f32 %v845, %v1350
  %v1432 = vadd.f32 %v846, %v1350
  %v1433 = vadd.f32 %v847, %v1350
  %v1434 = vadd.f32 %v848, %v1350
  %v1435 = vadd.f32 %v849, %v1350
  %v1436 = vadd.f32 %v850, %v1350
  %v1437 = vadd.f32 %v851, %v1350
  %v1438 = vadd.f32 %v852, %v1350
  %v1439 = vadd.f32 %v853, %v1350
  %v1440 = vadd.f32 %v854, %v1350
  %v1441 = vadd.f32 %v855, %v1350
  %v1442 = vadd.f32 %v856, %v1350
  %v1443 = vadd.f32 %v857, %v1350
  %v1444 = vadd.f32 %v858, %v1350
  %v1445 = vadd.f32 %v859, %v1350
  %v1446 = vadd.f32 %v860, %v1350
  %v1447 = vadd.f32 %v861, %v1350
  %v1448 = vadd.f32 %v862, %v1350
  %v1449 = vadd.f32 %v863, %v1350
  %v1450 = vadd.f32 %v864, %v1350
  %v1451 = vadd.f32 %v865, %v1350
  %v1452 = vadd.f32 %v866, %v1350
  %v1453 = vadd.f32 %v867, %v1350
  %v1454 = vadd.f32 %v868, %v1350
  %v1455 = vadd.f32 %v869, %v1350
  %v1456 = vadd.f32 %v870, %v1350
  %v1457 = vadd.f32 %v871, %v1350
  %v1458 = vadd.f32 %v872, %v1350
  %v1459 = vadd.f32 %v873, %v1350
  %v1460 = vadd.f32 %v874, %v1350
  %v1461 = vadd.f32 %v875, %v1350
  %v1462 = vadd.f32 %v876, %v1350
  %v1463 = vadd.f32 %v877, %v1350
  %v1464 = vadd.f32 %v878, %v1350
  %v1465 = vadd.f32 %v879, %v1350
  %v1466 = vadd.f32 %v880, %v1350
  %v1467 = vadd.f32 %v881, %v1350
  %v1468 = vadd.f32 %v882, %v1350
  %v1469 = vadd.f32 %v883, %v1350
  %v1470 = vadd.f32 %v884, %v1350
  %v1471 = vadd.f32 %v885, %v1350
  %v1472 = vadd.f32 %v886, %v1350
  %v1473 = vadd.f32 %v887, %v1350
  %v1474 = vadd.f32 %v888, %v1350
  %v1475 = vadd.f32 %v889, %v1350
  %v1476 = vadd.f32 %v890, %v1350
  %v1477 = vadd.f32 %v891, %v1350
  %v1478 = vadd.f32 %v892, %v1350
  %v1479 = vadd.f32 %v893, %v1350
  %v1480 = vadd.f32 %v894, %v1350
  %v1481 = vadd.f32 %v895, %v1350
  %v1482 = vadd.f32 %v896, %v1350
  %v1483 = vadd.f32 %v897, %v1350
  %v1484 = vadd.f32 %v898, %v1350
  %v1485 = vadd.f32 %v899, %v1350
  %v1486 = vadd.f32 %v900, %v1350
  %v1487 = vadd.f32 %v901, %v1350
  %v1488 = vadd.f32 %v902, %v1350
  %v1489 = vadd.f32 %v903, %v1350
  %v1490 = vadd.f32 %v904, %v1350
  %v1491 = vadd.f32 %v905, %v1350
  %v1492 = vadd.f32 %v906, %v1350
  %v1493 = vadd.f32 %v907, %v1350
  %v1494 = vadd.f32 %v908, %v1350
  %v1495 = vadd.f32 %v909, %v1350
  %v1496 = vadd.f32 %v910, %v1350
  %v1497 = vadd.f32 %v911, %v1350
  %v1498 = vadd.f32 %v912, %v1350
  %v1499 = vadd.f32 %v913, %v1350
  %v1500 = vadd.f32 %v914, %v1350
  %v1501 = vadd.f32 %v915, %v1350
  %v1502 = vadd.f32 %v916, %v1350
  %v1503 = vadd.f32 %v917, %v1350
  %v1504 = vadd.f32 %v918, %v1350
  %v1505 = vadd.f32 %v919, %v1350
  %v1506 = vadd.f32 %v920, %v1350
  %v1507 = vadd.f32 %v921, %v1350
  %v1508 = vadd.f32 %v922, %v1350
  %v1509 = vadd.f32 %v923, %v1350
  %v1510 = vadd.f32 %v924, %v1350
  %v1511 = vadd.f32 %v925, %v1350
  %v1512 = vadd.f32 %v926, %v1350
  %v1513 = vadd.f32 %v927, %v1350
  %v1514 = vadd.f32 %v928, %v1350
  %v1515 = vadd.f32 %v929, %v1350
  %v1516 = vadd.f32 %v930, %v1350
  %v1517 = vadd.f32 %v931, %v1350
  %v1518 = vadd.f32 %v932, %v1350
  %v1519 = vadd.f32 %v933, %v1350
  %v1520 = vadd.f32 %v934, %v1350
  %v1521 = vadd.f32 %v935, %v1350
  %v1522 = vadd.f32 %v936, %v1350
  %v1523 = vadd.f32 %v937, %v1350
  %v1524 = vadd.f32 %v938, %v1350
  %v1525 = vadd.f32 %v939, %v1350
  %v1526 = vadd.f32 %v940, %v1350
  %v1527 = vadd.f32 %v941, %v1350
  %v1528 = vadd.f32 %v942, %v1350
  %v1529 = vadd.f32 %v943, %v1350
  %v1530 = vadd.f32 %v944, %v1350
  %v1531 = vadd.f32 %v945, %v1350
  %v1532 = vadd.f32 %v946, %v1350
  %v1533 = vadd.f32 %v947, %v1350
  %v1534 = vadd.f32 %v948, %v1350
  %v1535 = vadd.f32 %v949, %v1350
  %v1536 = vadd.f32 %v950, %v1350
  %v1537 = vadd.f32 %v951, %v1350
  %v1538 = vadd.f32 %v952, %v1350
  %v1539 = vadd.f32 %v953, %v1350
  %v1540 = vadd.f32 %v954, %v1350
  %v1541 = vadd.f32 %v955, %v1350
  %v1542 = vadd.f32 %v956, %v1350
  %v1543 = vadd.f32 %v957, %v1350
  %v1544 = vadd.f32 %v958, %v1350
  %v1545 = vadd.f32 %v959, %v1350
  %v1546 = vadd.f32 %v960, %v1350
  %v1547 = vadd.f32 %v961, %v1350
  %v1548 = vadd.f32 %v962, %v1350
  %v1549 = vadd.f32 %v963, %v1350
  %v1550 = vadd.f32 %v964, %v1350
  %v1551 = vadd.f32 %v965, %v1350
  %v1552 = vadd.f32 %v966, %v1350
  %v1553 = vadd.f32 %v967, %v1350
  %v1554 = vadd.f32 %v968, %v1350
  %v1555 = vadd.f32 %v969, %v1350
  %v1556 = vadd.f32 %v970, %v1350
  %v1557 = vadd.f32 %v971, %v1350
  %v1558 = vadd.f32 %v972, %v1350
  %v1559 = vadd.f32 %v973, %v1350
  %v1560 = vadd.f32 %v974, %v1350
  %v1561 = vadd.f32 %v975, %v1350
  %v1562 = vadd.f32 %v976, %v1350
  %v1563 = vadd.f32 %v977, %v1350
  %v1564 = vadd.f32 %v978, %v1350
  %v1565 = vadd.f32 %v979, %v1350
  %v1566 = vadd.f32 %v980, %v1350
  %v1567 = vadd.f32 %v981, %v1350
  %v1568 = vadd.f32 %v982, %v1350
  %v1569 = vadd.f32 %v983, %v1350
  %v1570 = vadd.f32 %v984, %v1350
  %v1571 = vadd.f32 %v985, %v1350
  %v1572 = vadd.f32 %v986, %v1350
  %v1573 = vadd.f32 %v987, %v1350
  %v1574 = vadd.f32 %v988, %v1350
  %v1575 = vadd.f32 %v989, %v1350
  %v1576 = vadd.f32 %v990, %v1350
  %v1577 = vadd.f32 %v991, %v1350
  %v1578 = vadd.f32 %v992, %v1350
  %v1579 = vadd.f32 %v993, %v1350
  %v1580 = vadd.f32 %v994, %v1350
  %v1581 = vadd.f32 %v995, %v1350
  %v1582 = vadd.f32 %v996, %v1350
  %v1583 = vadd.f32 %v997, %v1350
  %v1584 = vadd.f32 %v998, %v1350
  %v1585 = vadd.f32 %v999, %v1350
  %v1586 = vadd.f32 %v1000, %v1350
  %v1587 = vadd.f32 %v1001, %v1350
  %v1588 = vadd.f32 %v1002, %v1350
  %v1589 = vadd.f32 %v1003, %v1350
  %v1590 = vadd.f32 %v1004, %v1350
  %v1591 = vadd.f32 %v1005, %v1350
  %v1592 = vadd.f32 %v1006, %v1350
  %v1593 = vadd.f32 %v1007, %v1350
  %v1594 = vadd.f32 %v1008, %v1350
  %v1595 = vadd.f32 %v1009, %v1350
  %v1596 = vadd.f32 %v1010, %v1350
  %v1597 = vadd.f32 %v1011, %v1350
  %v1598 = vadd.f32 %v1012, %v1350
  %v1599 = vadd.f32 %v1013, %v1350
  %v1600 = vadd.f32 %v1014, %v1350
  %v1601 = vadd.f32 %v1015, %v1350
  %v1602 = vadd.f32 %v1016, %v1350
  %v1603 = vadd.f32 %v1017, %v1350
  %v1604 = vadd.f32 %v1018, %v1350
  %v1605 = vadd.f32 %v1019, %v1350
  %v1606 = vadd.f32 %v1020, %v1350
  %v1607 = vadd.f32 %v1021, %v1350
  %v1608 = vadd.f32 %v1022, %v1350
  %v1609 = vadd.f32 %v1023, %v1350
  %v1610 = vadd.f32 %v1024, %v1350
  %v1611 = vadd.f32 %v1025, %v1350
  %v1612 = vadd.f32 %v1026, %v1350
  %v1613 = vadd.f32 %v1027, %v1350
  %v1614 = vadd.f32 %v1028, %v1350
  %v1615 = vadd.f32 %v1029, %v1350
  %v1616 = vadd.f32 %v1030, %v1350
  %v1617 = vadd.f32 %v1031, %v1350
  %v1618 = vadd.f32 %v1032, %v1350
  %v1619 = vadd.f32 %v1033, %v1350
  %v1620 = vadd.f32 %v1034, %v1350
  %v1621 = vadd.f32 %v1035, %v1350
  %v1622 = vadd.f32 %v1036, %v1350
  %v1623 = vadd.f32 %v1037, %v1350
  %v1624 = vadd.f32 %v1038, %v1350
  %v1625 = vadd.f32 %v1039, %v1350
  %v1626 = vadd.f32 %v1040, %v1350
  %v1627 = vadd.f32 %v1041, %v1350
  %v1628 = vadd.f32 %v1042, %v1350
  %v1629 = vadd.f32 %v1043, %v1350
  %v1630 = vadd.f32 %v1044, %v1350
  %v1631 = vadd.f32 %v1045, %v1350
  %v1632 = vadd.f32 %v1046, %v1350
  %v1633 = vadd.f32 %v1047, %v1350
  %v1634 = vadd.f32 %v1048, %v1350
  %v1635 = vadd.f32 %v1049, %v1350
  %v1636 = vadd.f32 %v1050, %v1350
  %v1637 = vadd.f32 %v1051, %v1350
  %v1638 = vadd.f32 %v1052, %v1350
  %v1639 = vadd.f32 %v1053, %v1350
  %v1640 = vadd.f32 %v1054, %v1350
  %v1641 = vadd.f32 %v1055, %v1350
  %v1642 = vadd.f32 %v1056, %v1350
  %v1643 = vadd.f32 %v1057, %v1350
  %v1644 = vadd.f32 %v1058, %v1350
  %v1645 = vadd.f32 %v1059, %v1350
  %v1646 = vadd.f32 %v1060, %v1350
  %v1647 = vadd.f32 %v1061, %v1350
  %v1648 = vadd.f32 %v1062, %v1350
  %v1649 = vadd.f32 %v1063, %v1350
  %v1650 = vadd.f32 %v1064, %v1350
  %v1651 = vadd.f32 %v1065, %v1350
  %v1652 = vadd.f32 %v1066, %v1350
  %v1653 = vadd.f32 %v1067, %v1350
  %v1654 = vadd.f32 %v1068, %v1350
  %v1655 = vadd.f32 %v1069, %v1350
  %v1656 = vadd.f32 %v1070, %v1350
  %v1657 = vadd.f32 %v1071, %v1350
  %v1658 = vadd.f32 %v1072, %v1350
  %v1659 = vadd.f32 %v1073, %v1350
  %v1660 = vadd.f32 %v1074, %v1350
  %v1661 = vadd.f32 %v1075, %v1350
  %v1662 = vadd.f32 %v1076, %v1350
  %v1663 = vadd.f32 %v1077, %v1350
  %v1664 = vadd.f32 %v1078, %v1350
  %v1665 = vadd.f32 %v1079, %v1350
  %v1666 = vadd.f32 %v1080, %v1350
  %v1667 = vadd.f32 %v1081, %v1350
  %v1668 = vadd.f32 %v1082, %v1350
  %v1669 = vadd.f32 %v1083, %v1350
  %v1670 = vadd.f32 %v1084, %v1350
  %v1671 = vadd.f32 %v1085, %v1350
  %v1672 = vadd.f32 %v1086, %v1350
  %v1673 = vadd.f32 %v1087, %v1350
  %v1674 = vadd.f32 %v1088, %v1350
  %v1675 = vadd.f32 %v1089, %v1350
  %v1676 = vadd.f32 %v1090, %v1350
  %v1677 = vadd.f32 %v1091, %v1350
  %v1678 = vadd.f32 %v1092, %v1350
  %v1679 = vadd.f32 %v1093, %v1350
  %v1680 = vadd.f32 %v1094, %v1350
  %v1681 = vadd.f32 %v1095, %v1350
  %v1682 = vadd.f32 %v1096, %v1350
  %v1683 = vadd.f32 %v1097, %v1350
  %v1684 = vadd.f32 %v1098, %v1350
  %v1685 = vadd.f32 %v1099, %v1350
  %v1686 = vadd.f32 %v1100, %v1350
  %v1687 = vadd.f32 %v1101, %v1350
  %v1688 = vadd.f32 %v1102, %v1350
  %v1689 = vadd.f32 %v1103, %v1350
  %v1690 = vadd.f32 %v1104, %v1350
  %v1691 = vadd.f32 %v1105, %v1350
  %v1692 = vadd.f32 %v1106, %v1350
  %v1693 = vadd.f32 %v1107, %v1350
  %v1694 = vadd.f32 %v1108, %v1350
  %v1695 = vadd.f32 %v1109, %v1350
  %v1696 = vadd.f32 %v1110, %v1350
  %v1697 = vadd.f32 %v1111, %v1350
  %v1698 = vadd.f32 %v1112, %v1350
  %v1699 = vadd.f32 %v1113, %v1350
  %v1700 = vadd.f32 %v1114, %v1350
  %v1701 = vadd.f32 %v1115, %v1350
  %v1702 = vadd.f32 %v1116, %v1350
  %v1703 = vadd.f32 %v1117, %v1350
  %v1704 = vadd.f32 %v1118, %v1350
  %v1705 = vadd.f32 %v1119, %v1350
  %v1706 = vadd.f32 %v1120, %v1350
  %v1707 = vadd.f32 %v1121, %v1350
  %v1708 = vadd.f32 %v1122, %v1350
  %v1709 = vadd.f32 %v1123, %v1350
  %v1710 = vadd.f32 %v1124, %v1350
  %v1711 = vadd.f32 %v1125, %v1350
  %v1712 = vadd.f32 %v1126, %v1350
  %v1713 = vadd.f32 %v1127, %v1350
  %v1714 = vadd.f32 %v1128, %v1350
  %v1715 = vadd.f32 %v1129, %v1350
  %v1716 = vadd.f32 %v1130, %v1350
  %v1717 = vadd.f32 %v1131, %v1350
  %v1718 = vadd.f32 %v1132, %v1350
  %v1719 = vadd.f32 %v1133, %v1350
  %v1720 = vadd.f32 %v1134, %v1350
  %v1721 = vadd.f32 %v1135, %v1350
  %v1722 = vadd.f32 %v1136, %v1350
  %v1723 = vadd.f32 %v1137, %v1350
  %v1724 = vadd.f32 %v1138, %v1350
  %v1725 = vadd.f32 %v1139, %v1350
  %v1726 = vadd.f32 %v1140, %v1350
  %v1727 = vadd.f32 %v1141, %v1350
  %v1728 = vadd.f32 %v1142, %v1350
  %v1729 = vadd.f32 %v1143, %v1350
  %v1730 = vadd.f32 %v1144, %v1350
  %v1731 = vadd.f32 %v1145, %v1350
  %v1732 = vadd.f32 %v1146, %v1350
  %v1733 = vadd.f32 %v1147, %v1350
  %v1734 = vadd.f32 %v1148, %v1350
  %v1735 = vadd.f32 %v1149, %v1350
  %v1736 = vadd.f32 %v1150, %v1350
  %v1737 = vadd.f32 %v1151, %v1350
  %v1738 = vadd.f32 %v1152, %v1350
  %v1739 = vadd.f32 %v1153, %v1350
  %v1740 = vadd.f32 %v1154, %v1350
  %v1741 = vadd.f32 %v1155, %v1350
  %v1742 = vadd.f32 %v1156, %v1350
  %v1743 = vadd.f32 %v1157, %v1350
  %v1744 = vadd.f32 %v1158, %v1350
  %v1745 = vadd.f32 %v1159, %v1350
  %v1746 = vadd.f32 %v1160, %v1350
  %v1747 = vadd.f32 %v1161, %v1350
  %v1748 = vadd.f32 %v1162, %v1350
  %v1749 = vadd.f32 %v1163, %v1350
  %v1750 = vadd.f32 %v1164, %v1350
  %v1751 = vadd.f32 %v1165, %v1350
  %v1752 = vadd.f32 %v1166, %v1350
  %v1753 = vadd.f32 %v1167, %v1350
  %v1754 = vadd.f32 %v1168, %v1350
  %v1755 = vadd.f32 %v1169, %v1350
  %v1756 = vadd.f32 %v1170, %v1350
  %v1757 = vadd.f32 %v1171, %v1350
  %v1758 = vadd.f32 %v1172, %v1350
  %v1759 = vadd.f32 %v1173, %v1350
  %v1760 = vadd.f32 %v1174, %v1350
  %v1761 = vadd.f32 %v1175, %v1350
  %v1762 = vadd.f32 %v1176, %v1350
  %v1763 = vadd.f32 %v1177, %v1350
  %v1764 = vadd.f32 %v1178, %v1350
  %v1765 = vadd.f32 %v1179, %v1350
  %v1766 = vadd.f32 %v1180, %v1350
  %v1767 = vadd.f32 %v1181, %v1350
  %v1768 = vadd.f32 %v1182, %v1350
  %v1769 = vadd.f32 %v1183, %v1350
  %v1770 = vadd.f32 %v1184, %v1350
  %v1771 = vadd.f32 %v1185, %v1350
  %v1772 = vadd.f32 %v1186, %v1350
  %v1773 = vadd.f32 %v1187, %v1350
  %v1774 = vadd.f32 %v1188, %v1350
  %v1775 = vadd.f32 %v1189, %v1350
  %v1776 = vadd.f32 %v1190, %v1350
  %v1777 = vadd.f32 %v1191, %v1350
  %v1778 = vadd.f32 %v1192, %v1350
  %v1779 = vadd.f32 %v1193, %v1350
  %v1780 = vadd.f32 %v1194, %v1350
  %v1781 = vadd.f32 %v1195, %v1350
  %v1782 = vadd.f32 %v1196, %v1350
  %v1783 = vadd.f32 %v1197, %v1350
  %v1784 = vadd.f32 %v1198, %v1350
  %v1785 = vadd.f32 %v1199, %v1350
  %v1786 = vadd.f32 %v1200, %v1350
  %v1787 = vadd.f32 %v1201, %v1350
  %v1788 = vadd.f32 %v1202, %v1350
  %v1789 = vadd.f32 %v1203, %v1350
  %v1790 = vadd.f32 %v1204, %v1350
  %v1791 = vadd.f32 %v1205, %v1350
  %v1792 = vadd.f32 %v1206, %v1350
  %v1793 = vadd.f32 %v1207, %v1350
  %v1794 = vadd.f32 %v1208, %v1350
  %v1795 = vadd.f32 %v1209, %v1350
  %v1796 = vadd.f32 %v1210, %v1350
  %v1797 = vadd.f32 %v1211, %v1350
  %v1798 = vadd.f32 %v1212, %v1350
  %v1799 = vadd.f32 %v1213, %v1350
  %v1800 = vadd.f32 %v1214, %v1350
  %v1801 = vadd.f32 %v1215, %v1350
  %v1802 = vadd.f32 %v1216, %v1350
  %v1803 = vadd.f32 %v1217, %v1350
  %v1804 = vadd.f32 %v1218, %v1350
  %v1805 = vadd.f32 %v1219, %v1350
  %v1806 = vadd.f32 %v1220, %v1350
  %v1807 = vadd.f32 %v1221, %v1350
  %v1808 = vadd.f32 %v1222, %v1350
  %v1809 = vadd.f32 %v1223, %v1350
  %v1810 = vadd.f32 %v1224, %v1350
  %v1811 = vadd.f32 %v1225, %v1350
  %v1812 = vadd.f32 %v1226, %v1350
  %v1813 = vadd.f32 %v1227, %v1350
  %v1814 = vadd.f32 %v1228, %v1350
  %v1815 = vadd.f32 %v1229, %v1350
  %v1816 = vadd.f32 %v1230, %v1350
  %v1817 = vadd.f32 %v1231, %v1350
  %v1818 = vadd.f32 %v1232, %v1350
  %v1819 = vadd.f32 %v1233, %v1350
  %v1820 = vadd.f32 %v1234, %v1350
  %v1821 = vadd.f32 %v1235, %v1350
  %v1822 = vadd.f32 %v1236, %v1350
  %v1823 = vadd.f32 %v1237, %v1350
  %v1824 = vadd.f32 %v1238, %v1350
  %v1825 = vadd.f32 %v1239, %v1350
  %v1826 = vadd.f32 %v1240, %v1350
  %v1827 = vadd.f32 %v1241, %v1350
  %v1828 = vadd.f32 %v1242, %v1350
  %v1829 = vadd.f32 %v1243, %v1350
  %v1830 = vadd.f32 %v1244, %v1350
  %v1831 = vadd.f32 %v1245, %v1350
  %v1832 = vadd.f32 %v1246, %v1350
  %v1833 = vadd.f32 %v1247, %v1350
  %v1834 = vadd.f32 %v1248, %v1350
  %v1835 = vadd.f32 %v1249, %v1350
  %v1836 = vadd.f32 %v1250, %v1350
  %v1837 = vadd.f32 %v1251, %v1350
  %v1838 = vadd.f32 %v1252, %v1350
  %v1839 = vadd.f32 %v1253, %v1350
  %v1840 = vadd.f32 %v1254, %v1350
  %v1841 = vadd.f32 %v1255, %v1350
  %v1842 = vadd.f32 %v1256, %v1350
  %v1843 = vadd.f32 %v1257, %v1350
  %v1844 = vadd.f32 %v1258, %v1350
  %v1845 = vadd.f32 %v1259, %v1350
  %v1846 = vadd.f32 %v1260, %v1350
  %v1847 = vadd.f32 %v1261, %v1350
  %v1848 = vadd.f32 %v1262, %v1350
  %v1849 = vadd.f32 %v1263, %v1350
  %v1850 = vadd.f32 %v1264, %v1350
  %v1851 = vadd.f32 %v1265, %v1350
  %v1852 = vadd.f32 %v1266, %v1350
  %v1853 = vadd.f32 %v1267, %v1350
  %v1854 = vadd.f32 %v1268, %v1350
  %v1855 = vadd.f32 %v1269, %v1350
  %v1856 = vadd.f32 %v1270, %v1350
  %v1857 = vadd.f32 %v1271, %v1350
  %v1858 = vadd.f32 %v1272, %v1350
  %v1859 = vadd.f32 %v1273, %v1350
  %v1860 = vadd.f32 %v1274, %v1350
  %v1861 = vadd.f32 %v1275, %v1350
  %v1862 = vadd.f32 %v1276, %v1350
  %v1863 = vadd.f32 %v1277, %v1350
  %v1864 = vadd.f32 %v1278, %v1350
  %v1865 = vadd.f32 %v1279, %v1350
  %v1866 = vadd.f32 %v1280, %v1350
  %v1867 = vadd.f32 %v1281, %v1350
  %v1868 = vadd.f32 %v1282, %v1350
  %v1869 = vadd.f32 %v1283, %v1350
  %v1870 = vadd.f32 %v1284, %v1350
  %v1871 = vadd.f32 %v1285, %v1350
  %v1872 = vadd.f32 %v1286, %v1350
  %v1873 = vadd.f32 %v1287, %v1350
  %v1874 = vadd.f32 %v1288, %v1350
  %v1875 = vadd.f32 %v1289, %v1350
  %v1876 = vadd.f32 %v1290, %v1350
  %v1877 = vadd.f32 %v1291, %v1350
  %v1878 = vadd.f32 %v1292, %v1350
  %v1879 = vadd.f32 %v1293, %v1350
  %v1880 = vadd.f32 %v1294, %v1350
  %v1881 = vadd.f32 %v1295, %v1350
  %v1882 = vadd.f32 %v1296, %v1350
  %v1883 = vadd.f32 %v1297, %v1350
  %v1884 = vadd.f32 %v1298, %v1350
  %v1885 = vadd.f32 %v1299, %v1350
  %v1886 = vadd.f32 %v1300, %v1350
  %v1887 = vadd.f32 %v1301, %v1350
  %v1888 = vadd.f32 %v1302, %v1350
  %v1889 = vadd.f32 %v1303, %v1350
  %v1890 = vadd.f32 %v1304, %v1350
  %v1891 = vadd.f32 %v1305, %v1350
  %v1892 = vadd.f32 %v1306, %v1350
  %v1893 = vadd.f32 %v1307, %v1350
  %v1894 = vadd.f32 %v1308, %v1350
  %v1895 = vadd.f32 %v1309, %v1350
  %v1896 = vadd.f32 %v1310, %v1350
  %v1897 = vadd.f32 %v1311, %v1350
  %v1898 = vadd.f32 %v1312, %v1350
  %v1899 = vadd.f32 %v1313, %v1350
  %v1900 = vadd.f32 %v1314, %v1350
  %v1901 = vadd.f32 %v1315, %v1350
  %v1902 = vadd.f32 %v1316, %v1350
  %v1903 = vadd.f32 %v1317, %v1350
  %v1904 = vadd.f32 %v1318, %v1350
  %v1905 = vadd.f32 %v1319, %v1350
  %v1906 = vadd.f32 %v1320, %v1350
  %v1907 = vadd.f32 %v1321, %v1350
  %v1908 = vadd.f32 %v1322, %v1350
  %v1909 = vadd.f32 %v1323, %v1350
  %v1910 = vadd.f32 %v1324, %v1350
  %v1911 = vadd.f32 %v1325, %v1350
  %v1912 = vadd.f32 %v1326, %v1350
  %v1913 = vadd.f32 %v1327, %v1350
  %v1914 = vadd.f32 %v1328, %v1350
  %v1915 = vadd.f32 %v1329, %v1350
  %v1916 = vadd.f32 %v1330, %v1350
  %v1917 = vadd.f32 %v1331, %v1350
  %v1918 = vadd.f32 %v1332, %v1350
  %v1919 = vadd.f32 %v1333, %v1350
  %v1920 = vadd.f32 %v1334, %v1350
  %v1921 = vadd.f32 %v1335, %v1350
  %v1922 = vadd.f32 %v1336, %v1350
  %v1923 = vadd.f32 %v1337, %v1350
  %v1924 = vadd.f32 %v1338, %v1350
  %v1925 = vadd.f32 %v1339, %v1350
  %v1926 = vadd.f32 %v1340, %v1350
  %v1927 = vadd.f32 %v1341, %v1350
  %v1928 = vtanh.pop %v1352
  %v1929 = vtanh.pop %v1353
  %v1930 = vtanh.pop %v1354
  %v1931 = vtanh.pop %v1355
  %v1932 = vtanh.pop %v1356
  %v1933 = vtanh.pop %v1357
  %v1934 = vtanh.pop %v1358
  %v1935 = vtanh.pop %v1359
  %v1936 = vtanh.pop %v1360
  %v1937 = vtanh.pop %v1361
  %v1938 = vtanh.pop %v1362
  %v1939 = vtanh.pop %v1363
  %v1940 = vtanh.pop %v1364
  %v1941 = vtanh.pop %v1365
  %v1942 = vtanh.pop %v1366
  %v1943 = vtanh.pop %v1367
  %v1944 = vtanh.pop %v1368
  %v1945 = vtanh.pop %v1369
  %v1946 = vtanh.pop %v1370
  %v1947 = vtanh.pop %v1371
  %v1948 = vtanh.pop %v1372
  %v1949 = vtanh.pop %v1373
  %v1950 = vtanh.pop %v1374
  %v1951 = vtanh.pop %v1375
  %v1952 = vtanh.pop %v1376
  %v1953 = vtanh.pop %v1377
  %v1954 = vtanh.pop %v1378
  %v1955 = vtanh.pop %v1379
  %v1956 = vtanh.pop %v1380
  %v1957 = vtanh.pop %v1381
  %v1958 = vtanh.pop %v1382
  %v1959 = vtanh.pop %v1383
  %v1960 = vtanh.pop %v1384
  %v1961 = vtanh.pop %v1385
  %v1962 = vtanh.pop %v1386
  %v1963 = vtanh.pop %v1387
  %v1964 = vtanh.pop %v1388
  %v1965 = vtanh.pop %v1389
  %v1966 = vtanh.pop %v1390
  %v1967 = vtanh.pop %v1391
  %v1968 = vtanh.pop %v1392
  %v1969 = vtanh.pop %v1393
  %v1970 = vtanh.pop %v1394
  %v1971 = vtanh.pop %v1395
  %v1972 = vtanh.pop %v1396
  %v1973 = vtanh.pop %v1397
  %v1974 = vtanh.pop %v1398
  %v1975 = vtanh.pop %v1399
  %v1976 = vtanh.pop %v1400
  %v1977 = vtanh.pop %v1401
  %v1978 = vtanh.pop %v1402
  %v1979 = vtanh.pop %v1403
  %v1980 = vtanh.pop %v1404
  %v1981 = vtanh.pop %v1405
  %v1982 = vtanh.pop %v1406
  %v1983 = vtanh.pop %v1407
  %v1984 = vtanh.pop %v1408
  %v1985 = vtanh.pop %v1409
  %v1986 = vtanh.pop %v1410
  %v1987 = vtanh.pop %v1411
  %v1988 = vtanh.pop %v1412
  %v1989 = vtanh.pop %v1413
  %v1990 = vtanh.pop %v1414
  %v1991 = vtanh.pop %v1415
  %v1992 = vtanh.pop %v1416
  %v1993 = vtanh.pop %v1417
  %v1994 = vtanh.pop %v1418
  %v1995 = vtanh.pop %v1419
  %v1996 = vtanh.pop %v1420
  %v1997 = vtanh.pop %v1421
  %v1998 = vtanh.pop %v1422
  %v1999 = vtanh.pop %v1423
  %v2000 = vtanh.pop %v1424
  %v2001 = vtanh.pop %v1425
  %v2002 = vtanh.pop %v1426
  %v2003 = vtanh.pop %v1427
  %v2004 = vtanh.pop %v1428
  %v2005 = vtanh.pop %v1429
  %v2006 = vtanh.pop %v1430
  %v2007 = vtanh.pop %v1431
  %v2008 = vtanh.pop %v1432
  %v2009 = vtanh.pop %v1433
  %v2010 = vtanh.pop %v1434
  %v2011 = vtanh.pop %v1435
  %v2012 = vtanh.pop %v1436
  %v2013 = vtanh.pop %v1437
  %v2014 = vtanh.pop %v1438
  %v2015 = vtanh.pop %v1439
  %v2016 = vtanh.pop %v1440
  %v2017 = vtanh.pop %v1441
  %v2018 = vtanh.pop %v1442
  %v2019 = vtanh.pop %v1443
  %v2020 = vtanh.pop %v1444
  %v2021 = vtanh.pop %v1445
  %v2022 = vtanh.pop %v1446
  %v2023 = vtanh.pop %v1447
  %v2024 = vtanh.pop %v1448
  %v2025 = vtanh.pop %v1449
  %v2026 = vtanh.pop %v1450
  %v2027 = vtanh.pop %v1451
  %v2028 = vtanh.pop %v1452
  %v2029 = vtanh.pop %v1453
  %v2030 = vtanh.pop %v1454
  %v2031 = vtanh.pop %v1455
  %v2032 = vtanh.pop %v1456
  %v2033 = vtanh.pop %v1457
  %v2034 = vtanh.pop %v1458
  %v2035 = vtanh.pop %v1459
  %v2036 = vtanh.pop %v1460
  %v2037 = vtanh.pop %v1461
  %v2038 = vtanh.pop %v1462
  %v2039 = vtanh.pop %v1463
  %v2040 = vtanh.pop %v1464
  %v2041 = vtanh.pop %v1465
  %v2042 = vtanh.pop %v1466
  %v2043 = vtanh.pop %v1467
  %v2044 = vtanh.pop %v1468
  %v2045 = vtanh.pop %v1469
  %v2046 = vtanh.pop %v1470
  %v2047 = vtanh.pop %v1471
  %v2048 = vtanh.pop %v1472
  %v2049 = vtanh.pop %v1473
  %v2050 = vtanh.pop %v1474
  %v2051 = vtanh.pop %v1475
  %v2052 = vtanh.pop %v1476
  %v2053 = vtanh.pop %v1477
  %v2054 = vtanh.pop %v1478
  %v2055 = vtanh.pop %v1479
  %v2056 = vtanh.pop %v1480
  %v2057 = vtanh.pop %v1481
  %v2058 = vtanh.pop %v1482
  %v2059 = vtanh.pop %v1483
  %v2060 = vtanh.pop %v1484
  %v2061 = vtanh.pop %v1485
  %v2062 = vtanh.pop %v1486
  %v2063 = vtanh.pop %v1487
  %v2064 = vtanh.pop %v1488
  %v2065 = vtanh.pop %v1489
  %v2066 = vtanh.pop %v1490
  %v2067 = vtanh.pop %v1491
  %v2068 = vtanh.pop %v1492
  %v2069 = vtanh.pop %v1493
  %v2070 = vtanh.pop %v1494
  %v2071 = vtanh.pop %v1495
  %v2072 = vtanh.pop %v1496
  %v2073 = vtanh.pop %v1497
  %v2074 = vtanh.pop %v1498
  %v2075 = vtanh.pop %v1499
  %v2076 = vtanh.pop %v1500
  %v2077 = vtanh.pop %v1501
  %v2078 = vtanh.pop %v1502
  %v2079 = vtanh.pop %v1503
  %v2080 = vtanh.pop %v1504
  %v2081 = vtanh.pop %v1505
  %v2082 = vtanh.pop %v1506
  %v2083 = vtanh.pop %v1507
  %v2084 = vtanh.pop %v1508
  %v2085 = vtanh.pop %v1509
  %v2086 = vtanh.pop %v1510
  %v2087 = vtanh.pop %v1511
  %v2088 = vtanh.pop %v1512
  %v2089 = vtanh.pop %v1513
  %v2090 = vtanh.pop %v1514
  %v2091 = vtanh.pop %v1515
  %v2092 = vtanh.pop %v1516
  %v2093 = vtanh.pop %v1517
  %v2094 = vtanh.pop %v1518
  %v2095 = vtanh.pop %v1519
  %v2096 = vtanh.pop %v1520
  %v2097 = vtanh.pop %v1521
  %v2098 = vtanh.pop %v1522
  %v2099 = vtanh.pop %v1523
  %v2100 = vtanh.pop %v1524
  %v2101 = vtanh.pop %v1525
  %v2102 = vtanh.pop %v1526
  %v2103 = vtanh.pop %v1527
  %v2104 = vtanh.pop %v1528
  %v2105 = vtanh.pop %v1529
  %v2106 = vtanh.pop %v1530
  %v2107 = vtanh.pop %v1531
  %v2108 = vtanh.pop %v1532
  %v2109 = vtanh.pop %v1533
  %v2110 = vtanh.pop %v1534
  %v2111 = vtanh.pop %v1535
  %v2112 = vtanh.pop %v1536
  %v2113 = vtanh.pop %v1537
  %v2114 = vtanh.pop %v1538
  %v2115 = vtanh.pop %v1539
  %v2116 = vtanh.pop %v1540
  %v2117 = vtanh.pop %v1541
  %v2118 = vtanh.pop %v1542
  %v2119 = vtanh.pop %v1543
  %v2120 = vtanh.pop %v1544
  %v2121 = vtanh.pop %v1545
  %v2122 = vtanh.pop %v1546
  %v2123 = vtanh.pop %v1547
  %v2124 = vtanh.pop %v1548
  %v2125 = vtanh.pop %v1549
  %v2126 = vtanh.pop %v1550
  %v2127 = vtanh.pop %v1551
  %v2128 = vtanh.pop %v1552
  %v2129 = vtanh.pop %v1553
  %v2130 = vtanh.pop %v1554
  %v2131 = vtanh.pop %v1555
  %v2132 = vtanh.pop %v1556
  %v2133 = vtanh.pop %v1557
  %v2134 = vtanh.pop %v1558
  %v2135 = vtanh.pop %v1559
  %v2136 = vtanh.pop %v1560
  %v2137 = vtanh.pop %v1561
  %v2138 = vtanh.pop %v1562
  %v2139 = vtanh.pop %v1563
  %v2140 = vtanh.pop %v1564
  %v2141 = vtanh.pop %v1565
  %v2142 = vtanh.pop %v1566
  %v2143 = vtanh.pop %v1567
  %v2144 = vtanh.pop %v1568
  %v2145 = vtanh.pop %v1569
  %v2146 = vtanh.pop %v1570
  %v2147 = vtanh.pop %v1571
  %v2148 = vtanh.pop %v1572
  %v2149 = vtanh.pop %v1573
  %v2150 = vtanh.pop %v1574
  %v2151 = vtanh.pop %v1575
  %v2152 = vtanh.pop %v1576
  %v2153 = vtanh.pop %v1577
  %v2154 = vtanh.pop %v1578
  %v2155 = vtanh.pop %v1579
  %v2156 = vtanh.pop %v1580
  %v2157 = vtanh.pop %v1581
  %v2158 = vtanh.pop %v1582
  %v2159 = vtanh.pop %v1583
  %v2160 = vtanh.pop %v1584
  %v2161 = vtanh.pop %v1585
  %v2162 = vtanh.pop %v1586
  %v2163 = vtanh.pop %v1587
  %v2164 = vtanh.pop %v1588
  %v2165 = vtanh.pop %v1589
  %v2166 = vtanh.pop %v1590
  %v2167 = vtanh.pop %v1591
  %v2168 = vtanh.pop %v1592
  %v2169 = vtanh.pop %v1593
  %v2170 = vtanh.pop %v1594
  %v2171 = vtanh.pop %v1595
  %v2172 = vtanh.pop %v1596
  %v2173 = vtanh.pop %v1597
  %v2174 = vtanh.pop %v1598
  %v2175 = vtanh.pop %v1599
  %v2176 = vtanh.pop %v1600
  %v2177 = vtanh.pop %v1601
  %v2178 = vtanh.pop %v1602
  %v2179 = vtanh.pop %v1603
  %v2180 = vtanh.pop %v1604
  %v2181 = vtanh.pop %v1605
  %v2182 = vtanh.pop %v1606
  %v2183 = vtanh.pop %v1607
  %v2184 = vtanh.pop %v1608
  %v2185 = vtanh.pop %v1609
  %v2186 = vtanh.pop %v1610
  %v2187 = vtanh.pop %v1611
  %v2188 = vtanh.pop %v1612
  %v2189 = vtanh.pop %v1613
  %v2190 = vtanh.pop %v1614
  %v2191 = vtanh.pop %v1615
  %v2192 = vtanh.pop %v1616
  %v2193 = vtanh.pop %v1617
  %v2194 = vtanh.pop %v1618
  %v2195 = vtanh.pop %v1619
  %v2196 = vtanh.pop %v1620
  %v2197 = vtanh.pop %v1621
  %v2198 = vtanh.pop %v1622
  %v2199 = vtanh.pop %v1623
  %v2200 = vtanh.pop %v1624
  %v2201 = vtanh.pop %v1625
  %v2202 = vtanh.pop %v1626
  %v2203 = vtanh.pop %v1627
  %v2204 = vtanh.pop %v1628
  %v2205 = vtanh.pop %v1629
  %v2206 = vtanh.pop %v1630
  %v2207 = vtanh.pop %v1631
  %v2208 = vtanh.pop %v1632
  %v2209 = vtanh.pop %v1633
  %v2210 = vtanh.pop %v1634
  %v2211 = vtanh.pop %v1635
  %v2212 = vtanh.pop %v1636
  %v2213 = vtanh.pop %v1637
  %v2214 = vtanh.pop %v1638
  %v2215 = vtanh.pop %v1639
  %v2216 = vtanh.pop %v1640
  %v2217 = vtanh.pop %v1641
  %v2218 = vtanh.pop %v1642
  %v2219 = vtanh.pop %v1643
  %v2220 = vtanh.pop %v1644
  %v2221 = vtanh.pop %v1645
  %v2222 = vtanh.pop %v1646
  %v2223 = vtanh.pop %v1647
  %v2224 = vtanh.pop %v1648
  %v2225 = vtanh.pop %v1649
  %v2226 = vtanh.pop %v1650
  %v2227 = vtanh.pop %v1651
  %v2228 = vtanh.pop %v1652
  %v2229 = vtanh.pop %v1653
  %v2230 = vtanh.pop %v1654
  %v2231 = vtanh.pop %v1655
  %v2232 = vtanh.pop %v1656
  %v2233 = vtanh.pop %v1657
  %v2234 = vtanh.pop %v1658
  %v2235 = vtanh.pop %v1659
  %v2236 = vtanh.pop %v1660
  %v2237 = vtanh.pop %v1661
  %v2238 = vtanh.pop %v1662
  %v2239 = vtanh.pop %v1663
  %v2240 = vtanh.pop %v1664
  %v2241 = vtanh.pop %v1665
  %v2242 = vtanh.pop %v1666
  %v2243 = vtanh.pop %v1667
  %v2244 = vtanh.pop %v1668
  %v2245 = vtanh.pop %v1669
  %v2246 = vtanh.pop %v1670
  %v2247 = vtanh.pop %v1671
  %v2248 = vtanh.pop %v1672
  %v2249 = vtanh.pop %v1673
  %v2250 = vtanh.pop %v1674
  %v2251 = vtanh.pop %v1675
  %v2252 = vtanh.pop %v1676
  %v2253 = vtanh.pop %v1677
  %v2254 = vtanh.pop %v1678
  %v2255 = vtanh.pop %v1679
  %v2256 = vtanh.pop %v1680
  %v2257 = vtanh.pop %v1681
  %v2258 = vtanh.pop %v1682
  %v2259 = vtanh.pop %v1683
  %v2260 = vtanh.pop %v1684
  %v2261 = vtanh.pop %v1685
  %v2262 = vtanh.pop %v1686
  %v2263 = vtanh.pop %v1687
  %v2264 = vtanh.pop %v1688
  %v2265 = vtanh.pop %v1689
  %v2266 = vtanh.pop %v1690
  %v2267 = vtanh.pop %v1691
  %v2268 = vtanh.pop %v1692
  %v2269 = vtanh.pop %v1693
  %v2270 = vtanh.pop %v1694
  %v2271 = vtanh.pop %v1695
  %v2272 = vtanh.pop %v1696
  %v2273 = vtanh.pop %v1697
  %v2274 = vtanh.pop %v1698
  %v2275 = vtanh.pop %v1699
  %v2276 = vtanh.pop %v1700
  %v2277 = vtanh.pop %v1701
  %v2278 = vtanh.pop %v1702
  %v2279 = vtanh.pop %v1703
  %v2280 = vtanh.pop %v1704
  %v2281 = vtanh.pop %v1705
  %v2282 = vtanh.pop %v1706
  %v2283 = vtanh.pop %v1707
  %v2284 = vtanh.pop %v1708
  %v2285 = vtanh.pop %v1709
  %v2286 = vtanh.pop %v1710
  %v2287 = vtanh.pop %v1711
  %v2288 = vtanh.pop %v1712
  %v2289 = vtanh.pop %v1713
  %v2290 = vtanh.pop %v1714
  %v2291 = vtanh.pop %v1715
  %v2292 = vtanh.pop %v1716
  %v2293 = vtanh.pop %v1717
  %v2294 = vtanh.pop %v1718
  %v2295 = vtanh.pop %v1719
  %v2296 = vtanh.pop %v1720
  %v2297 = vtanh.pop %v1721
  %v2298 = vtanh.pop %v1722
  %v2299 = vtanh.pop %v1723
  %v2300 = vtanh.pop %v1724
  %v2301 = vtanh.pop %v1725
  %v2302 = vtanh.pop %v1726
  %v2303 = vtanh.pop %v1727
  %v2304 = vtanh.pop %v1728
  %v2305 = vtanh.pop %v1729
  %v2306 = vtanh.pop %v1730
  %v2307 = vtanh.pop %v1731
  %v2308 = vtanh.pop %v1732
  %v2309 = vtanh.pop %v1733
  %v2310 = vtanh.pop %v1734
  %v2311 = vtanh.pop %v1735
  %v2312 = vtanh.pop %v1736
  %v2313 = vtanh.pop %v1737
  %v2314 = vtanh.pop %v1738
  %v2315 = vtanh.pop %v1739
  %v2316 = vtanh.pop %v1740
  %v2317 = vtanh.pop %v1741
  %v2318 = vtanh.pop %v1742
  %v2319 = vtanh.pop %v1743
  %v2320 = vtanh.pop %v1744
  %v2321 = vtanh.pop %v1745
  %v2322 = vtanh.pop %v1746
  %v2323 = vtanh.pop %v1747
  %v2324 = vtanh.pop %v1748
  %v2325 = vtanh.pop %v1749
  %v2326 = vtanh.pop %v1750
  %v2327 = vtanh.pop %v1751
  %v2328 = vtanh.pop %v1752
  %v2329 = vtanh.pop %v1753
  %v2330 = vtanh.pop %v1754
  %v2331 = vtanh.pop %v1755
  %v2332 = vtanh.pop %v1756
  %v2333 = vtanh.pop %v1757
  %v2334 = vtanh.pop %v1758
  %v2335 = vtanh.pop %v1759
  %v2336 = vtanh.pop %v1760
  %v2337 = vtanh.pop %v1761
  %v2338 = vtanh.pop %v1762
  %v2339 = vtanh.pop %v1763
  %v2340 = vtanh.pop %v1764
  %v2341 = vtanh.pop %v1765
  %v2342 = vtanh.pop %v1766
  %v2343 = vtanh.pop %v1767
  %v2344 = vtanh.pop %v1768
  %v2345 = vtanh.pop %v1769
  %v2346 = vtanh.pop %v1770
  %v2347 = vtanh.pop %v1771
  %v2348 = vtanh.pop %v1772
  %v2349 = vtanh.pop %v1773
  %v2350 = vtanh.pop %v1774
  %v2351 = vtanh.pop %v1775
  %v2352 = vtanh.pop %v1776
  %v2353 = vtanh.pop %v1777
  %v2354 = vtanh.pop %v1778
  %v2355 = vtanh.pop %v1779
  %v2356 = vtanh.pop %v1780
  %v2357 = vtanh.pop %v1781
  %v2358 = vtanh.pop %v1782
  %v2359 = vtanh.pop %v1783
  %v2360 = vtanh.pop %v1784
  %v2361 = vtanh.pop %v1785
  %v2362 = vtanh.pop %v1786
  %v2363 = vtanh.pop %v1787
  %v2364 = vtanh.pop %v1788
  %v2365 = vtanh.pop %v1789
  %v2366 = vtanh.pop %v1790
  %v2367 = vtanh.pop %v1791
  %v2368 = vtanh.pop %v1792
  %v2369 = vtanh.pop %v1793
  %v2370 = vtanh.pop %v1794
  %v2371 = vtanh.pop %v1795
  %v2372 = vtanh.pop %v1796
  %v2373 = vtanh.pop %v1797
  %v2374 = vtanh.pop %v1798
  %v2375 = vtanh.pop %v1799
  %v2376 = vtanh.pop %v1800
  %v2377 = vtanh.pop %v1801
  %v2378 = vtanh.pop %v1802
  %v2379 = vtanh.pop %v1803
  %v2380 = vtanh.pop %v1804
  %v2381 = vtanh.pop %v1805
  %v2382 = vtanh.pop %v1806
  %v2383 = vtanh.pop %v1807
  %v2384 = vtanh.pop %v1808
  %v2385 = vtanh.pop %v1809
  %v2386 = vtanh.pop %v1810
  %v2387 = vtanh.pop %v1811
  %v2388 = vtanh.pop %v1812
  %v2389 = vtanh.pop %v1813
  %v2390 = vtanh.pop %v1814
  %v2391 = vtanh.pop %v1815
  %v2392 = vtanh.pop %v1816
  %v2393 = vtanh.pop %v1817
  %v2394 = vtanh.pop %v1818
  %v2395 = vtanh.pop %v1819
  %v2396 = vtanh.pop %v1820
  %v2397 = vtanh.pop %v1821
  %v2398 = vtanh.pop %v1822
  %v2399 = vtanh.pop %v1823
  %v2400 = vtanh.pop %v1824
  %v2401 = vtanh.pop %v1825
  %v2402 = vtanh.pop %v1826
  %v2403 = vtanh.pop %v1827
  %v2404 = vtanh.pop %v1828
  %v2405 = vtanh.pop %v1829
  %v2406 = vtanh.pop %v1830
  %v2407 = vtanh.pop %v1831
  %v2408 = vtanh.pop %v1832
  %v2409 = vtanh.pop %v1833
  %v2410 = vtanh.pop %v1834
  %v2411 = vtanh.pop %v1835
  %v2412 = vtanh.pop %v1836
  %v2413 = vtanh.pop %v1837
  %v2414 = vtanh.pop %v1838
  %v2415 = vtanh.pop %v1839
  %v2416 = vtanh.pop %v1840
  %v2417 = vtanh.pop %v1841
  %v2418 = vtanh.pop %v1842
  %v2419 = vtanh.pop %v1843
  %v2420 = vtanh.pop %v1844
  %v2421 = vtanh.pop %v1845
  %v2422 = vtanh.pop %v1846
  %v2423 = vtanh.pop %v1847
  %v2424 = vtanh.pop %v1848
  %v2425 = vtanh.pop %v1849
  %v2426 = vtanh.pop %v1850
  %v2427 = vtanh.pop %v1851
  %v2428 = vtanh.pop %v1852
  %v2429 = vtanh.pop %v1853
  %v2430 = vtanh.pop %v1854
  %v2431 = vtanh.pop %v1855
  %v2432 = vtanh.pop %v1856
  %v2433 = vtanh.pop %v1857
  %v2434 = vtanh.pop %v1858
  %v2435 = vtanh.pop %v1859
  %v2436 = vtanh.pop %v1860
  %v2437 = vtanh.pop %v1861
  %v2438 = vtanh.pop %v1862
  %v2439 = vtanh.pop %v1863
  %v2440 = vtanh.pop %v1864
  %v2441 = vtanh.pop %v1865
  %v2442 = vtanh.pop %v1866
  %v2443 = vtanh.pop %v1867
  %v2444 = vtanh.pop %v1868
  %v2445 = vtanh.pop %v1869
  %v2446 = vtanh.pop %v1870
  %v2447 = vtanh.pop %v1871
  %v2448 = vtanh.pop %v1872
  %v2449 = vtanh.pop %v1873
  %v2450 = vtanh.pop %v1874
  %v2451 = vtanh.pop %v1875
  %v2452 = vtanh.pop %v1876
  %v2453 = vtanh.pop %v1877
  %v2454 = vtanh.pop %v1878
  %v2455 = vtanh.pop %v1879
  %v2456 = vtanh.pop %v1880
  %v2457 = vtanh.pop %v1881
  %v2458 = vtanh.pop %v1882
  %v2459 = vtanh.pop %v1883
  %v2460 = vtanh.pop %v1884
  %v2461 = vtanh.pop %v1885
  %v2462 = vtanh.pop %v1886
  %v2463 = vtanh.pop %v1887
  %v2464 = vtanh.pop %v1888
  %v2465 = vtanh.pop %v1889
  %v2466 = vtanh.pop %v1890
  %v2467 = vtanh.pop %v1891
  %v2468 = vtanh.pop %v1892
  %v2469 = vtanh.pop %v1893
  %v2470 = vtanh.pop %v1894
  %v2471 = vtanh.pop %v1895
  %v2472 = vtanh.pop %v1896
  %v2473 = vtanh.pop %v1897
  %v2474 = vtanh.pop %v1898
  %v2475 = vtanh.pop %v1899
  %v2476 = vtanh.pop %v1900
  %v2477 = vtanh.pop %v1901
  %v2478 = vtanh.pop %v1902
  %v2479 = vtanh.pop %v1903
  %v2480 = vtanh.pop %v1904
  %v2481 = vtanh.pop %v1905
  %v2482 = vtanh.pop %v1906
  %v2483 = vtanh.pop %v1907
  %v2484 = vtanh.pop %v1908
  %v2485 = vtanh.pop %v1909
  %v2486 = vtanh.pop %v1910
  %v2487 = vtanh.pop %v1911
  %v2488 = vtanh.pop %v1912
  %v2489 = vtanh.pop %v1913
  %v2490 = vtanh.pop %v1914
  %v2491 = vtanh.pop %v1915
  %v2492 = vtanh.pop %v1916
  %v2493 = vtanh.pop %v1917
  %v2494 = vtanh.pop %v1918
  %v2495 = vtanh.pop %v1919
  %v2496 = vtanh.pop %v1920
  %v2497 = vtanh.pop %v1921
  %v2498 = vtanh.pop %v1922
  %v2499 = vtanh.pop %v1923
  %v2500 = vtanh.pop %v1924
  %v2501 = vtanh.pop %v1925
  %v2502 = vtanh.pop %v1926
  %v2503 = vtanh.pop %v1927
  %v2504 = vmul.f32 %v1928, 1.442695
  %v2505 = vpow.pop %v2504
  %v2506 = vmul.f32 %v1929, 1.442695
  %v2507 = vpow.pop %v2506
  %v2508 = vmul.f32 %v1930, 1.442695
  %v2509 = vpow.pop %v2508
  %v2510 = vmul.f32 %v1931, 1.442695
  %v2511 = vpow.pop %v2510
  %v2512 = vmul.f32 %v1932, 1.442695
  %v2513 = vpow.pop %v2512
  %v2514 = vmul.f32 %v1933, 1.442695
  %v2515 = vpow.pop %v2514
  %v2516 = vmul.f32 %v1934, 1.442695
  %v2517 = vpow.pop %v2516
  %v2518 = vmul.f32 %v1935, 1.442695
  %v2519 = vpow.pop %v2518
  %v2520 = vmul.f32 %v1936, 1.442695
  %v2521 = vpow.pop %v2520
  %v2522 = vmul.f32 %v1937, 1.442695
  %v2523 = vpow.pop %v2522
  %v2524 = vmul.f32 %v1938, 1.442695
  %v2525 = vpow.pop %v2524
  %v2526 = vmul.f32 %v1939, 1.442695
  %v2527 = vpow.pop %v2526
  %v2528 = vmul.f32 %v1940, 1.442695
  %v2529 = vpow.pop %v2528
  %v2530 = vmul.f32 %v1941, 1.442695
  %v2531 = vpow.pop %v2530
  %v2532 = vmul.f32 %v1942, 1.442695
  %v2533 = vpow.pop %v2532
  %v2534 = vmul.f32 %v1943, 1.442695
  %v2535 = vpow.pop %v2534
  %v2536 = vmul.f32 %v1944, 1.442695
  %v2537 = vpow.pop %v2536
  %v2538 = vmul.f32 %v1945, 1.442695
  %v2539 = vpow.pop %v2538
  %v2540 = vmul.f32 %v1946, 1.442695
  %v2541 = vpow.pop %v2540
  %v2542 = vmul.f32 %v1947, 1.442695
  %v2543 = vpow.pop %v2542
  %v2544 = vmul.f32 %v1948, 1.442695
  %v2545 = vpow.pop %v2544
  %v2546 = vmul.f32 %v1949, 1.442695
  %v2547 = vpow.pop %v2546
  %v2548 = vmul.f32 %v1950, 1.442695
  %v2549 = vpow.pop %v2548
  %v2550 = vmul.f32 %v1951, 1.442695
  %v2551 = vpow.pop %v2550
  %v2552 = vmul.f32 %v1952, 1.442695
  %v2553 = vpow.pop %v2552
  %v2554 = vmul.f32 %v1953, 1.442695
  %v2555 = vpow.pop %v2554
  %v2556 = vmul.f32 %v1954, 1.442695
  %v2557 = vpow.pop %v2556
  %v2558 = vmul.f32 %v1955, 1.442695
  %v2559 = vpow.pop %v2558
  %v2560 = vmul.f32 %v1956, 1.442695
  %v2561 = vpow.pop %v2560
  %v2562 = vmul.f32 %v1957, 1.442695
  %v2563 = vpow.pop %v2562
  %v2564 = vmul.f32 %v1958, 1.442695
  %v2565 = vpow.pop %v2564
  %v2566 = vmul.f32 %v1959, 1.442695
  %v2567 = vpow.pop %v2566
  %v2568 = vmul.f32 %v1960, 1.442695
  %v2569 = vpow.pop %v2568
  %v2570 = vmul.f32 %v1961, 1.442695
  %v2571 = vpow.pop %v2570
  %v2572 = vmul.f32 %v1962, 1.442695
  %v2573 = vpow.pop %v2572
  %v2574 = vmul.f32 %v1963, 1.442695
  %v2575 = vpow.pop %v2574
  %v2576 = vmul.f32 %v1964, 1.442695
  %v2577 = vpow.pop %v2576
  %v2578 = vmul.f32 %v1965, 1.442695
  %v2579 = vpow.pop %v2578
  %v2580 = vmul.f32 %v1966, 1.442695
  %v2581 = vpow.pop %v2580
  %v2582 = vmul.f32 %v1967, 1.442695
  %v2583 = vpow.pop %v2582
  %v2584 = vmul.f32 %v1968, 1.442695
  %v2585 = vpow.pop %v2584
  %v2586 = vmul.f32 %v1969, 1.442695
  %v2587 = vpow.pop %v2586
  %v2588 = vmul.f32 %v1970, 1.442695
  %v2589 = vpow.pop %v2588
  %v2590 = vmul.f32 %v1971, 1.442695
  %v2591 = vpow.pop %v2590
  %v2592 = vmul.f32 %v1972, 1.442695
  %v2593 = vpow.pop %v2592
  %v2594 = vmul.f32 %v1973, 1.442695
  %v2595 = vpow.pop %v2594
  %v2596 = vmul.f32 %v1974, 1.442695
  %v2597 = vpow.pop %v2596
  %v2598 = vmul.f32 %v1975, 1.442695
  %v2599 = vpow.pop %v2598
  %v2600 = vmul.f32 %v1976, 1.442695
  %v2601 = vpow.pop %v2600
  %v2602 = vmul.f32 %v1977, 1.442695
  %v2603 = vpow.pop %v2602
  %v2604 = vmul.f32 %v1978, 1.442695
  %v2605 = vpow.pop %v2604
  %v2606 = vmul.f32 %v1979, 1.442695
  %v2607 = vpow.pop %v2606
  %v2608 = vmul.f32 %v1980, 1.442695
  %v2609 = vpow.pop %v2608
  %v2610 = vmul.f32 %v1981, 1.442695
  %v2611 = vpow.pop %v2610
  %v2612 = vmul.f32 %v1982, 1.442695
  %v2613 = vpow.pop %v2612
  %v2614 = vmul.f32 %v1983, 1.442695
  %v2615 = vpow.pop %v2614
  %v2616 = vmul.f32 %v1984, 1.442695
  %v2617 = vpow.pop %v2616
  %v2618 = vmul.f32 %v1985, 1.442695
  %v2619 = vpow.pop %v2618
  %v2620 = vmul.f32 %v1986, 1.442695
  %v2621 = vpow.pop %v2620
  %v2622 = vmul.f32 %v1987, 1.442695
  %v2623 = vpow.pop %v2622
  %v2624 = vmul.f32 %v1988, 1.442695
  %v2625 = vpow.pop %v2624
  %v2626 = vmul.f32 %v1989, 1.442695
  %v2627 = vpow.pop %v2626
  %v2628 = vmul.f32 %v1990, 1.442695
  %v2629 = vpow.pop %v2628
  %v2630 = vmul.f32 %v1991, 1.442695
  %v2631 = vpow.pop %v2630
  %v2632 = vmul.f32 %v1992, 1.442695
  %v2633 = vpow.pop %v2632
  %v2634 = vmul.f32 %v1993, 1.442695
  %v2635 = vpow.pop %v2634
  %v2636 = vmul.f32 %v1994, 1.442695
  %v2637 = vpow.pop %v2636
  %v2638 = vmul.f32 %v1995, 1.442695
  %v2639 = vpow.pop %v2638
  %v2640 = vmul.f32 %v1996, 1.442695
  %v2641 = vpow.pop %v2640
  %v2642 = vmul.f32 %v1997, 1.442695
  %v2643 = vpow.pop %v2642
  %v2644 = vmul.f32 %v1998, 1.442695
  %v2645 = vpow.pop %v2644
  %v2646 = vmul.f32 %v1999, 1.442695
  %v2647 = vpow.pop %v2646
  %v2648 = vmul.f32 %v2000, 1.442695
  %v2649 = vpow.pop %v2648
  %v2650 = vmul.f32 %v2001, 1.442695
  %v2651 = vpow.pop %v2650
  %v2652 = vmul.f32 %v2002, 1.442695
  %v2653 = vpow.pop %v2652
  %v2654 = vmul.f32 %v2003, 1.442695
  %v2655 = vpow.pop %v2654
  %v2656 = vmul.f32 %v2004, 1.442695
  %v2657 = vpow.pop %v2656
  %v2658 = vmul.f32 %v2005, 1.442695
  %v2659 = vpow.pop %v2658
  %v2660 = vmul.f32 %v2006, 1.442695
  %v2661 = vpow.pop %v2660
  %v2662 = vmul.f32 %v2007, 1.442695
  %v2663 = vpow.pop %v2662
  %v2664 = vmul.f32 %v2008, 1.442695
  %v2665 = vpow.pop %v2664
  %v2666 = vmul.f32 %v2009, 1.442695
  %v2667 = vpow.pop %v2666
  %v2668 = vmul.f32 %v2010, 1.442695
  %v2669 = vpow.pop %v2668
  %v2670 = vmul.f32 %v2011, 1.442695
  %v2671 = vpow.pop %v2670
  %v2672 = vmul.f32 %v2012, 1.442695
  %v2673 = vpow.pop %v2672
  %v2674 = vmul.f32 %v2013, 1.442695
  %v2675 = vpow.pop %v2674
  %v2676 = vmul.f32 %v2014, 1.442695
  %v2677 = vpow.pop %v2676
  %v2678 = vmul.f32 %v2015, 1.442695
  %v2679 = vpow.pop %v2678
  %v2680 = vmul.f32 %v2016, 1.442695
  %v2681 = vpow.pop %v2680
  %v2682 = vmul.f32 %v2017, 1.442695
  %v2683 = vpow.pop %v2682
  %v2684 = vmul.f32 %v2018, 1.442695
  %v2685 = vpow.pop %v2684
  %v2686 = vmul.f32 %v2019, 1.442695
  %v2687 = vpow.pop %v2686
  %v2688 = vmul.f32 %v2020, 1.442695
  %v2689 = vpow.pop %v2688
  %v2690 = vmul.f32 %v2021, 1.442695
  %v2691 = vpow.pop %v2690
  %v2692 = vmul.f32 %v2022, 1.442695
  %v2693 = vpow.pop %v2692
  %v2694 = vmul.f32 %v2023, 1.442695
  %v2695 = vpow.pop %v2694
  %v2696 = vmul.f32 %v2024, 1.442695
  %v2697 = vpow.pop %v2696
  %v2698 = vmul.f32 %v2025, 1.442695
  %v2699 = vpow.pop %v2698
  %v2700 = vmul.f32 %v2026, 1.442695
  %v2701 = vpow.pop %v2700
  %v2702 = vmul.f32 %v2027, 1.442695
  %v2703 = vpow.pop %v2702
  %v2704 = vmul.f32 %v2028, 1.442695
  %v2705 = vpow.pop %v2704
  %v2706 = vmul.f32 %v2029, 1.442695
  %v2707 = vpow.pop %v2706
  %v2708 = vmul.f32 %v2030, 1.442695
  %v2709 = vpow.pop %v2708
  %v2710 = vmul.f32 %v2031, 1.442695
  %v2711 = vpow.pop %v2710
  %v2712 = vmul.f32 %v2032, 1.442695
  %v2713 = vpow.pop %v2712
  %v2714 = vmul.f32 %v2033, 1.442695
  %v2715 = vpow.pop %v2714
  %v2716 = vmul.f32 %v2034, 1.442695
  %v2717 = vpow.pop %v2716
  %v2718 = vmul.f32 %v2035, 1.442695
  %v2719 = vpow.pop %v2718
  %v2720 = vmul.f32 %v2036, 1.442695
  %v2721 = vpow.pop %v2720
  %v2722 = vmul.f32 %v2037, 1.442695
  %v2723 = vpow.pop %v2722
  %v2724 = vmul.f32 %v2038, 1.442695
  %v2725 = vpow.pop %v2724
  %v2726 = vmul.f32 %v2039, 1.442695
  %v2727 = vpow.pop %v2726
  %v2728 = vmul.f32 %v2040, 1.442695
  %v2729 = vpow.pop %v2728
  %v2730 = vmul.f32 %v2041, 1.442695
  %v2731 = vpow.pop %v2730
  %v2732 = vmul.f32 %v2042, 1.442695
  %v2733 = vpow.pop %v2732
  %v2734 = vmul.f32 %v2043, 1.442695
  %v2735 = vpow.pop %v2734
  %v2736 = vmul.f32 %v2044, 1.442695
  %v2737 = vpow.pop %v2736
  %v2738 = vmul.f32 %v2045, 1.442695
  %v2739 = vpow.pop %v2738
  %v2740 = vmul.f32 %v2046, 1.442695
  %v2741 = vpow.pop %v2740
  %v2742 = vmul.f32 %v2047, 1.442695
  %v2743 = vpow.pop %v2742
  %v2744 = vmul.f32 %v2048, 1.442695
  %v2745 = vpow.pop %v2744
  %v2746 = vmul.f32 %v2049, 1.442695
  %v2747 = vpow.pop %v2746
  %v2748 = vmul.f32 %v2050, 1.442695
  %v2749 = vpow.pop %v2748
  %v2750 = vmul.f32 %v2051, 1.442695
  %v2751 = vpow.pop %v2750
  %v2752 = vmul.f32 %v2052, 1.442695
  %v2753 = vpow.pop %v2752
  %v2754 = vmul.f32 %v2053, 1.442695
  %v2755 = vpow.pop %v2754
  %v2756 = vmul.f32 %v2054, 1.442695
  %v2757 = vpow.pop %v2756
  %v2758 = vmul.f32 %v2055, 1.442695
  %v2759 = vpow.pop %v2758
  %v2760 = vmul.f32 %v2056, 1.442695
  %v2761 = vpow.pop %v2760
  %v2762 = vmul.f32 %v2057, 1.442695
  %v2763 = vpow.pop %v2762
  %v2764 = vmul.f32 %v2058, 1.442695
  %v2765 = vpow.pop %v2764
  %v2766 = vmul.f32 %v2059, 1.442695
  %v2767 = vpow.pop %v2766
  %v2768 = vmul.f32 %v2060, 1.442695
  %v2769 = vpow.pop %v2768
  %v2770 = vmul.f32 %v2061, 1.442695
  %v2771 = vpow.pop %v2770
  %v2772 = vmul.f32 %v2062, 1.442695
  %v2773 = vpow.pop %v2772
  %v2774 = vmul.f32 %v2063, 1.442695
  %v2775 = vpow.pop %v2774
  %v2776 = vmul.f32 %v2064, 1.442695
  %v2777 = vpow.pop %v2776
  %v2778 = vmul.f32 %v2065, 1.442695
  %v2779 = vpow.pop %v2778
  %v2780 = vmul.f32 %v2066, 1.442695
  %v2781 = vpow.pop %v2780
  %v2782 = vmul.f32 %v2067, 1.442695
  %v2783 = vpow.pop %v2782
  %v2784 = vmul.f32 %v2068, 1.442695
  %v2785 = vpow.pop %v2784
  %v2786 = vmul.f32 %v2069, 1.442695
  %v2787 = vpow.pop %v2786
  %v2788 = vmul.f32 %v2070, 1.442695
  %v2789 = vpow.pop %v2788
  %v2790 = vmul.f32 %v2071, 1.442695
  %v2791 = vpow.pop %v2790
  %v2792 = vmul.f32 %v2072, 1.442695
  %v2793 = vpow.pop %v2792
  %v2794 = vmul.f32 %v2073, 1.442695
  %v2795 = vpow.pop %v2794
  %v2796 = vmul.f32 %v2074, 1.442695
  %v2797 = vpow.pop %v2796
  %v2798 = vmul.f32 %v2075, 1.442695
  %v2799 = vpow.pop %v2798
  %v2800 = vmul.f32 %v2076, 1.442695
  %v2801 = vpow.pop %v2800
  %v2802 = vmul.f32 %v2077, 1.442695
  %v2803 = vpow.pop %v2802
  %v2804 = vmul.f32 %v2078, 1.442695
  %v2805 = vpow.pop %v2804
  %v2806 = vmul.f32 %v2079, 1.442695
  %v2807 = vpow.pop %v2806
  %v2808 = vmul.f32 %v2080, 1.442695
  %v2809 = vpow.pop %v2808
  %v2810 = vmul.f32 %v2081, 1.442695
  %v2811 = vpow.pop %v2810
  %v2812 = vmul.f32 %v2082, 1.442695
  %v2813 = vpow.pop %v2812
  %v2814 = vmul.f32 %v2083, 1.442695
  %v2815 = vpow.pop %v2814
  %v2816 = vmul.f32 %v2084, 1.442695
  %v2817 = vpow.pop %v2816
  %v2818 = vmul.f32 %v2085, 1.442695
  %v2819 = vpow.pop %v2818
  %v2820 = vmul.f32 %v2086, 1.442695
  %v2821 = vpow.pop %v2820
  %v2822 = vmul.f32 %v2087, 1.442695
  %v2823 = vpow.pop %v2822
  %v2824 = vmul.f32 %v2088, 1.442695
  %v2825 = vpow.pop %v2824
  %v2826 = vmul.f32 %v2089, 1.442695
  %v2827 = vpow.pop %v2826
  %v2828 = vmul.f32 %v2090, 1.442695
  %v2829 = vpow.pop %v2828
  %v2830 = vmul.f32 %v2091, 1.442695
  %v2831 = vpow.pop %v2830
  %v2832 = vmul.f32 %v2092, 1.442695
  %v2833 = vpow.pop %v2832
  %v2834 = vmul.f32 %v2093, 1.442695
  %v2835 = vpow.pop %v2834
  %v2836 = vmul.f32 %v2094, 1.442695
  %v2837 = vpow.pop %v2836
  %v2838 = vmul.f32 %v2095, 1.442695
  %v2839 = vpow.pop %v2838
  %v2840 = vmul.f32 %v2096, 1.442695
  %v2841 = vpow.pop %v2840
  %v2842 = vmul.f32 %v2097, 1.442695
  %v2843 = vpow.pop %v2842
  %v2844 = vmul.f32 %v2098, 1.442695
  %v2845 = vpow.pop %v2844
  %v2846 = vmul.f32 %v2099, 1.442695
  %v2847 = vpow.pop %v2846
  %v2848 = vmul.f32 %v2100, 1.442695
  %v2849 = vpow.pop %v2848
  %v2850 = vmul.f32 %v2101, 1.442695
  %v2851 = vpow.pop %v2850
  %v2852 = vmul.f32 %v2102, 1.442695
  %v2853 = vpow.pop %v2852
  %v2854 = vmul.f32 %v2103, 1.442695
  %v2855 = vpow.pop %v2854
  %v2856 = vmul.f32 %v2104, 1.442695
  %v2857 = vpow.pop %v2856
  %v2858 = vmul.f32 %v2105, 1.442695
  %v2859 = vpow.pop %v2858
  %v2860 = vmul.f32 %v2106, 1.442695
  %v2861 = vpow.pop %v2860
  %v2862 = vmul.f32 %v2107, 1.442695
  %v2863 = vpow.pop %v2862
  %v2864 = vmul.f32 %v2108, 1.442695
  %v2865 = vpow.pop %v2864
  %v2866 = vmul.f32 %v2109, 1.442695
  %v2867 = vpow.pop %v2866
  %v2868 = vmul.f32 %v2110, 1.442695
  %v2869 = vpow.pop %v2868
  %v2870 = vmul.f32 %v2111, 1.442695
  %v2871 = vpow.pop %v2870
  %v2872 = vmul.f32 %v2112, 1.442695
  %v2873 = vpow.pop %v2872
  %v2874 = vmul.f32 %v2113, 1.442695
  %v2875 = vpow.pop %v2874
  %v2876 = vmul.f32 %v2114, 1.442695
  %v2877 = vpow.pop %v2876
  %v2878 = vmul.f32 %v2115, 1.442695
  %v2879 = vpow.pop %v2878
  %v2880 = vmul.f32 %v2116, 1.442695
  %v2881 = vpow.pop %v2880
  %v2882 = vmul.f32 %v2117, 1.442695
  %v2883 = vpow.pop %v2882
  %v2884 = vmul.f32 %v2118, 1.442695
  %v2885 = vpow.pop %v2884
  %v2886 = vmul.f32 %v2119, 1.442695
  %v2887 = vpow.pop %v2886
  %v2888 = vmul.f32 %v2120, 1.442695
  %v2889 = vpow.pop %v2888
  %v2890 = vmul.f32 %v2121, 1.442695
  %v2891 = vpow.pop %v2890
  %v2892 = vmul.f32 %v2122, 1.442695
  %v2893 = vpow.pop %v2892
  %v2894 = vmul.f32 %v2123, 1.442695
  %v2895 = vpow.pop %v2894
  %v2896 = vmul.f32 %v2124, 1.442695
  %v2897 = vpow.pop %v2896
  %v2898 = vmul.f32 %v2125, 1.442695
  %v2899 = vpow.pop %v2898
  %v2900 = vmul.f32 %v2126, 1.442695
  %v2901 = vpow.pop %v2900
  %v2902 = vmul.f32 %v2127, 1.442695
  %v2903 = vpow.pop %v2902
  %v2904 = vmul.f32 %v2128, 1.442695
  %v2905 = vpow.pop %v2904
  %v2906 = vmul.f32 %v2129, 1.442695
  %v2907 = vpow.pop %v2906
  %v2908 = vmul.f32 %v2130, 1.442695
  %v2909 = vpow.pop %v2908
  %v2910 = vmul.f32 %v2131, 1.442695
  %v2911 = vpow.pop %v2910
  %v2912 = vmul.f32 %v2132, 1.442695
  %v2913 = vpow.pop %v2912
  %v2914 = vmul.f32 %v2133, 1.442695
  %v2915 = vpow.pop %v2914
  %v2916 = vmul.f32 %v2134, 1.442695
  %v2917 = vpow.pop %v2916
  %v2918 = vmul.f32 %v2135, 1.442695
  %v2919 = vpow.pop %v2918
  %v2920 = vmul.f32 %v2136, 1.442695
  %v2921 = vpow.pop %v2920
  %v2922 = vmul.f32 %v2137, 1.442695
  %v2923 = vpow.pop %v2922
  %v2924 = vmul.f32 %v2138, 1.442695
  %v2925 = vpow.pop %v2924
  %v2926 = vmul.f32 %v2139, 1.442695
  %v2927 = vpow.pop %v2926
  %v2928 = vmul.f32 %v2140, 1.442695
  %v2929 = vpow.pop %v2928
  %v2930 = vmul.f32 %v2141, 1.442695
  %v2931 = vpow.pop %v2930
  %v2932 = vmul.f32 %v2142, 1.442695
  %v2933 = vpow.pop %v2932
  %v2934 = vmul.f32 %v2143, 1.442695
  %v2935 = vpow.pop %v2934
  %v2936 = vmul.f32 %v2144, 1.442695
  %v2937 = vpow.pop %v2936
  %v2938 = vmul.f32 %v2145, 1.442695
  %v2939 = vpow.pop %v2938
  %v2940 = vmul.f32 %v2146, 1.442695
  %v2941 = vpow.pop %v2940
  %v2942 = vmul.f32 %v2147, 1.442695
  %v2943 = vpow.pop %v2942
  %v2944 = vmul.f32 %v2148, 1.442695
  %v2945 = vpow.pop %v2944
  %v2946 = vmul.f32 %v2149, 1.442695
  %v2947 = vpow.pop %v2946
  %v2948 = vmul.f32 %v2150, 1.442695
  %v2949 = vpow.pop %v2948
  %v2950 = vmul.f32 %v2151, 1.442695
  %v2951 = vpow.pop %v2950
  %v2952 = vmul.f32 %v2152, 1.442695
  %v2953 = vpow.pop %v2952
  %v2954 = vmul.f32 %v2153, 1.442695
  %v2955 = vpow.pop %v2954
  %v2956 = vmul.f32 %v2154, 1.442695
  %v2957 = vpow.pop %v2956
  %v2958 = vmul.f32 %v2155, 1.442695
  %v2959 = vpow.pop %v2958
  %v2960 = vmul.f32 %v2156, 1.442695
  %v2961 = vpow.pop %v2960
  %v2962 = vmul.f32 %v2157, 1.442695
  %v2963 = vpow.pop %v2962
  %v2964 = vmul.f32 %v2158, 1.442695
  %v2965 = vpow.pop %v2964
  %v2966 = vmul.f32 %v2159, 1.442695
  %v2967 = vpow.pop %v2966
  %v2968 = vmul.f32 %v2160, 1.442695
  %v2969 = vpow.pop %v2968
  %v2970 = vmul.f32 %v2161, 1.442695
  %v2971 = vpow.pop %v2970
  %v2972 = vmul.f32 %v2162, 1.442695
  %v2973 = vpow.pop %v2972
  %v2974 = vmul.f32 %v2163, 1.442695
  %v2975 = vpow.pop %v2974
  %v2976 = vmul.f32 %v2164, 1.442695
  %v2977 = vpow.pop %v2976
  %v2978 = vmul.f32 %v2165, 1.442695
  %v2979 = vpow.pop %v2978
  %v2980 = vmul.f32 %v2166, 1.442695
  %v2981 = vpow.pop %v2980
  %v2982 = vmul.f32 %v2167, 1.442695
  %v2983 = vpow.pop %v2982
  %v2984 = vmul.f32 %v2168, 1.442695
  %v2985 = vpow.pop %v2984
  %v2986 = vmul.f32 %v2169, 1.442695
  %v2987 = vpow.pop %v2986
  %v2988 = vmul.f32 %v2170, 1.442695
  %v2989 = vpow.pop %v2988
  %v2990 = vmul.f32 %v2171, 1.442695
  %v2991 = vpow.pop %v2990
  %v2992 = vmul.f32 %v2172, 1.442695
  %v2993 = vpow.pop %v2992
  %v2994 = vmul.f32 %v2173, 1.442695
  %v2995 = vpow.pop %v2994
  %v2996 = vmul.f32 %v2174, 1.442695
  %v2997 = vpow.pop %v2996
  %v2998 = vmul.f32 %v2175, 1.442695
  %v2999 = vpow.pop %v2998
  %v3000 = vmul.f32 %v2176, 1.442695
  %v3001 = vpow.pop %v3000
  %v3002 = vmul.f32 %v2177, 1.442695
  %v3003 = vpow.pop %v3002
  %v3004 = vmul.f32 %v2178, 1.442695
  %v3005 = vpow.pop %v3004
  %v3006 = vmul.f32 %v2179, 1.442695
  %v3007 = vpow.pop %v3006
  %v3008 = vmul.f32 %v2180, 1.442695
  %v3009 = vpow.pop %v3008
  %v3010 = vmul.f32 %v2181, 1.442695
  %v3011 = vpow.pop %v3010
  %v3012 = vmul.f32 %v2182, 1.442695
  %v3013 = vpow.pop %v3012
  %v3014 = vmul.f32 %v2183, 1.442695
  %v3015 = vpow.pop %v3014
  %v3016 = vmul.f32 %v2184, 1.442695
  %v3017 = vpow.pop %v3016
  %v3018 = vmul.f32 %v2185, 1.442695
  %v3019 = vpow.pop %v3018
  %v3020 = vmul.f32 %v2186, 1.442695
  %v3021 = vpow.pop %v3020
  %v3022 = vmul.f32 %v2187, 1.442695
  %v3023 = vpow.pop %v3022
  %v3024 = vmul.f32 %v2188, 1.442695
  %v3025 = vpow.pop %v3024
  %v3026 = vmul.f32 %v2189, 1.442695
  %v3027 = vpow.pop %v3026
  %v3028 = vmul.f32 %v2190, 1.442695
  %v3029 = vpow.pop %v3028
  %v3030 = vmul.f32 %v2191, 1.442695
  %v3031 = vpow.pop %v3030
  %v3032 = vmul.f32 %v2192, 1.442695
  %v3033 = vpow.pop %v3032
  %v3034 = vmul.f32 %v2193, 1.442695
  %v3035 = vpow.pop %v3034
  %v3036 = vmul.f32 %v2194, 1.442695
  %v3037 = vpow.pop %v3036
  %v3038 = vmul.f32 %v2195, 1.442695
  %v3039 = vpow.pop %v3038
  %v3040 = vmul.f32 %v2196, 1.442695
  %v3041 = vpow.pop %v3040
  %v3042 = vmul.f32 %v2197, 1.442695
  %v3043 = vpow.pop %v3042
  %v3044 = vmul.f32 %v2198, 1.442695
  %v3045 = vpow.pop %v3044
  %v3046 = vmul.f32 %v2199, 1.442695
  %v3047 = vpow.pop %v3046
  %v3048 = vmul.f32 %v2200, 1.442695
  %v3049 = vpow.pop %v3048
  %v3050 = vmul.f32 %v2201, 1.442695
  %v3051 = vpow.pop %v3050
  %v3052 = vmul.f32 %v2202, 1.442695
  %v3053 = vpow.pop %v3052
  %v3054 = vmul.f32 %v2203, 1.442695
  %v3055 = vpow.pop %v3054
  %v3056 = vmul.f32 %v2204, 1.442695
  %v3057 = vpow.pop %v3056
  %v3058 = vmul.f32 %v2205, 1.442695
  %v3059 = vpow.pop %v3058
  %v3060 = vmul.f32 %v2206, 1.442695
  %v3061 = vpow.pop %v3060
  %v3062 = vmul.f32 %v2207, 1.442695
  %v3063 = vpow.pop %v3062
  %v3064 = vmul.f32 %v2208, 1.442695
  %v3065 = vpow.pop %v3064
  %v3066 = vmul.f32 %v2209, 1.442695
  %v3067 = vpow.pop %v3066
  %v3068 = vmul.f32 %v2210, 1.442695
  %v3069 = vpow.pop %v3068
  %v3070 = vmul.f32 %v2211, 1.442695
  %v3071 = vpow.pop %v3070
  %v3072 = vmul.f32 %v2212, 1.442695
  %v3073 = vpow.pop %v3072
  %v3074 = vmul.f32 %v2213, 1.442695
  %v3075 = vpow.pop %v3074
  %v3076 = vmul.f32 %v2214, 1.442695
  %v3077 = vpow.pop %v3076
  %v3078 = vmul.f32 %v2215, 1.442695
  %v3079 = vpow.pop %v3078
  %v3080 = vmul.f32 %v2216, 1.442695
  %v3081 = vpow.pop %v3080
  %v3082 = vmul.f32 %v2217, 1.442695
  %v3083 = vpow.pop %v3082
  %v3084 = vmul.f32 %v2218, 1.442695
  %v3085 = vpow.pop %v3084
  %v3086 = vmul.f32 %v2219, 1.442695
  %v3087 = vpow.pop %v3086
  %v3088 = vmul.f32 %v2220, 1.442695
  %v3089 = vpow.pop %v3088
  %v3090 = vmul.f32 %v2221, 1.442695
  %v3091 = vpow.pop %v3090
  %v3092 = vmul.f32 %v2222, 1.442695
  %v3093 = vpow.pop %v3092
  %v3094 = vmul.f32 %v2223, 1.442695
  %v3095 = vpow.pop %v3094
  %v3096 = vmul.f32 %v2224, 1.442695
  %v3097 = vpow.pop %v3096
  %v3098 = vmul.f32 %v2225, 1.442695
  %v3099 = vpow.pop %v3098
  %v3100 = vmul.f32 %v2226, 1.442695
  %v3101 = vpow.pop %v3100
  %v3102 = vmul.f32 %v2227, 1.442695
  %v3103 = vpow.pop %v3102
  %v3104 = vmul.f32 %v2228, 1.442695
  %v3105 = vpow.pop %v3104
  %v3106 = vmul.f32 %v2229, 1.442695
  %v3107 = vpow.pop %v3106
  %v3108 = vmul.f32 %v2230, 1.442695
  %v3109 = vpow.pop %v3108
  %v3110 = vmul.f32 %v2231, 1.442695
  %v3111 = vpow.pop %v3110
  %v3112 = vmul.f32 %v2232, 1.442695
  %v3113 = vpow.pop %v3112
  %v3114 = vmul.f32 %v2233, 1.442695
  %v3115 = vpow.pop %v3114
  %v3116 = vmul.f32 %v2234, 1.442695
  %v3117 = vpow.pop %v3116
  %v3118 = vmul.f32 %v2235, 1.442695
  %v3119 = vpow.pop %v3118
  %v3120 = vmul.f32 %v2236, 1.442695
  %v3121 = vpow.pop %v3120
  %v3122 = vmul.f32 %v2237, 1.442695
  %v3123 = vpow.pop %v3122
  %v3124 = vmul.f32 %v2238, 1.442695
  %v3125 = vpow.pop %v3124
  %v3126 = vmul.f32 %v2239, 1.442695
  %v3127 = vpow.pop %v3126
  %v3128 = vmul.f32 %v2240, 1.442695
  %v3129 = vpow.pop %v3128
  %v3130 = vmul.f32 %v2241, 1.442695
  %v3131 = vpow.pop %v3130
  %v3132 = vmul.f32 %v2242, 1.442695
  %v3133 = vpow.pop %v3132
  %v3134 = vmul.f32 %v2243, 1.442695
  %v3135 = vpow.pop %v3134
  %v3136 = vmul.f32 %v2244, 1.442695
  %v3137 = vpow.pop %v3136
  %v3138 = vmul.f32 %v2245, 1.442695
  %v3139 = vpow.pop %v3138
  %v3140 = vmul.f32 %v2246, 1.442695
  %v3141 = vpow.pop %v3140
  %v3142 = vmul.f32 %v2247, 1.442695
  %v3143 = vpow.pop %v3142
  %v3144 = vmul.f32 %v2248, 1.442695
  %v3145 = vpow.pop %v3144
  %v3146 = vmul.f32 %v2249, 1.442695
  %v3147 = vpow.pop %v3146
  %v3148 = vmul.f32 %v2250, 1.442695
  %v3149 = vpow.pop %v3148
  %v3150 = vmul.f32 %v2251, 1.442695
  %v3151 = vpow.pop %v3150
  %v3152 = vmul.f32 %v2252, 1.442695
  %v3153 = vpow.pop %v3152
  %v3154 = vmul.f32 %v2253, 1.442695
  %v3155 = vpow.pop %v3154
  %v3156 = vmul.f32 %v2254, 1.442695
  %v3157 = vpow.pop %v3156
  %v3158 = vmul.f32 %v2255, 1.442695
  %v3159 = vpow.pop %v3158
  %v3160 = vmul.f32 %v2256, 1.442695
  %v3161 = vpow.pop %v3160
  %v3162 = vmul.f32 %v2257, 1.442695
  %v3163 = vpow.pop %v3162
  %v3164 = vmul.f32 %v2258, 1.442695
  %v3165 = vpow.pop %v3164
  %v3166 = vmul.f32 %v2259, 1.442695
  %v3167 = vpow.pop %v3166
  %v3168 = vmul.f32 %v2260, 1.442695
  %v3169 = vpow.pop %v3168
  %v3170 = vmul.f32 %v2261, 1.442695
  %v3171 = vpow.pop %v3170
  %v3172 = vmul.f32 %v2262, 1.442695
  %v3173 = vpow.pop %v3172
  %v3174 = vmul.f32 %v2263, 1.442695
  %v3175 = vpow.pop %v3174
  %v3176 = vmul.f32 %v2264, 1.442695
  %v3177 = vpow.pop %v3176
  %v3178 = vmul.f32 %v2265, 1.442695
  %v3179 = vpow.pop %v3178
  %v3180 = vmul.f32 %v2266, 1.442695
  %v3181 = vpow.pop %v3180
  %v3182 = vmul.f32 %v2267, 1.442695
  %v3183 = vpow.pop %v3182
  %v3184 = vmul.f32 %v2268, 1.442695
  %v3185 = vpow.pop %v3184
  %v3186 = vmul.f32 %v2269, 1.442695
  %v3187 = vpow.pop %v3186
  %v3188 = vmul.f32 %v2270, 1.442695
  %v3189 = vpow.pop %v3188
  %v3190 = vmul.f32 %v2271, 1.442695
  %v3191 = vpow.pop %v3190
  %v3192 = vmul.f32 %v2272, 1.442695
  %v3193 = vpow.pop %v3192
  %v3194 = vmul.f32 %v2273, 1.442695
  %v3195 = vpow.pop %v3194
  %v3196 = vmul.f32 %v2274, 1.442695
  %v3197 = vpow.pop %v3196
  %v3198 = vmul.f32 %v2275, 1.442695
  %v3199 = vpow.pop %v3198
  %v3200 = vmul.f32 %v2276, 1.442695
  %v3201 = vpow.pop %v3200
  %v3202 = vmul.f32 %v2277, 1.442695
  %v3203 = vpow.pop %v3202
  %v3204 = vmul.f32 %v2278, 1.442695
  %v3205 = vpow.pop %v3204
  %v3206 = vmul.f32 %v2279, 1.442695
  %v3207 = vpow.pop %v3206
  %v3208 = vmul.f32 %v2280, 1.442695
  %v3209 = vpow.pop %v3208
  %v3210 = vmul.f32 %v2281, 1.442695
  %v3211 = vpow.pop %v3210
  %v3212 = vmul.f32 %v2282, 1.442695
  %v3213 = vpow.pop %v3212
  %v3214 = vmul.f32 %v2283, 1.442695
  %v3215 = vpow.pop %v3214
  %v3216 = vmul.f32 %v2284, 1.442695
  %v3217 = vpow.pop %v3216
  %v3218 = vmul.f32 %v2285, 1.442695
  %v3219 = vpow.pop %v3218
  %v3220 = vmul.f32 %v2286, 1.442695
  %v3221 = vpow.pop %v3220
  %v3222 = vmul.f32 %v2287, 1.442695
  %v3223 = vpow.pop %v3222
  %v3224 = vmul.f32 %v2288, 1.442695
  %v3225 = vpow.pop %v3224
  %v3226 = vmul.f32 %v2289, 1.442695
  %v3227 = vpow.pop %v3226
  %v3228 = vmul.f32 %v2290, 1.442695
  %v3229 = vpow.pop %v3228
  %v3230 = vmul.f32 %v2291, 1.442695
  %v3231 = vpow.pop %v3230
  %v3232 = vmul.f32 %v2292, 1.442695
  %v3233 = vpow.pop %v3232
  %v3234 = vmul.f32 %v2293, 1.442695
  %v3235 = vpow.pop %v3234
  %v3236 = vmul.f32 %v2294, 1.442695
  %v3237 = vpow.pop %v3236
  %v3238 = vmul.f32 %v2295, 1.442695
  %v3239 = vpow.pop %v3238
  %v3240 = vmul.f32 %v2296, 1.442695
  %v3241 = vpow.pop %v3240
  %v3242 = vmul.f32 %v2297, 1.442695
  %v3243 = vpow.pop %v3242
  %v3244 = vmul.f32 %v2298, 1.442695
  %v3245 = vpow.pop %v3244
  %v3246 = vmul.f32 %v2299, 1.442695
  %v3247 = vpow.pop %v3246
  %v3248 = vmul.f32 %v2300, 1.442695
  %v3249 = vpow.pop %v3248
  %v3250 = vmul.f32 %v2301, 1.442695
  %v3251 = vpow.pop %v3250
  %v3252 = vmul.f32 %v2302, 1.442695
  %v3253 = vpow.pop %v3252
  %v3254 = vmul.f32 %v2303, 1.442695
  %v3255 = vpow.pop %v3254
  %v3256 = vmul.f32 %v2304, 1.442695
  %v3257 = vpow.pop %v3256
  %v3258 = vmul.f32 %v2305, 1.442695
  %v3259 = vpow.pop %v3258
  %v3260 = vmul.f32 %v2306, 1.442695
  %v3261 = vpow.pop %v3260
  %v3262 = vmul.f32 %v2307, 1.442695
  %v3263 = vpow.pop %v3262
  %v3264 = vmul.f32 %v2308, 1.442695
  %v3265 = vpow.pop %v3264
  %v3266 = vmul.f32 %v2309, 1.442695
  %v3267 = vpow.pop %v3266
  %v3268 = vmul.f32 %v2310, 1.442695
  %v3269 = vpow.pop %v3268
  %v3270 = vmul.f32 %v2311, 1.442695
  %v3271 = vpow.pop %v3270
  %v3272 = vmul.f32 %v2312, 1.442695
  %v3273 = vpow.pop %v3272
  %v3274 = vmul.f32 %v2313, 1.442695
  %v3275 = vpow.pop %v3274
  %v3276 = vmul.f32 %v2314, 1.442695
  %v3277 = vpow.pop %v3276
  %v3278 = vmul.f32 %v2315, 1.442695
  %v3279 = vpow.pop %v3278
  %v3280 = vmul.f32 %v2316, 1.442695
  %v3281 = vpow.pop %v3280
  %v3282 = vmul.f32 %v2317, 1.442695
  %v3283 = vpow.pop %v3282
  %v3284 = vmul.f32 %v2318, 1.442695
  %v3285 = vpow.pop %v3284
  %v3286 = vmul.f32 %v2319, 1.442695
  %v3287 = vpow.pop %v3286
  %v3288 = vmul.f32 %v2320, 1.442695
  %v3289 = vpow.pop %v3288
  %v3290 = vmul.f32 %v2321, 1.442695
  %v3291 = vpow.pop %v3290
  %v3292 = vmul.f32 %v2322, 1.442695
  %v3293 = vpow.pop %v3292
  %v3294 = vmul.f32 %v2323, 1.442695
  %v3295 = vpow.pop %v3294
  %v3296 = vmul.f32 %v2324, 1.442695
  %v3297 = vpow.pop %v3296
  %v3298 = vmul.f32 %v2325, 1.442695
  %v3299 = vpow.pop %v3298
  %v3300 = vmul.f32 %v2326, 1.442695
  %v3301 = vpow.pop %v3300
  %v3302 = vmul.f32 %v2327, 1.442695
  %v3303 = vpow.pop %v3302
  %v3304 = vmul.f32 %v2328, 1.442695
  %v3305 = vpow.pop %v3304
  %v3306 = vmul.f32 %v2329, 1.442695
  %v3307 = vpow.pop %v3306
  %v3308 = vmul.f32 %v2330, 1.442695
  %v3309 = vpow.pop %v3308
  %v3310 = vmul.f32 %v2331, 1.442695
  %v3311 = vpow.pop %v3310
  %v3312 = vmul.f32 %v2332, 1.442695
  %v3313 = vpow.pop %v3312
  %v3314 = vmul.f32 %v2333, 1.442695
  %v3315 = vpow.pop %v3314
  %v3316 = vmul.f32 %v2334, 1.442695
  %v3317 = vpow.pop %v3316
  %v3318 = vmul.f32 %v2335, 1.442695
  %v3319 = vpow.pop %v3318
  %v3320 = vmul.f32 %v2336, 1.442695
  %v3321 = vpow.pop %v3320
  %v3322 = vmul.f32 %v2337, 1.442695
  %v3323 = vpow.pop %v3322
  %v3324 = vmul.f32 %v2338, 1.442695
  %v3325 = vpow.pop %v3324
  %v3326 = vmul.f32 %v2339, 1.442695
  %v3327 = vpow.pop %v3326
  %v3328 = vmul.f32 %v2340, 1.442695
  %v3329 = vpow.pop %v3328
  %v3330 = vmul.f32 %v2341, 1.442695
  %v3331 = vpow.pop %v3330
  %v3332 = vmul.f32 %v2342, 1.442695
  %v3333 = vpow.pop %v3332
  %v3334 = vmul.f32 %v2343, 1.442695
  %v3335 = vpow.pop %v3334
  %v3336 = vmul.f32 %v2344, 1.442695
  %v3337 = vpow.pop %v3336
  %v3338 = vmul.f32 %v2345, 1.442695
  %v3339 = vpow.pop %v3338
  %v3340 = vmul.f32 %v2346, 1.442695
  %v3341 = vpow.pop %v3340
  %v3342 = vmul.f32 %v2347, 1.442695
  %v3343 = vpow.pop %v3342
  %v3344 = vmul.f32 %v2348, 1.442695
  %v3345 = vpow.pop %v3344
  %v3346 = vmul.f32 %v2349, 1.442695
  %v3347 = vpow.pop %v3346
  %v3348 = vmul.f32 %v2350, 1.442695
  %v3349 = vpow.pop %v3348
  %v3350 = vmul.f32 %v2351, 1.442695
  %v3351 = vpow.pop %v3350
  %v3352 = vmul.f32 %v2352, 1.442695
  %v3353 = vpow.pop %v3352
  %v3354 = vmul.f32 %v2353, 1.442695
  %v3355 = vpow.pop %v3354
  %v3356 = vmul.f32 %v2354, 1.442695
  %v3357 = vpow.pop %v3356
  %v3358 = vmul.f32 %v2355, 1.442695
  %v3359 = vpow.pop %v3358
  %v3360 = vmul.f32 %v2356, 1.442695
  %v3361 = vpow.pop %v3360
  %v3362 = vmul.f32 %v2357, 1.442695
  %v3363 = vpow.pop %v3362
  %v3364 = vmul.f32 %v2358, 1.442695
  %v3365 = vpow.pop %v3364
  %v3366 = vmul.f32 %v2359, 1.442695
  %v3367 = vpow.pop %v3366
  %v3368 = vmul.f32 %v2360, 1.442695
  %v3369 = vpow.pop %v3368
  %v3370 = vmul.f32 %v2361, 1.442695
  %v3371 = vpow.pop %v3370
  %v3372 = vmul.f32 %v2362, 1.442695
  %v3373 = vpow.pop %v3372
  %v3374 = vmul.f32 %v2363, 1.442695
  %v3375 = vpow.pop %v3374
  %v3376 = vmul.f32 %v2364, 1.442695
  %v3377 = vpow.pop %v3376
  %v3378 = vmul.f32 %v2365, 1.442695
  %v3379 = vpow.pop %v3378
  %v3380 = vmul.f32 %v2366, 1.442695
  %v3381 = vpow.pop %v3380
  %v3382 = vmul.f32 %v2367, 1.442695
  %v3383 = vpow.pop %v3382
  %v3384 = vmul.f32 %v2368, 1.442695
  %v3385 = vpow.pop %v3384
  %v3386 = vmul.f32 %v2369, 1.442695
  %v3387 = vpow.pop %v3386
  %v3388 = vmul.f32 %v2370, 1.442695
  %v3389 = vpow.pop %v3388
  %v3390 = vmul.f32 %v2371, 1.442695
  %v3391 = vpow.pop %v3390
  %v3392 = vmul.f32 %v2372, 1.442695
  %v3393 = vpow.pop %v3392
  %v3394 = vmul.f32 %v2373, 1.442695
  %v3395 = vpow.pop %v3394
  %v3396 = vmul.f32 %v2374, 1.442695
  %v3397 = vpow.pop %v3396
  %v3398 = vmul.f32 %v2375, 1.442695
  %v3399 = vpow.pop %v3398
  %v3400 = vmul.f32 %v2376, 1.442695
  %v3401 = vpow.pop %v3400
  %v3402 = vmul.f32 %v2377, 1.442695
  %v3403 = vpow.pop %v3402
  %v3404 = vmul.f32 %v2378, 1.442695
  %v3405 = vpow.pop %v3404
  %v3406 = vmul.f32 %v2379, 1.442695
  %v3407 = vpow.pop %v3406
  %v3408 = vmul.f32 %v2380, 1.442695
  %v3409 = vpow.pop %v3408
  %v3410 = vmul.f32 %v2381, 1.442695
  %v3411 = vpow.pop %v3410
  %v3412 = vmul.f32 %v2382, 1.442695
  %v3413 = vpow.pop %v3412
  %v3414 = vmul.f32 %v2383, 1.442695
  %v3415 = vpow.pop %v3414
  %v3416 = vmul.f32 %v2384, 1.442695
  %v3417 = vpow.pop %v3416
  %v3418 = vmul.f32 %v2385, 1.442695
  %v3419 = vpow.pop %v3418
  %v3420 = vmul.f32 %v2386, 1.442695
  %v3421 = vpow.pop %v3420
  %v3422 = vmul.f32 %v2387, 1.442695
  %v3423 = vpow.pop %v3422
  %v3424 = vmul.f32 %v2388, 1.442695
  %v3425 = vpow.pop %v3424
  %v3426 = vmul.f32 %v2389, 1.442695
  %v3427 = vpow.pop %v3426
  %v3428 = vmul.f32 %v2390, 1.442695
  %v3429 = vpow.pop %v3428
  %v3430 = vmul.f32 %v2391, 1.442695
  %v3431 = vpow.pop %v3430
  %v3432 = vmul.f32 %v2392, 1.442695
  %v3433 = vpow.pop %v3432
  %v3434 = vmul.f32 %v2393, 1.442695
  %v3435 = vpow.pop %v3434
  %v3436 = vmul.f32 %v2394, 1.442695
  %v3437 = vpow.pop %v3436
  %v3438 = vmul.f32 %v2395, 1.442695
  %v3439 = vpow.pop %v3438
  %v3440 = vmul.f32 %v2396, 1.442695
  %v3441 = vpow.pop %v3440
  %v3442 = vmul.f32 %v2397, 1.442695
  %v3443 = vpow.pop %v3442
  %v3444 = vmul.f32 %v2398, 1.442695
  %v3445 = vpow.pop %v3444
  %v3446 = vmul.f32 %v2399, 1.442695
  %v3447 = vpow.pop %v3446
  %v3448 = vmul.f32 %v2400, 1.442695
  %v3449 = vpow.pop %v3448
  %v3450 = vmul.f32 %v2401, 1.442695
  %v3451 = vpow.pop %v3450
  %v3452 = vmul.f32 %v2402, 1.442695
  %v3453 = vpow.pop %v3452
  %v3454 = vmul.f32 %v2403, 1.442695
  %v3455 = vpow.pop %v3454
  %v3456 = vmul.f32 %v2404, 1.442695
  %v3457 = vpow.pop %v3456
  %v3458 = vmul.f32 %v2405, 1.442695
  %v3459 = vpow.pop %v3458
  %v3460 = vmul.f32 %v2406, 1.442695
  %v3461 = vpow.pop %v3460
  %v3462 = vmul.f32 %v2407, 1.442695
  %v3463 = vpow.pop %v3462
  %v3464 = vmul.f32 %v2408, 1.442695
  %v3465 = vpow.pop %v3464
  %v3466 = vmul.f32 %v2409, 1.442695
  %v3467 = vpow.pop %v3466
  %v3468 = vmul.f32 %v2410, 1.442695
  %v3469 = vpow.pop %v3468
  %v3470 = vmul.f32 %v2411, 1.442695
  %v3471 = vpow.pop %v3470
  %v3472 = vmul.f32 %v2412, 1.442695
  %v3473 = vpow.pop %v3472
  %v3474 = vmul.f32 %v2413, 1.442695
  %v3475 = vpow.pop %v3474
  %v3476 = vmul.f32 %v2414, 1.442695
  %v3477 = vpow.pop %v3476
  %v3478 = vmul.f32 %v2415, 1.442695
  %v3479 = vpow.pop %v3478
  %v3480 = vmul.f32 %v2416, 1.442695
  %v3481 = vpow.pop %v3480
  %v3482 = vmul.f32 %v2417, 1.442695
  %v3483 = vpow.pop %v3482
  %v3484 = vmul.f32 %v2418, 1.442695
  %v3485 = vpow.pop %v3484
  %v3486 = vmul.f32 %v2419, 1.442695
  %v3487 = vpow.pop %v3486
  %v3488 = vmul.f32 %v2420, 1.442695
  %v3489 = vpow.pop %v3488
  %v3490 = vmul.f32 %v2421, 1.442695
  %v3491 = vpow.pop %v3490
  %v3492 = vmul.f32 %v2422, 1.442695
  %v3493 = vpow.pop %v3492
  %v3494 = vmul.f32 %v2423, 1.442695
  %v3495 = vpow.pop %v3494
  %v3496 = vmul.f32 %v2424, 1.442695
  %v3497 = vpow.pop %v3496
  %v3498 = vmul.f32 %v2425, 1.442695
  %v3499 = vpow.pop %v3498
  %v3500 = vmul.f32 %v2426, 1.442695
  %v3501 = vpow.pop %v3500
  %v3502 = vmul.f32 %v2427, 1.442695
  %v3503 = vpow.pop %v3502
  %v3504 = vmul.f32 %v2428, 1.442695
  %v3505 = vpow.pop %v3504
  %v3506 = vmul.f32 %v2429, 1.442695
  %v3507 = vpow.pop %v3506
  %v3508 = vmul.f32 %v2430, 1.442695
  %v3509 = vpow.pop %v3508
  %v3510 = vmul.f32 %v2431, 1.442695
  %v3511 = vpow.pop %v3510
  %v3512 = vmul.f32 %v2432, 1.442695
  %v3513 = vpow.pop %v3512
  %v3514 = vmul.f32 %v2433, 1.442695
  %v3515 = vpow.pop %v3514
  %v3516 = vmul.f32 %v2434, 1.442695
  %v3517 = vpow.pop %v3516
  %v3518 = vmul.f32 %v2435, 1.442695
  %v3519 = vpow.pop %v3518
  %v3520 = vmul.f32 %v2436, 1.442695
  %v3521 = vpow.pop %v3520
  %v3522 = vmul.f32 %v2437, 1.442695
  %v3523 = vpow.pop %v3522
  %v3524 = vmul.f32 %v2438, 1.442695
  %v3525 = vpow.pop %v3524
  %v3526 = vmul.f32 %v2439, 1.442695
  %v3527 = vpow.pop %v3526
  %v3528 = vmul.f32 %v2440, 1.442695
  %v3529 = vpow.pop %v3528
  %v3530 = vmul.f32 %v2441, 1.442695
  %v3531 = vpow.pop %v3530
  %v3532 = vmul.f32 %v2442, 1.442695
  %v3533 = vpow.pop %v3532
  %v3534 = vmul.f32 %v2443, 1.442695
  %v3535 = vpow.pop %v3534
  %v3536 = vmul.f32 %v2444, 1.442695
  %v3537 = vpow.pop %v3536
  %v3538 = vmul.f32 %v2445, 1.442695
  %v3539 = vpow.pop %v3538
  %v3540 = vmul.f32 %v2446, 1.442695
  %v3541 = vpow.pop %v3540
  %v3542 = vmul.f32 %v2447, 1.442695
  %v3543 = vpow.pop %v3542
  %v3544 = vmul.f32 %v2448, 1.442695
  %v3545 = vpow.pop %v3544
  %v3546 = vmul.f32 %v2449, 1.442695
  %v3547 = vpow.pop %v3546
  %v3548 = vmul.f32 %v2450, 1.442695
  %v3549 = vpow.pop %v3548
  %v3550 = vmul.f32 %v2451, 1.442695
  %v3551 = vpow.pop %v3550
  %v3552 = vmul.f32 %v2452, 1.442695
  %v3553 = vpow.pop %v3552
  %v3554 = vmul.f32 %v2453, 1.442695
  %v3555 = vpow.pop %v3554
  %v3556 = vmul.f32 %v2454, 1.442695
  %v3557 = vpow.pop %v3556
  %v3558 = vmul.f32 %v2455, 1.442695
  %v3559 = vpow.pop %v3558
  %v3560 = vmul.f32 %v2456, 1.442695
  %v3561 = vpow.pop %v3560
  %v3562 = vmul.f32 %v2457, 1.442695
  %v3563 = vpow.pop %v3562
  %v3564 = vmul.f32 %v2458, 1.442695
  %v3565 = vpow.pop %v3564
  %v3566 = vmul.f32 %v2459, 1.442695
  %v3567 = vpow.pop %v3566
  %v3568 = vmul.f32 %v2460, 1.442695
  %v3569 = vpow.pop %v3568
  %v3570 = vmul.f32 %v2461, 1.442695
  %v3571 = vpow.pop %v3570
  %v3572 = vmul.f32 %v2462, 1.442695
  %v3573 = vpow.pop %v3572
  %v3574 = vmul.f32 %v2463, 1.442695
  %v3575 = vpow.pop %v3574
  %v3576 = vmul.f32 %v2464, 1.442695
  %v3577 = vpow.pop %v3576
  %v3578 = vmul.f32 %v2465, 1.442695
  %v3579 = vpow.pop %v3578
  %v3580 = vmul.f32 %v2466, 1.442695
  %v3581 = vpow.pop %v3580
  %v3582 = vmul.f32 %v2467, 1.442695
  %v3583 = vpow.pop %v3582
  %v3584 = vmul.f32 %v2468, 1.442695
  %v3585 = vpow.pop %v3584
  %v3586 = vmul.f32 %v2469, 1.442695
  %v3587 = vpow.pop %v3586
  %v3588 = vmul.f32 %v2470, 1.442695
  %v3589 = vpow.pop %v3588
  %v3590 = vmul.f32 %v2471, 1.442695
  %v3591 = vpow.pop %v3590
  %v3592 = vmul.f32 %v2472, 1.442695
  %v3593 = vpow.pop %v3592
  %v3594 = vmul.f32 %v2473, 1.442695
  %v3595 = vpow.pop %v3594
  %v3596 = vmul.f32 %v2474, 1.442695
  %v3597 = vpow.pop %v3596
  %v3598 = vmul.f32 %v2475, 1.442695
  %v3599 = vpow.pop %v3598
  %v3600 = vmul.f32 %v2476, 1.442695
  %v3601 = vpow.pop %v3600
  %v3602 = vmul.f32 %v2477, 1.442695
  %v3603 = vpow.pop %v3602
  %v3604 = vmul.f32 %v2478, 1.442695
  %v3605 = vpow.pop %v3604
  %v3606 = vmul.f32 %v2479, 1.442695
  %v3607 = vpow.pop %v3606
  %v3608 = vmul.f32 %v2480, 1.442695
  %v3609 = vpow.pop %v3608
  %v3610 = vmul.f32 %v2481, 1.442695
  %v3611 = vpow.pop %v3610
  %v3612 = vmul.f32 %v2482, 1.442695
  %v3613 = vpow.pop %v3612
  %v3614 = vmul.f32 %v2483, 1.442695
  %v3615 = vpow.pop %v3614
  %v3616 = vmul.f32 %v2484, 1.442695
  %v3617 = vpow.pop %v3616
  %v3618 = vmul.f32 %v2485, 1.442695
  %v3619 = vpow.pop %v3618
  %v3620 = vmul.f32 %v2486, 1.442695
  %v3621 = vpow.pop %v3620
  %v3622 = vmul.f32 %v2487, 1.442695
  %v3623 = vpow.pop %v3622
  %v3624 = vmul.f32 %v2488, 1.442695
  %v3625 = vpow.pop %v3624
  %v3626 = vmul.f32 %v2489, 1.442695
  %v3627 = vpow.pop %v3626
  %v3628 = vmul.f32 %v2490, 1.442695
  %v3629 = vpow.pop %v3628
  %v3630 = vmul.f32 %v2491, 1.442695
  %v3631 = vpow.pop %v3630
  %v3632 = vmul.f32 %v2492, 1.442695
  %v3633 = vpow.pop %v3632
  %v3634 = vmul.f32 %v2493, 1.442695
  %v3635 = vpow.pop %v3634
  %v3636 = vmul.f32 %v2494, 1.442695
  %v3637 = vpow.pop %v3636
  %v3638 = vmul.f32 %v2495, 1.442695
  %v3639 = vpow.pop %v3638
  %v3640 = vmul.f32 %v2496, 1.442695
  %v3641 = vpow.pop %v3640
  %v3642 = vmul.f32 %v2497, 1.442695
  %v3643 = vpow.pop %v3642
  %v3644 = vmul.f32 %v2498, 1.442695
  %v3645 = vpow.pop %v3644
  %v3646 = vmul.f32 %v2499, 1.442695
  %v3647 = vpow.pop %v3646
  %v3648 = vmul.f32 %v2500, 1.442695
  %v3649 = vpow.pop %v3648
  %v3650 = vmul.f32 %v2501, 1.442695
  %v3651 = vpow.pop %v3650
  %v3652 = vmul.f32 %v2502, 1.442695
  %v3653 = vpow.pop %v3652
  %v3654 = vmul.f32 %v2503, 1.442695
  %v3655 = vpow.pop %v3654
  %3656 = vmatprep.subr.mxu0 %v2687
  %3657 = vmatpush1.xpose.msra.mxu0 %v2685
  %3658 = vmatprep.subr.mxu0 %v2675
  %3659 = vmatpush1.xpose.msra.mxu0 %v2673
  %3660 = vmatprep.subr.mxu0 %v2663
  %3661 = vmatpush1.xpose.msra.mxu0 %v2661
  %3662 = vmatprep.subr.mxu0 %v2651
  %3663 = vmatpush1.xpose.msra.mxu0 %v2649
  %3664 = vmatprep.subr.mxu0 %v2639
  %3665 = vmatpush1.xpose.msra.mxu0 %v2637
  %3666 = vmatprep.subr.mxu0 %v2627
  %3667 = vmatpush1.xpose.msra.mxu0 %v2625
  %3668 = vmatprep.subr.mxu0 %v2615
  %3669 = vmatpush1.xpose.msra.mxu0 %v2613
  %3670 = vmatprep.subr.mxu0 %v2603
  %3671 = vmatpush1.xpose.msra.mxu0 %v2601
  %3672 = vmatprep.subr.mxu0 %v2591
  %3673 = vmatpush1.xpose.msra.mxu0 %v2589
  %3674 = vmatprep.subr.mxu0 %v2579
  %3675 = vmatpush1.xpose.msra.mxu0 %v2577
  %3676 = vmatprep.subr.mxu0 %v2567
  %3677 = vmatpush1.xpose.msra.mxu0 %v2565
  %3678 = vmatprep.subr.mxu0 %v2555
  %3679 = vmatpush1.xpose.msra.mxu0 %v2553
  %3680 = vmatprep.subr.mxu0 %v2543
  %3681 = vmatpush1.xpose.msra.mxu0 %v2541
  %3682 = vmatprep.subr.mxu0 %v2531
  %3683 = vmatpush1.xpose.msra.mxu0 %v2529
  %3684 = vmatprep.subr.mxu0 %v2519
  %3685 = vmatpush1.xpose.msra.mxu0 %v2517
  %3686 = vmatprep.subr.mxu0 %v2507
  %3687 = vmatpush1.xpose.msra.mxu0 %v2505
  %3688 = vmatprep.subr.mxu0 %v2879
  %3689 = vmatpush2.xpose.msra.mxu0 %v2877
  %3690 = vmatprep.subr.mxu0 %v2867
  %3691 = vmatpush2.xpose.msra.mxu0 %v2865
  %3692 = vmatprep.subr.mxu0 %v2855
  %3693 = vmatpush2.xpose.msra.mxu0 %v2853
  %3694 = vmatprep.subr.mxu0 %v2843
  %3695 = vmatpush2.xpose.msra.mxu0 %v2841
  %3696 = vmatprep.subr.mxu0 %v2831
  %3697 = vmatpush2.xpose.msra.mxu0 %v2829
  %3698 = vmatprep.subr.mxu0 %v2819
  %3699 = vmatpush2.xpose.msra.mxu0 %v2817
  %3700 = vmatprep.subr.mxu0 %v2807
  %3701 = vmatpush2.xpose.msra.mxu0 %v2805
  %3702 = vmatprep.subr.mxu0 %v2795
  %3703 = vmatpush2.xpose.msra.mxu0 %v2793
  %3704 = vmatprep.subr.mxu0 %v2783
  %3705 = vmatpush2.xpose.msra.mxu0 %v2781
  %3706 = vmatprep.subr.mxu0 %v2771
  %3707 = vmatpush2.xpose.msra.mxu0 %v2769
  %3708 = vmatprep.subr.mxu0 %v2759
  %3709 = vmatpush2.xpose.msra.mxu0 %v2757
  %3710 = vmatprep.subr.mxu0 %v2747
  %3711 = vmatpush2.xpose.msra.mxu0 %v2745
  %3712 = vmatprep.subr.mxu0 %v2735
  %3713 = vmatpush2.xpose.msra.mxu0 %v2733
  %3714 = vmatprep.subr.mxu0 %v2723
  %3715 = vmatpush2.xpose.msra.mxu0 %v2721
  %3716 = vmatprep.subr.mxu0 %v2711
  %3717 = vmatpush2.xpose.msra.mxu0 %v2709
  %3718 = vmatprep.subr.mxu0 %v2699
  %3719 = vmatpush2.xpose.msra.mxu0 %v2697
  %3720 = vmatprep.mubr.f32.mxu0 %v23
  %3721 = vmatmul.mubr.f32.gmra.mxu0 %v22
  %v3722 = vpop.f32.mrf.mxu0
  %v3723 = vadd.f32 0.0, %v3722
  %v3724 = vpop.f32.mrf.mxu0
  %v3725 = vadd.f32 0.0, %v3724
  %3726 = vmatprep.mubr.f32.mxu0 %v29
  %3727 = vmatmul.mubr.f32.gmra.mxu0 %v28
  %v3728 = vpop.f32.mrf.mxu0
  %v3729 = vadd.f32 0.0, %v3728
  %v3730 = vpop.f32.mrf.mxu0
  %v3731 = vadd.f32 0.0, %v3730
  %3732 = vdwg.mxu0
  %3733 = vmatprep.subr.mxu0 %v2691
  %3734 = vmatpush1.xpose.msra.mxu0 %v2689
  %3735 = vmatprep.subr.mxu0 %v2679
  %3736 = vmatpush1.xpose.msra.mxu0 %v2677
  %3737 = vmatprep.subr.mxu0 %v2667
  %3738 = vmatpush1.xpose.msra.mxu0 %v2665
  %3739 = vmatprep.subr.mxu0 %v2655
  %3740 = vmatpush1.xpose.msra.mxu0 %v2653
  %3741 = vmatprep.subr.mxu0 %v2643
  %3742 = vmatpush1.xpose.msra.mxu0 %v2641
  %3743 = vmatprep.subr.mxu0 %v2631
  %3744 = vmatpush1.xpose.msra.mxu0 %v2629
  %3745 = vmatprep.subr.mxu0 %v2619
  %3746 = vmatpush1.xpose.msra.mxu0 %v2617
  %3747 = vmatprep.subr.mxu0 %v2607
  %3748 = vmatpush1.xpose.msra.mxu0 %v2605
  %3749 = vmatprep.subr.mxu0 %v2595
  %3750 = vmatpush1.xpose.msra.mxu0 %v2593
  %3751 = vmatprep.subr.mxu0 %v2583
  %3752 = vmatpush1.xpose.msra.mxu0 %v2581
  %3753 = vmatprep.subr.mxu0 %v2571
  %3754 = vmatpush1.xpose.msra.mxu0 %v2569
  %3755 = vmatprep.subr.mxu0 %v2559
  %3756 = vmatpush1.xpose.msra.mxu0 %v2557
  %3757 = vmatprep.subr.mxu0 %v2547
  %3758 = vmatpush1.xpose.msra.mxu0 %v2545
  %3759 = vmatprep.subr.mxu0 %v2535
  %3760 = vmatpush1.xpose.msra.mxu0 %v2533
  %3761 = vmatprep.subr.mxu0 %v2523
  %3762 = vmatpush1.xpose.msra.mxu0 %v2521
  %3763 = vmatprep.subr.mxu0 %v2511
  %3764 = vmatpush1.xpose.msra.mxu0 %v2509
  %3765 = vmatprep.subr.mxu0 %v2883
  %3766 = vmatpush2.xpose.msra.mxu0 %v2881
  %3767 = vmatprep.subr.mxu0 %v2871
  %3768 = vmatpush2.xpose.msra.mxu0 %v2869
  %3769 = vmatprep.subr.mxu0 %v2859
  %3770 = vmatpush2.xpose.msra.mxu0 %v2857
  %3771 = vmatprep.subr.mxu0 %v2847
  %3772 = vmatpush2.xpose.msra.mxu0 %v2845
  %3773 = vmatprep.subr.mxu0 %v2835
  %3774 = vmatpush2.xpose.msra.mxu0 %v2833
  %3775 = vmatprep.subr.mxu0 %v2823
  %3776 = vmatpush2.xpose.msra.mxu0 %v2821
  %3777 = vmatprep.subr.mxu0 %v2811
  %3778 = vmatpush2.xpose.msra.mxu0 %v2809
  %3779 = vmatprep.subr.mxu0 %v2799
  %3780 = vmatpush2.xpose.msra.mxu0 %v2797
  %3781 = vmatprep.subr.mxu0 %v2787
  %3782 = vmatpush2.xpose.msra.mxu0 %v2785
  %3783 = vmatprep.subr.mxu0 %v2775
  %3784 = vmatpush2.xpose.msra.mxu0 %v2773
  %3785 = vmatprep.subr.mxu0 %v2763
  %3786 = vmatpush2.xpose.msra.mxu0 %v2761
  %3787 = vmatprep.subr.mxu0 %v2751
  %3788 = vmatpush2.xpose.msra.mxu0 %v2749
  %3789 = vmatprep.subr.mxu0 %v2739
  %3790 = vmatpush2.xpose.msra.mxu0 %v2737
  %3791 = vmatprep.subr.mxu0 %v2727
  %3792 = vmatpush2.xpose.msra.mxu0 %v2725
  %3793 = vmatprep.subr.mxu0 %v2715
  %3794 = vmatpush2.xpose.msra.mxu0 %v2713
  %3795 = vmatprep.subr.mxu0 %v2703
  %3796 = vmatpush2.xpose.msra.mxu0 %v2701
  %3797 = vmatprep.mubr.f32.mxu0 %v25
  %3798 = vmatmul.mubr.f32.gmra.mxu0 %v24
  %v3799 = vpop.f32.mrf.mxu0
  %v3800 = vadd.f32 %v3723, %v3799
  %v3801 = vpop.f32.mrf.mxu0
  %v3802 = vadd.f32 %v3725, %v3801
  %3803 = vmatprep.mubr.f32.mxu0 %v31
  %3804 = vmatmul.mubr.f32.gmra.mxu0 %v30
  %v3805 = vpop.f32.mrf.mxu0
  %v3806 = vadd.f32 %v3729, %v3805
  %v3807 = vpop.f32.mrf.mxu0
  %v3808 = vadd.f32 %v3731, %v3807
  %3809 = vdwg.mxu0
  %3810 = vmatprep.subr.mxu0 %v2695
  %3811 = vmatpush1.xpose.msra.mxu0 %v2693
  %3812 = vmatprep.subr.mxu0 %v2683
  %3813 = vmatpush1.xpose.msra.mxu0 %v2681
  %3814 = vmatprep.subr.mxu0 %v2671
  %3815 = vmatpush1.xpose.msra.mxu0 %v2669
  %3816 = vmatprep.subr.mxu0 %v2659
  %3817 = vmatpush1.xpose.msra.mxu0 %v2657
  %3818 = vmatprep.subr.mxu0 %v2647
  %3819 = vmatpush1.xpose.msra.mxu0 %v2645
  %3820 = vmatprep.subr.mxu0 %v2635
  %3821 = vmatpush1.xpose.msra.mxu0 %v2633
  %3822 = vmatprep.subr.mxu0 %v2623
  %3823 = vmatpush1.xpose.msra.mxu0 %v2621
  %3824 = vmatprep.subr.mxu0 %v2611
  %3825 = vmatpush1.xpose.msra.mxu0 %v2609
  %3826 = vmatprep.subr.mxu0 %v2599
  %3827 = vmatpush1.xpose.msra.mxu0 %v2597
  %3828 = vmatprep.subr.mxu0 %v2587
  %3829 = vmatpush1.xpose.msra.mxu0 %v2585
  %3830 = vmatprep.subr.mxu0 %v2575
  %3831 = vmatpush1.xpose.msra.mxu0 %v2573
  %3832 = vmatprep.subr.mxu0 %v2563
  %3833 = vmatpush1.xpose.msra.mxu0 %v2561
  %3834 = vmatprep.subr.mxu0 %v2551
  %3835 = vmatpush1.xpose.msra.mxu0 %v2549
  %3836 = vmatprep.subr.mxu0 %v2539
  %3837 = vmatpush1.xpose.msra.mxu0 %v2537
  %3838 = vmatprep.subr.mxu0 %v2527
  %3839 = vmatpush1.xpose.msra.mxu0 %v2525
  %3840 = vmatprep.subr.mxu0 %v2515
  %3841 = vmatpush1.xpose.msra.mxu0 %v2513
  %3842 = vmatprep.subr.mxu0 %v2887
  %3843 = vmatpush2.xpose.msra.mxu0 %v2885
  %3844 = vmatprep.subr.mxu0 %v2875
  %3845 = vmatpush2.xpose.msra.mxu0 %v2873
  %3846 = vmatprep.subr.mxu0 %v2863
  %3847 = vmatpush2.xpose.msra.mxu0 %v2861
  %3848 = vmatprep.subr.mxu0 %v2851
  %3849 = vmatpush2.xpose.msra.mxu0 %v2849
  %3850 = vmatprep.subr.mxu0 %v2839
  %3851 = vmatpush2.xpose.msra.mxu0 %v2837
  %3852 = vmatprep.subr.mxu0 %v2827
  %3853 = vmatpush2.xpose.msra.mxu0 %v2825
  %3854 = vmatprep.subr.mxu0 %v2815
  %3855 = vmatpush2.xpose.msra.mxu0 %v2813
  %3856 = vmatprep.subr.mxu0 %v2803
  %3857 = vmatpush2.xpose.msra.mxu0 %v2801
  %3858 = vmatprep.subr.mxu0 %v2791
  %3859 = vmatpush2.xpose.msra.mxu0 %v2789
  %3860 = vmatprep.subr.mxu0 %v2779
  %3861 = vmatpush2.xpose.msra.mxu0 %v2777
  %3862 = vmatprep.subr.mxu0 %v2767
  %3863 = vmatpush2.xpose.msra.mxu0 %v2765
  %3864 = vmatprep.subr.mxu0 %v2755
  %3865 = vmatpush2.xpose.msra.mxu0 %v2753
  %3866 = vmatprep.subr.mxu0 %v2743
  %3867 = vmatpush2.xpose.msra.mxu0 %v2741
  %3868 = vmatprep.subr.mxu0 %v2731
  %3869 = vmatpush2.xpose.msra.mxu0 %v2729
  %3870 = vmatprep.subr.mxu0 %v2719
  %3871 = vmatpush2.xpose.msra.mxu0 %v2717
  %3872 = vmatprep.subr.mxu0 %v2707
  %3873 = vmatpush2.xpose.msra.mxu0 %v2705
  %3874 = vmatprep.mubr.f32.mxu0 %v27
  %3875 = vmatmul.mubr.f32.gmra.mxu0 %v26
  %v3876 = vpop.f32.mrf.mxu0
  %v3877 = vadd.f32 %v3800, %v3876
  %v3878 = vpop.f32.mrf.mxu0
  %v3879 = vadd.f32 %v3802, %v3878
  %3880 = vmatprep.mubr.f32.mxu0 %v33
  %3881 = vmatmul.mubr.f32.gmra.mxu0 %v32
  %v3882 = vpop.f32.mrf.mxu0
  %v3883 = vadd.f32 %v3806, %v3882
  %v3884 = vpop.f32.mrf.mxu0
  %v3885 = vadd.f32 %v3808, %v3884
  %3886 = vdwg.mxu0
  %3887 = vmatprep.subr.mxu0 %v3071
  %3888 = vmatpush1.xpose.msra.mxu0 %v3069
  %3889 = vmatprep.subr.mxu0 %v3059
  %3890 = vmatpush1.xpose.msra.mxu0 %v3057
  %3891 = vmatprep.subr.mxu0 %v3047
  %3892 = vmatpush1.xpose.msra.mxu0 %v3045
  %3893 = vmatprep.subr.mxu0 %v3035
  %3894 = vmatpush1.xpose.msra.mxu0 %v3033
  %3895 = vmatprep.subr.mxu0 %v3023
  %3896 = vmatpush1.xpose.msra.mxu0 %v3021
  %3897 = vmatprep.subr.mxu0 %v3011
  %3898 = vmatpush1.xpose.msra.mxu0 %v3009
  %3899 = vmatprep.subr.mxu0 %v2999
  %3900 = vmatpush1.xpose.msra.mxu0 %v2997
  %3901 = vmatprep.subr.mxu0 %v2987
  %3902 = vmatpush1.xpose.msra.mxu0 %v2985
  %3903 = vmatprep.subr.mxu0 %v2975
  %3904 = vmatpush1.xpose.msra.mxu0 %v2973
  %3905 = vmatprep.subr.mxu0 %v2963
  %3906 = vmatpush1.xpose.msra.mxu0 %v2961
  %3907 = vmatprep.subr.mxu0 %v2951
  %3908 = vmatpush1.xpose.msra.mxu0 %v2949
  %3909 = vmatprep.subr.mxu0 %v2939
  %3910 = vmatpush1.xpose.msra.mxu0 %v2937
  %3911 = vmatprep.subr.mxu0 %v2927
  %3912 = vmatpush1.xpose.msra.mxu0 %v2925
  %3913 = vmatprep.subr.mxu0 %v2915
  %3914 = vmatpush1.xpose.msra.mxu0 %v2913
  %3915 = vmatprep.subr.mxu0 %v2903
  %3916 = vmatpush1.xpose.msra.mxu0 %v2901
  %3917 = vmatprep.subr.mxu0 %v2891
  %3918 = vmatpush1.xpose.msra.mxu0 %v2889
  %3919 = vmatprep.subr.mxu0 %v3263
  %3920 = vmatpush2.xpose.msra.mxu0 %v3261
  %3921 = vmatprep.subr.mxu0 %v3251
  %3922 = vmatpush2.xpose.msra.mxu0 %v3249
  %3923 = vmatprep.subr.mxu0 %v3239
  %3924 = vmatpush2.xpose.msra.mxu0 %v3237
  %3925 = vmatprep.subr.mxu0 %v3227
  %3926 = vmatpush2.xpose.msra.mxu0 %v3225
  %3927 = vmatprep.subr.mxu0 %v3215
  %3928 = vmatpush2.xpose.msra.mxu0 %v3213
  %3929 = vmatprep.subr.mxu0 %v3203
  %3930 = vmatpush2.xpose.msra.mxu0 %v3201
  %3931 = vmatprep.subr.mxu0 %v3191
  %3932 = vmatpush2.xpose.msra.mxu0 %v3189
  %3933 = vmatprep.subr.mxu0 %v3179
  %3934 = vmatpush2.xpose.msra.mxu0 %v3177
  %3935 = vmatprep.subr.mxu0 %v3167
  %3936 = vmatpush2.xpose.msra.mxu0 %v3165
  %3937 = vmatprep.subr.mxu0 %v3155
  %3938 = vmatpush2.xpose.msra.mxu0 %v3153
  %3939 = vmatprep.subr.mxu0 %v3143
  %3940 = vmatpush2.xpose.msra.mxu0 %v3141
  %3941 = vmatprep.subr.mxu0 %v3131
  %3942 = vmatpush2.xpose.msra.mxu0 %v3129
  %3943 = vmatprep.subr.mxu0 %v3119
  %3944 = vmatpush2.xpose.msra.mxu0 %v3117
  %3945 = vmatprep.subr.mxu0 %v3107
  %3946 = vmatpush2.xpose.msra.mxu0 %v3105
  %3947 = vmatprep.subr.mxu0 %v3095
  %3948 = vmatpush2.xpose.msra.mxu0 %v3093
  %3949 = vmatprep.subr.mxu0 %v3083
  %3950 = vmatpush2.xpose.msra.mxu0 %v3081
  %3951 = vmatprep.mubr.f32.mxu0 %v23
  %3952 = vmatmul.mubr.f32.gmra.mxu0 %v22
  %v3953 = vpop.f32.mrf.mxu0
  %v3954 = vadd.f32 0.0, %v3953
  %v3955 = vpop.f32.mrf.mxu0
  %v3956 = vadd.f32 0.0, %v3955
  %3957 = vmatprep.mubr.f32.mxu0 %v29
  %3958 = vmatmul.mubr.f32.gmra.mxu0 %v28
  %v3959 = vpop.f32.mrf.mxu0
  %v3960 = vadd.f32 0.0, %v3959
  %v3961 = vpop.f32.mrf.mxu0
  %v3962 = vadd.f32 0.0, %v3961
  %3963 = vdwg.mxu0
  %3964 = vmatprep.subr.mxu0 %v3075
  %3965 = vmatpush1.xpose.msra.mxu0 %v3073
  %3966 = vmatprep.subr.mxu0 %v3063
  %3967 = vmatpush1.xpose.msra.mxu0 %v3061
  %3968 = vmatprep.subr.mxu0 %v3051
  %3969 = vmatpush1.xpose.msra.mxu0 %v3049
  %3970 = vmatprep.subr.mxu0 %v3039
  %3971 = vmatpush1.xpose.msra.mxu0 %v3037
  %3972 = vmatprep.subr.mxu0 %v3027
  %3973 = vmatpush1.xpose.msra.mxu0 %v3025
  %3974 = vmatprep.subr.mxu0 %v3015
  %3975 = vmatpush1.xpose.msra.mxu0 %v3013
  %3976 = vmatprep.subr.mxu0 %v3003
  %3977 = vmatpush1.xpose.msra.mxu0 %v3001
  %3978 = vmatprep.subr.mxu0 %v2991
  %3979 = vmatpush1.xpose.msra.mxu0 %v2989
  %3980 = vmatprep.subr.mxu0 %v2979
  %3981 = vmatpush1.xpose.msra.mxu0 %v2977
  %3982 = vmatprep.subr.mxu0 %v2967
  %3983 = vmatpush1.xpose.msra.mxu0 %v2965
  %3984 = vmatprep.subr.mxu0 %v2955
  %3985 = vmatpush1.xpose.msra.mxu0 %v2953
  %3986 = vmatprep.subr.mxu0 %v2943
  %3987 = vmatpush1.xpose.msra.mxu0 %v2941
  %3988 = vmatprep.subr.mxu0 %v2931
  %3989 = vmatpush1.xpose.msra.mxu0 %v2929
  %3990 = vmatprep.subr.mxu0 %v2919
  %3991 = vmatpush1.xpose.msra.mxu0 %v2917
  %3992 = vmatprep.subr.mxu0 %v2907
  %3993 = vmatpush1.xpose.msra.mxu0 %v2905
  %3994 = vmatprep.subr.mxu0 %v2895
  %3995 = vmatpush1.xpose.msra.mxu0 %v2893
  %3996 = vmatprep.subr.mxu0 %v3267
  %3997 = vmatpush2.xpose.msra.mxu0 %v3265
  %3998 = vmatprep.subr.mxu0 %v3255
  %3999 = vmatpush2.xpose.msra.mxu0 %v3253
  %4000 = vmatprep.subr.mxu0 %v3243
  %4001 = vmatpush2.xpose.msra.mxu0 %v3241
  %4002 = vmatprep.subr.mxu0 %v3231
  %4003 = vmatpush2.xpose.msra.mxu0 %v3229
  %4004 = vmatprep.subr.mxu0 %v3219
  %4005 = vmatpush2.xpose.msra.mxu0 %v3217
  %4006 = vmatprep.subr.mxu0 %v3207
  %4007 = vmatpush2.xpose.msra.mxu0 %v3205
  %4008 = vmatprep.subr.mxu0 %v3195
  %4009 = vmatpush2.xpose.msra.mxu0 %v3193
  %4010 = vmatprep.subr.mxu0 %v3183
  %4011 = vmatpush2.xpose.msra.mxu0 %v3181
  %4012 = vmatprep.subr.mxu0 %v3171
  %4013 = vmatpush2.xpose.msra.mxu0 %v3169
  %4014 = vmatprep.subr.mxu0 %v3159
  %4015 = vmatpush2.xpose.msra.mxu0 %v3157
  %4016 = vmatprep.subr.mxu0 %v3147
  %4017 = vmatpush2.xpose.msra.mxu0 %v3145
  %4018 = vmatprep.subr.mxu0 %v3135
  %4019 = vmatpush2.xpose.msra.mxu0 %v3133
  %4020 = vmatprep.subr.mxu0 %v3123
  %4021 = vmatpush2.xpose.msra.mxu0 %v3121
  %4022 = vmatprep.subr.mxu0 %v3111
  %4023 = vmatpush2.xpose.msra.mxu0 %v3109
  %4024 = vmatprep.subr.mxu0 %v3099
  %4025 = vmatpush2.xpose.msra.mxu0 %v3097
  %4026 = vmatprep.subr.mxu0 %v3087
  %4027 = vmatpush2.xpose.msra.mxu0 %v3085
  %4028 = vmatprep.mubr.f32.mxu0 %v25
  %4029 = vmatmul.mubr.f32.gmra.mxu0 %v24
  %v4030 = vpop.f32.mrf.mxu0
  %v4031 = vadd.f32 %v3954, %v4030
  %v4032 = vpop.f32.mrf.mxu0
  %v4033 = vadd.f32 %v3956, %v4032
  %4034 = vmatprep.mubr.f32.mxu0 %v31
  %4035 = vmatmul.mubr.f32.gmra.mxu0 %v30
  %v4036 = vpop.f32.mrf.mxu0
  %v4037 = vadd.f32 %v3960, %v4036
  %v4038 = vpop.f32.mrf.mxu0
  %v4039 = vadd.f32 %v3962, %v4038
  %4040 = vdwg.mxu0
  %4041 = vmatprep.subr.mxu0 %v3079
  %4042 = vmatpush1.xpose.msra.mxu0 %v3077
  %4043 = vmatprep.subr.mxu0 %v3067
  %4044 = vmatpush1.xpose.msra.mxu0 %v3065
  %4045 = vmatprep.subr.mxu0 %v3055
  %4046 = vmatpush1.xpose.msra.mxu0 %v3053
  %4047 = vmatprep.subr.mxu0 %v3043
  %4048 = vmatpush1.xpose.msra.mxu0 %v3041
  %4049 = vmatprep.subr.mxu0 %v3031
  %4050 = vmatpush1.xpose.msra.mxu0 %v3029
  %4051 = vmatprep.subr.mxu0 %v3019
  %4052 = vmatpush1.xpose.msra.mxu0 %v3017
  %4053 = vmatprep.subr.mxu0 %v3007
  %4054 = vmatpush1.xpose.msra.mxu0 %v3005
  %4055 = vmatprep.subr.mxu0 %v2995
  %4056 = vmatpush1.xpose.msra.mxu0 %v2993
  %4057 = vmatprep.subr.mxu0 %v2983
  %4058 = vmatpush1.xpose.msra.mxu0 %v2981
  %4059 = vmatprep.subr.mxu0 %v2971
  %4060 = vmatpush1.xpose.msra.mxu0 %v2969
  %4061 = vmatprep.subr.mxu0 %v2959
  %4062 = vmatpush1.xpose.msra.mxu0 %v2957
  %4063 = vmatprep.subr.mxu0 %v2947
  %4064 = vmatpush1.xpose.msra.mxu0 %v2945
  %4065 = vmatprep.subr.mxu0 %v2935
  %4066 = vmatpush1.xpose.msra.mxu0 %v2933
  %4067 = vmatprep.subr.mxu0 %v2923
  %4068 = vmatpush1.xpose.msra.mxu0 %v2921
  %4069 = vmatprep.subr.mxu0 %v2911
  %4070 = vmatpush1.xpose.msra.mxu0 %v2909
  %4071 = vmatprep.subr.mxu0 %v2899
  %4072 = vmatpush1.xpose.msra.mxu0 %v2897
  %4073 = vmatprep.subr.mxu0 %v3271
  %4074 = vmatpush2.xpose.msra.mxu0 %v3269
  %4075 = vmatprep.subr.mxu0 %v3259
  %4076 = vmatpush2.xpose.msra.mxu0 %v3257
  %4077 = vmatprep.subr.mxu0 %v3247
  %4078 = vmatpush2.xpose.msra.mxu0 %v3245
  %4079 = vmatprep.subr.mxu0 %v3235
  %4080 = vmatpush2.xpose.msra.mxu0 %v3233
  %4081 = vmatprep.subr.mxu0 %v3223
  %4082 = vmatpush2.xpose.msra.mxu0 %v3221
  %4083 = vmatprep.subr.mxu0 %v3211
  %4084 = vmatpush2.xpose.msra.mxu0 %v3209
  %4085 = vmatprep.subr.mxu0 %v3199
  %4086 = vmatpush2.xpose.msra.mxu0 %v3197
  %4087 = vmatprep.subr.mxu0 %v3187
  %4088 = vmatpush2.xpose.msra.mxu0 %v3185
  %4089 = vmatprep.subr.mxu0 %v3175
  %4090 = vmatpush2.xpose.msra.mxu0 %v3173
  %4091 = vmatprep.subr.mxu0 %v3163
  %4092 = vmatpush2.xpose.msra.mxu0 %v3161
  %4093 = vmatprep.subr.mxu0 %v3151
  %4094 = vmatpush2.xpose.msra.mxu0 %v3149
  %4095 = vmatprep.subr.mxu0 %v3139
  %4096 = vmatpush2.xpose.msra.mxu0 %v3137
  %4097 = vmatprep.subr.mxu0 %v3127
  %4098 = vmatpush2.xpose.msra.mxu0 %v3125
  %4099 = vmatprep.subr.mxu0 %v3115
  %4100 = vmatpush2.xpose.msra.mxu0 %v3113
  %4101 = vmatprep.subr.mxu0 %v3103
  %4102 = vmatpush2.xpose.msra.mxu0 %v3101
  %4103 = vmatprep.subr.mxu0 %v3091
  %4104 = vmatpush2.xpose.msra.mxu0 %v3089
  %4105 = vmatprep.mubr.f32.mxu0 %v27
  %4106 = vmatmul.mubr.f32.gmra.mxu0 %v26
  %v4107 = vpop.f32.mrf.mxu0
  %v4108 = vadd.f32 %v4031, %v4107
  %v4109 = vpop.f32.mrf.mxu0
  %v4110 = vadd.f32 %v4033, %v4109
  %4111 = vmatprep.mubr.f32.mxu0 %v33
  %4112 = vmatmul.mubr.f32.gmra.mxu0 %v32
  %v4113 = vpop.f32.mrf.mxu0
  %v4114 = vadd.f32 %v4037, %v4113
  %v4115 = vpop.f32.mrf.mxu0
  %v4116 = vadd.f32 %v4039, %v4115
  %4117 = vdwg.mxu0
  %4118 = vmatprep.subr.mxu0 %v3455
  %4119 = vmatpush1.xpose.msra.mxu0 %v3453
  %4120 = vmatprep.subr.mxu0 %v3443
  %4121 = vmatpush1.xpose.msra.mxu0 %v3441
  %4122 = vmatprep.subr.mxu0 %v3431
  %4123 = vmatpush1.xpose.msra.mxu0 %v3429
  %4124 = vmatprep.subr.mxu0 %v3419
  %4125 = vmatpush1.xpose.msra.mxu0 %v3417
  %4126 = vmatprep.subr.mxu0 %v3407
  %4127 = vmatpush1.xpose.msra.mxu0 %v3405
  %4128 = vmatprep.subr.mxu0 %v3395
  %4129 = vmatpush1.xpose.msra.mxu0 %v3393
  %4130 = vmatprep.subr.mxu0 %v3383
  %4131 = vmatpush1.xpose.msra.mxu0 %v3381
  %4132 = vmatprep.subr.mxu0 %v3371
  %4133 = vmatpush1.xpose.msra.mxu0 %v3369
  %4134 = vmatprep.subr.mxu0 %v3359
  %4135 = vmatpush1.xpose.msra.mxu0 %v3357
  %4136 = vmatprep.subr.mxu0 %v3347
  %4137 = vmatpush1.xpose.msra.mxu0 %v3345
  %4138 = vmatprep.subr.mxu0 %v3335
  %4139 = vmatpush1.xpose.msra.mxu0 %v3333
  %4140 = vmatprep.subr.mxu0 %v3323
  %4141 = vmatpush1.xpose.msra.mxu0 %v3321
  %4142 = vmatprep.subr.mxu0 %v3311
  %4143 = vmatpush1.xpose.msra.mxu0 %v3309
  %4144 = vmatprep.subr.mxu0 %v3299
  %4145 = vmatpush1.xpose.msra.mxu0 %v3297
  %4146 = vmatprep.subr.mxu0 %v3287
  %4147 = vmatpush1.xpose.msra.mxu0 %v3285
  %4148 = vmatprep.subr.mxu0 %v3275
  %4149 = vmatpush1.xpose.msra.mxu0 %v3273
  %4150 = vmatprep.subr.mxu0 %v3647
  %4151 = vmatpush2.xpose.msra.mxu0 %v3645
  %4152 = vmatprep.subr.mxu0 %v3635
  %4153 = vmatpush2.xpose.msra.mxu0 %v3633
  %4154 = vmatprep.subr.mxu0 %v3623
  %4155 = vmatpush2.xpose.msra.mxu0 %v3621
  %4156 = vmatprep.subr.mxu0 %v3611
  %4157 = vmatpush2.xpose.msra.mxu0 %v3609
  %4158 = vmatprep.subr.mxu0 %v3599
  %4159 = vmatpush2.xpose.msra.mxu0 %v3597
  %4160 = vmatprep.subr.mxu0 %v3587
  %4161 = vmatpush2.xpose.msra.mxu0 %v3585
  %4162 = vmatprep.subr.mxu0 %v3575
  %4163 = vmatpush2.xpose.msra.mxu0 %v3573
  %4164 = vmatprep.subr.mxu0 %v3563
  %4165 = vmatpush2.xpose.msra.mxu0 %v3561
  %4166 = vmatprep.subr.mxu0 %v3551
  %4167 = vmatpush2.xpose.msra.mxu0 %v3549
  %4168 = vmatprep.subr.mxu0 %v3539
  %4169 = vmatpush2.xpose.msra.mxu0 %v3537
  %4170 = vmatprep.subr.mxu0 %v3527
  %4171 = vmatpush2.xpose.msra.mxu0 %v3525
  %4172 = vmatprep.subr.mxu0 %v3515
  %4173 = vmatpush2.xpose.msra.mxu0 %v3513
  %4174 = vmatprep.subr.mxu0 %v3503
  %4175 = vmatpush2.xpose.msra.mxu0 %v3501
  %4176 = vmatprep.subr.mxu0 %v3491
  %4177 = vmatpush2.xpose.msra.mxu0 %v3489
  %4178 = vmatprep.subr.mxu0 %v3479
  %4179 = vmatpush2.xpose.msra.mxu0 %v3477
  %4180 = vmatprep.subr.mxu0 %v3467
  %4181 = vmatpush2.xpose.msra.mxu0 %v3465
  %4182 = vmatprep.mubr.f32.mxu0 %v23
  %4183 = vmatmul.mubr.f32.gmra.mxu0 %v22
  %v4184 = vpop.f32.mrf.mxu0
  %v4185 = vadd.f32 0.0, %v4184
  %v4186 = vpop.f32.mrf.mxu0
  %v4187 = vadd.f32 0.0, %v4186
  %4188 = vmatprep.mubr.f32.mxu0 %v29
  %4189 = vmatmul.mubr.f32.gmra.mxu0 %v28
  %v4190 = vpop.f32.mrf.mxu0
  %v4191 = vadd.f32 0.0, %v4190
  %v4192 = vpop.f32.mrf.mxu0
  %v4193 = vadd.f32 0.0, %v4192
  %4194 = vdwg.mxu0
  %4195 = vmatprep.subr.mxu0 %v3459
  %4196 = vmatpush1.xpose.msra.mxu0 %v3457
  %4197 = vmatprep.subr.mxu0 %v3447
  %4198 = vmatpush1.xpose.msra.mxu0 %v3445
  %4199 = vmatprep.subr.mxu0 %v3435
  %4200 = vmatpush1.xpose.msra.mxu0 %v3433
  %4201 = vmatprep.subr.mxu0 %v3423
  %4202 = vmatpush1.xpose.msra.mxu0 %v3421
  %4203 = vmatprep.subr.mxu0 %v3411
  %4204 = vmatpush1.xpose.msra.mxu0 %v3409
  %4205 = vmatprep.subr.mxu0 %v3399
  %4206 = vmatpush1.xpose.msra.mxu0 %v3397
  %4207 = vmatprep.subr.mxu0 %v3387
  %4208 = vmatpush1.xpose.msra.mxu0 %v3385
  %4209 = vmatprep.subr.mxu0 %v3375
  %4210 = vmatpush1.xpose.msra.mxu0 %v3373
  %4211 = vmatprep.subr.mxu0 %v3363
  %4212 = vmatpush1.xpose.msra.mxu0 %v3361
  %4213 = vmatprep.subr.mxu0 %v3351
  %4214 = vmatpush1.xpose.msra.mxu0 %v3349
  %4215 = vmatprep.subr.mxu0 %v3339
  %4216 = vmatpush1.xpose.msra.mxu0 %v3337
  %4217 = vmatprep.subr.mxu0 %v3327
  %4218 = vmatpush1.xpose.msra.mxu0 %v3325
  %4219 = vmatprep.subr.mxu0 %v3315
  %4220 = vmatpush1.xpose.msra.mxu0 %v3313
  %4221 = vmatprep.subr.mxu0 %v3303
  %4222 = vmatpush1.xpose.msra.mxu0 %v3301
  %4223 = vmatprep.subr.mxu0 %v3291
  %4224 = vmatpush1.xpose.msra.mxu0 %v3289
  %4225 = vmatprep.subr.mxu0 %v3279
  %4226 = vmatpush1.xpose.msra.mxu0 %v3277
  %4227 = vmatprep.subr.mxu0 %v3651
  %4228 = vmatpush2.xpose.msra.mxu0 %v3649
  %4229 = vmatprep.subr.mxu0 %v3639
  %4230 = vmatpush2.xpose.msra.mxu0 %v3637
  %4231 = vmatprep.subr.mxu0 %v3627
  %4232 = vmatpush2.xpose.msra.mxu0 %v3625
  %4233 = vmatprep.subr.mxu0 %v3615
  %4234 = vmatpush2.xpose.msra.mxu0 %v3613
  %4235 = vmatprep.subr.mxu0 %v3603
  %4236 = vmatpush2.xpose.msra.mxu0 %v3601
  %4237 = vmatprep.subr.mxu0 %v3591
  %4238 = vmatpush2.xpose.msra.mxu0 %v3589
  %4239 = vmatprep.subr.mxu0 %v3579
  %4240 = vmatpush2.xpose.msra.mxu0 %v3577
  %4241 = vmatprep.subr.mxu0 %v3567
  %4242 = vmatpush2.xpose.msra.mxu0 %v3565
  %4243 = vmatprep.subr.mxu0 %v3555
  %4244 = vmatpush2.xpose.msra.mxu0 %v3553
  %4245 = vmatprep.subr.mxu0 %v3543
  %4246 = vmatpush2.xpose.msra.mxu0 %v3541
  %4247 = vmatprep.subr.mxu0 %v3531
  %4248 = vmatpush2.xpose.msra.mxu0 %v3529
  %4249 = vmatprep.subr.mxu0 %v3519
  %4250 = vmatpush2.xpose.msra.mxu0 %v3517
  %4251 = vmatprep.subr.mxu0 %v3507
  %4252 = vmatpush2.xpose.msra.mxu0 %v3505
  %4253 = vmatprep.subr.mxu0 %v3495
  %4254 = vmatpush2.xpose.msra.mxu0 %v3493
  %4255 = vmatprep.subr.mxu0 %v3483
  %4256 = vmatpush2.xpose.msra.mxu0 %v3481
  %4257 = vmatprep.subr.mxu0 %v3471
  %4258 = vmatpush2.xpose.msra.mxu0 %v3469
  %4259 = vmatprep.mubr.f32.mxu0 %v25
  %4260 = vmatmul.mubr.f32.gmra.mxu0 %v24
  %v4261 = vpop.f32.mrf.mxu0
  %v4262 = vadd.f32 %v4185, %v4261
  %v4263 = vpop.f32.mrf.mxu0
  %v4264 = vadd.f32 %v4187, %v4263
  %4265 = vmatprep.mubr.f32.mxu0 %v31
  %4266 = vmatmul.mubr.f32.gmra.mxu0 %v30
  %v4267 = vpop.f32.mrf.mxu0
  %v4268 = vadd.f32 %v4191, %v4267
  %v4269 = vpop.f32.mrf.mxu0
  %v4270 = vadd.f32 %v4193, %v4269
  %4271 = vdwg.mxu0
  %4272 = vmatprep.subr.mxu0 %v3463
  %4273 = vmatpush1.xpose.msra.mxu0 %v3461
  %4274 = vmatprep.subr.mxu0 %v3451
  %4275 = vmatpush1.xpose.msra.mxu0 %v3449
  %4276 = vmatprep.subr.mxu0 %v3439
  %4277 = vmatpush1.xpose.msra.mxu0 %v3437
  %4278 = vmatprep.subr.mxu0 %v3427
  %4279 = vmatpush1.xpose.msra.mxu0 %v3425
  %4280 = vmatprep.subr.mxu0 %v3415
  %4281 = vmatpush1.xpose.msra.mxu0 %v3413
  %4282 = vmatprep.subr.mxu0 %v3403
  %4283 = vmatpush1.xpose.msra.mxu0 %v3401
  %4284 = vmatprep.subr.mxu0 %v3391
  %4285 = vmatpush1.xpose.msra.mxu0 %v3389
  %4286 = vmatprep.subr.mxu0 %v3379
  %4287 = vmatpush1.xpose.msra.mxu0 %v3377
  %4288 = vmatprep.subr.mxu0 %v3367
  %4289 = vmatpush1.xpose.msra.mxu0 %v3365
  %4290 = vmatprep.subr.mxu0 %v3355
  %4291 = vmatpush1.xpose.msra.mxu0 %v3353
  %4292 = vmatprep.subr.mxu0 %v3343
  %4293 = vmatpush1.xpose.msra.mxu0 %v3341
  %4294 = vmatprep.subr.mxu0 %v3331
  %4295 = vmatpush1.xpose.msra.mxu0 %v3329
  %4296 = vmatprep.subr.mxu0 %v3319
  %4297 = vmatpush1.xpose.msra.mxu0 %v3317
  %4298 = vmatprep.subr.mxu0 %v3307
  %4299 = vmatpush1.xpose.msra.mxu0 %v3305
  %4300 = vmatprep.subr.mxu0 %v3295
  %4301 = vmatpush1.xpose.msra.mxu0 %v3293
  %4302 = vmatprep.subr.mxu0 %v3283
  %4303 = vmatpush1.xpose.msra.mxu0 %v3281
  %4304 = vmatprep.subr.mxu0 %v3655
  %4305 = vmatpush2.xpose.msra.mxu0 %v3653
  %4306 = vmatprep.subr.mxu0 %v3643
  %4307 = vmatpush2.xpose.msra.mxu0 %v3641
  %4308 = vmatprep.subr.mxu0 %v3631
  %4309 = vmatpush2.xpose.msra.mxu0 %v3629
  %4310 = vmatprep.subr.mxu0 %v3619
  %4311 = vmatpush2.xpose.msra.mxu0 %v3617
  %4312 = vmatprep.subr.mxu0 %v3607
  %4313 = vmatpush2.xpose.msra.mxu0 %v3605
  %4314 = vmatprep.subr.mxu0 %v3595
  %4315 = vmatpush2.xpose.msra.mxu0 %v3593
  %4316 = vmatprep.subr.mxu0 %v3583
  %4317 = vmatpush2.xpose.msra.mxu0 %v3581
  %4318 = vmatprep.subr.mxu0 %v3571
  %4319 = vmatpush2.xpose.msra.mxu0 %v3569
  %4320 = vmatprep.subr.mxu0 %v3559
  %4321 = vmatpush2.xpose.msra.mxu0 %v3557
  %4322 = vmatprep.subr.mxu0 %v3547
  %4323 = vmatpush2.xpose.msra.mxu0 %v3545
  %4324 = vmatprep.subr.mxu0 %v3535
  %4325 = vmatpush2.xpose.msra.mxu0 %v3533
  %4326 = vmatprep.subr.mxu0 %v3523
  %4327 = vmatpush2.xpose.msra.mxu0 %v3521
  %4328 = vmatprep.subr.mxu0 %v3511
  %4329 = vmatpush2.xpose.msra.mxu0 %v3509
  %4330 = vmatprep.subr.mxu0 %v3499
  %4331 = vmatpush2.xpose.msra.mxu0 %v3497
  %4332 = vmatprep.subr.mxu0 %v3487
  %4333 = vmatpush2.xpose.msra.mxu0 %v3485
  %4334 = vmatprep.subr.mxu0 %v3475
  %4335 = vmatpush2.xpose.msra.mxu0 %v3473
  %4336 = vmatprep.mubr.f32.mxu0 %v27
  %4337 = vmatmul.mubr.f32.gmra.mxu0 %v26
  %v4338 = vpop.f32.mrf.mxu0
  %v4339 = vadd.f32 %v4262, %v4338
  %v4340 = vpop.f32.mrf.mxu0
  %v4341 = vadd.f32 %v4264, %v4340
  %4342 = vmatprep.mubr.f32.mxu0 %v33
  %4343 = vmatmul.mubr.f32.gmra.mxu0 %v32
  %v4344 = vpop.f32.mrf.mxu0
  %v4345 = vadd.f32 %v4268, %v4344
  %v4346 = vpop.f32.mrf.mxu0
  %v4347 = vadd.f32 %v4270, %v4346
  %4348 = vdwg.mxu0
  %v4349 = vlaneseq
  %v4350 = vshrl.u32 %v4349, 7
  %v4351 = vsub.s32 0, %v4350
  %v4352 = vrot.slane %v3883, %v4351
  %v4353 = vlaneseq
  %v4354 = vshrl.u32 %v4353, 7
  %v4355 = vsub.s32 0, %v4354
  %v4356 = vrot.slane %v3885, %v4355
  %v4357 = vlaneseq
  %v4358 = vshrl.u32 %v4357, 7
  %v4359 = vsub.s32 0, %v4358
  %v4360 = vrot.slane %v4114, %v4359
  %v4361 = vlaneseq
  %v4362 = vshrl.u32 %v4361, 7
  %v4363 = vsub.s32 0, %v4362
  %v4364 = vrot.slane %v4116, %v4363
  %v4365 = vlaneseq
  %v4366 = vshrl.u32 %v4365, 7
  %v4367 = vsub.s32 0, %v4366
  %v4368 = vrot.slane %v4345, %v4367
  %v4369 = vlaneseq
  %v4370 = vshrl.u32 %v4369, 7
  %v4371 = vsub.s32 0, %v4370
  %v4372 = vrot.slane %v4347, %v4371
  %v4373 = vrcp.pop %v4352
  %v4374 = vmul.f32 %v3877, %v4373
  %v4375 = vrcp.pop %v4356
  %v4376 = vmul.f32 %v3879, %v4375
  %v4377 = vrcp.pop %v4360
  %v4378 = vmul.f32 %v4108, %v4377
  %v4379 = vrcp.pop %v4364
  %v4380 = vmul.f32 %v4110, %v4379
  %v4381 = vrcp.pop %v4368
  %v4382 = vmul.f32 %v4339, %v4381
  %v4383 = vrcp.pop %v4372
  %v4384 = vmul.f32 %v4341, %v4383
  %v4385 = vld [vmem:[%s4] sm:$0xff]
  %v4386 = vld [vmem:[%s4 + $0x8] sm:$0xff]
  %v4387 = vld [vmem:[%s4 + $0x10] sm:$0xff]
  %v4388 = vld [vmem:[%s4 + $0x18] sm:$0xff]
  %v4389 = vld [vmem:[%s4 + $0x20] sm:$0xff]
  %v4390 = vld [vmem:[%s4 + $0x28] sm:$0xff]
  %v4391 = vld [vmem:[%s4 + $0x30] sm:$0xff]
  %v4392 = vld [vmem:[%s4 + $0x38] sm:$0xff]
  %v4393 = vld [vmem:[%s4 + $0x40] sm:$0xff]
  %v4394 = vld [vmem:[%s4 + $0x48] sm:$0xff]
  %v4395 = vld [vmem:[%s4 + $0x50] sm:$0xff]
  %v4396 = vld [vmem:[%s4 + $0x58] sm:$0xff]
  %v4397 = vld [vmem:[%s4 + $0x60] sm:$0xff]
  %v4398 = vld [vmem:[%s4 + $0x68] sm:$0xff]
  %v4399 = vld [vmem:[%s4 + $0x70] sm:$0xff]
  %v4400 = vld [vmem:[%s4 + $0x78] sm:$0xff]
  %v4401 = vld [vmem:[%s4 + $0x80] sm:$0xff]
  %v4402 = vld [vmem:[%s4 + $0x88] sm:$0xff]
  %v4403 = vld [vmem:[%s4 + $0x90] sm:$0xff]
  %v4404 = vld [vmem:[%s4 + $0x98] sm:$0xff]
  %v4405 = vld [vmem:[%s4 + $0xa0] sm:$0xff]
  %v4406 = vld [vmem:[%s4 + $0xa8] sm:$0xff]
  %v4407 = vld [vmem:[%s4 + $0xb0] sm:$0xff]
  %v4408 = vld [vmem:[%s4 + $0xb8] sm:$0xff]
  %v4409 = vld [vmem:[%s4 + $0xc0] sm:$0xff]
  %v4410 = vld [vmem:[%s4 + $0xc8] sm:$0xff]
  %v4411 = vld [vmem:[%s4 + $0xd0] sm:$0xff]
  %v4412 = vld [vmem:[%s4 + $0xd8] sm:$0xff]
  %v4413 = vld [vmem:[%s4 + $0xe0] sm:$0xff]
  %v4414 = vld [vmem:[%s4 + $0xe8] sm:$0xff]
  %v4415 = vld [vmem:[%s4 + $0xf0] sm:$0xff]
  %v4416 = vld [vmem:[%s4 + $0xf8] sm:$0xff]
  %v4417 = vld [vmem:[%s4 + $0x100] sm:$0xff]
  %v4418 = vld [vmem:[%s4 + $0x108] sm:$0xff]
  %v4419 = vld [vmem:[%s4 + $0x110] sm:$0xff]
  %v4420 = vld [vmem:[%s4 + $0x118] sm:$0xff]
  %v4421 = vld [vmem:[%s4 + $0x120] sm:$0xff]
  %v4422 = vld [vmem:[%s4 + $0x128] sm:$0xff]
  %v4423 = vld [vmem:[%s4 + $0x130] sm:$0xff]
  %v4424 = vld [vmem:[%s4 + $0x138] sm:$0xff]
  %v4425 = vld [vmem:[%s4 + $0x140] sm:$0xff]
  %v4426 = vld [vmem:[%s4 + $0x148] sm:$0xff]
  %v4427 = vld [vmem:[%s4 + $0x150] sm:$0xff]
  %v4428 = vld [vmem:[%s4 + $0x158] sm:$0xff]
  %v4429 = vld [vmem:[%s4 + $0x160] sm:$0xff]
  %v4430 = vld [vmem:[%s4 + $0x168] sm:$0xff]
  %v4431 = vld [vmem:[%s4 + $0x170] sm:$0xff]
  %v4432 = vld [vmem:[%s4 + $0x178] sm:$0xff]
  %v4433 = vld [vmem:[%s4 + $0x180] sm:$0xff]
  %v4434 = vld [vmem:[%s4 + $0x188] sm:$0xff]
  %v4435 = vld [vmem:[%s4 + $0x190] sm:$0xff]
  %v4436 = vld [vmem:[%s4 + $0x198] sm:$0xff]
  %v4437 = vld [vmem:[%s4 + $0x1a0] sm:$0xff]
  %v4438 = vld [vmem:[%s4 + $0x1a8] sm:$0xff]
  %v4439 = vld [vmem:[%s4 + $0x1b0] sm:$0xff]
  %v4440 = vld [vmem:[%s4 + $0x1b8] sm:$0xff]
  %v4441 = vld [vmem:[%s4 + $0x1c0] sm:$0xff]
  %v4442 = vld [vmem:[%s4 + $0x1c8] sm:$0xff]
  %v4443 = vld [vmem:[%s4 + $0x1d0] sm:$0xff]
  %v4444 = vld [vmem:[%s4 + $0x1d8] sm:$0xff]
  %v4445 = vld [vmem:[%s4 + $0x1e0] sm:$0xff]
  %v4446 = vld [vmem:[%s4 + $0x1e8] sm:$0xff]
  %v4447 = vld [vmem:[%s4 + $0x1f0] sm:$0xff]
  %v4448 = vld [vmem:[%s4 + $0x1f8] sm:$0xff]
  %v4449 = vld [vmem:[%s4 + $0x200] sm:$0xff]
  %v4450 = vld [vmem:[%s4 + $0x208] sm:$0xff]
  %v4451 = vld [vmem:[%s4 + $0x210] sm:$0xff]
  %v4452 = vld [vmem:[%s4 + $0x218] sm:$0xff]
  %v4453 = vld [vmem:[%s4 + $0x220] sm:$0xff]
  %v4454 = vld [vmem:[%s4 + $0x228] sm:$0xff]
  %v4455 = vld [vmem:[%s4 + $0x230] sm:$0xff]
  %v4456 = vld [vmem:[%s4 + $0x238] sm:$0xff]
  %v4457 = vld [vmem:[%s4 + $0x240] sm:$0xff]
  %v4458 = vld [vmem:[%s4 + $0x248] sm:$0xff]
  %v4459 = vld [vmem:[%s4 + $0x250] sm:$0xff]
  %v4460 = vld [vmem:[%s4 + $0x258] sm:$0xff]
  %v4461 = vld [vmem:[%s4 + $0x260] sm:$0xff]
  %v4462 = vld [vmem:[%s4 + $0x268] sm:$0xff]
  %v4463 = vld [vmem:[%s4 + $0x270] sm:$0xff]
  %v4464 = vld [vmem:[%s4 + $0x278] sm:$0xff]
  %v4465 = vld [vmem:[%s4 + $0x280] sm:$0xff]
  %v4466 = vld [vmem:[%s4 + $0x288] sm:$0xff]
  %v4467 = vld [vmem:[%s4 + $0x290] sm:$0xff]
  %v4468 = vld [vmem:[%s4 + $0x298] sm:$0xff]
  %v4469 = vld [vmem:[%s4 + $0x2a0] sm:$0xff]
  %v4470 = vld [vmem:[%s4 + $0x2a8] sm:$0xff]
  %v4471 = vld [vmem:[%s4 + $0x2b0] sm:$0xff]
  %v4472 = vld [vmem:[%s4 + $0x2b8] sm:$0xff]
  %v4473 = vld [vmem:[%s4 + $0x2c0] sm:$0xff]
  %v4474 = vld [vmem:[%s4 + $0x2c8] sm:$0xff]
  %v4475 = vld [vmem:[%s4 + $0x2d0] sm:$0xff]
  %v4476 = vld [vmem:[%s4 + $0x2d8] sm:$0xff]
  %v4477 = vld [vmem:[%s4 + $0x2e0] sm:$0xff]
  %v4478 = vld [vmem:[%s4 + $0x2e8] sm:$0xff]
  %v4479 = vld [vmem:[%s4 + $0x2f0] sm:$0xff]
  %v4480 = vld [vmem:[%s4 + $0x2f8] sm:$0xff]
  %4481 = vmatprep.subr.mxu0 0.0
  %4482 = vmatpush1.msra.mxu0 %v4400
  %4483 = vmatprep.subr.mxu0 0.0
  %4484 = vmatpush1.msra.mxu0 %v4399
  %4485 = vmatprep.subr.mxu0 0.0
  %4486 = vmatpush1.msra.mxu0 %v4398
  %4487 = vmatprep.subr.mxu0 0.0
  %4488 = vmatpush1.msra.mxu0 %v4397
  %4489 = vmatprep.subr.mxu0 0.0
  %4490 = vmatpush1.msra.mxu0 %v4396
  %4491 = vmatprep.subr.mxu0 0.0
  %4492 = vmatpush1.msra.mxu0 %v4395
  %4493 = vmatprep.subr.mxu0 0.0
  %4494 = vmatpush1.msra.mxu0 %v4394
  %4495 = vmatprep.subr.mxu0 0.0
  %4496 = vmatpush1.msra.mxu0 %v4393
  %4497 = vmatprep.subr.mxu0 0.0
  %4498 = vmatpush1.msra.mxu0 %v4392
  %4499 = vmatprep.subr.mxu0 0.0
  %4500 = vmatpush1.msra.mxu0 %v4391
  %4501 = vmatprep.subr.mxu0 0.0
  %4502 = vmatpush1.msra.mxu0 %v4390
  %4503 = vmatprep.subr.mxu0 0.0
  %4504 = vmatpush1.msra.mxu0 %v4389
  %4505 = vmatprep.subr.mxu0 0.0
  %4506 = vmatpush1.msra.mxu0 %v4388
  %4507 = vmatprep.subr.mxu0 0.0
  %4508 = vmatpush1.msra.mxu0 %v4387
  %4509 = vmatprep.subr.mxu0 0.0
  %4510 = vmatpush1.msra.mxu0 %v4386
  %4511 = vmatprep.subr.mxu0 0.0
  %4512 = vmatpush1.msra.mxu0 %v4385
  %4513 = vmatprep.subr.mxu0 0.0
  %4514 = vmatpush2.msra.mxu0 %v4416
  %4515 = vmatprep.subr.mxu0 0.0
  %4516 = vmatpush2.msra.mxu0 %v4415
  %4517 = vmatprep.subr.mxu0 0.0
  %4518 = vmatpush2.msra.mxu0 %v4414
  %4519 = vmatprep.subr.mxu0 0.0
  %4520 = vmatpush2.msra.mxu0 %v4413
  %4521 = vmatprep.subr.mxu0 0.0
  %4522 = vmatpush2.msra.mxu0 %v4412
  %4523 = vmatprep.subr.mxu0 0.0
  %4524 = vmatpush2.msra.mxu0 %v4411
  %4525 = vmatprep.subr.mxu0 0.0
  %4526 = vmatpush2.msra.mxu0 %v4410
  %4527 = vmatprep.subr.mxu0 0.0
  %4528 = vmatpush2.msra.mxu0 %v4409
  %4529 = vmatprep.subr.mxu0 0.0
  %4530 = vmatpush2.msra.mxu0 %v4408
  %4531 = vmatprep.subr.mxu0 0.0
  %4532 = vmatpush2.msra.mxu0 %v4407
  %4533 = vmatprep.subr.mxu0 0.0
  %4534 = vmatpush2.msra.mxu0 %v4406
  %4535 = vmatprep.subr.mxu0 0.0
  %4536 = vmatpush2.msra.mxu0 %v4405
  %4537 = vmatprep.subr.mxu0 0.0
  %4538 = vmatpush2.msra.mxu0 %v4404
  %4539 = vmatprep.subr.mxu0 0.0
  %4540 = vmatpush2.msra.mxu0 %v4403
  %4541 = vmatprep.subr.mxu0 0.0
  %4542 = vmatpush2.msra.mxu0 %v4402
  %4543 = vmatprep.subr.mxu0 0.0
  %4544 = vmatpush2.msra.mxu0 %v4401
  %4545 = vmatprep.mubr.f32.mxu0 %v4376
  %4546 = vmatmul.mubr.f32.gmra.mxu0 %v4374
  %v4547 = vpop.f32.mrf.mxu0
  %v4548 = vadd.f32 0.0, %v4547
  %v4549 = vpop.f32.mrf.mxu0
  %4550 = vdwg.mxu0
  %4551 = vmatprep.subr.mxu0 0.0
  %4552 = vmatpush1.msra.mxu0 %v4432
  %4553 = vmatprep.subr.mxu0 0.0
  %4554 = vmatpush1.msra.mxu0 %v4431
  %4555 = vmatprep.subr.mxu0 0.0
  %4556 = vmatpush1.msra.mxu0 %v4430
  %4557 = vmatprep.subr.mxu0 0.0
  %4558 = vmatpush1.msra.mxu0 %v4429
  %4559 = vmatprep.subr.mxu0 0.0
  %4560 = vmatpush1.msra.mxu0 %v4428
  %4561 = vmatprep.subr.mxu0 0.0
  %4562 = vmatpush1.msra.mxu0 %v4427
  %4563 = vmatprep.subr.mxu0 0.0
  %4564 = vmatpush1.msra.mxu0 %v4426
  %4565 = vmatprep.subr.mxu0 0.0
  %4566 = vmatpush1.msra.mxu0 %v4425
  %4567 = vmatprep.subr.mxu0 0.0
  %4568 = vmatpush1.msra.mxu0 %v4424
  %4569 = vmatprep.subr.mxu0 0.0
  %4570 = vmatpush1.msra.mxu0 %v4423
  %4571 = vmatprep.subr.mxu0 0.0
  %4572 = vmatpush1.msra.mxu0 %v4422
  %4573 = vmatprep.subr.mxu0 0.0
  %4574 = vmatpush1.msra.mxu0 %v4421
  %4575 = vmatprep.subr.mxu0 0.0
  %4576 = vmatpush1.msra.mxu0 %v4420
  %4577 = vmatprep.subr.mxu0 0.0
  %4578 = vmatpush1.msra.mxu0 %v4419
  %4579 = vmatprep.subr.mxu0 0.0
  %4580 = vmatpush1.msra.mxu0 %v4418
  %4581 = vmatprep.subr.mxu0 0.0
  %4582 = vmatpush1.msra.mxu0 %v4417
  %4583 = vmatprep.subr.mxu0 0.0
  %4584 = vmatpush2.msra.mxu0 %v4448
  %4585 = vmatprep.subr.mxu0 0.0
  %4586 = vmatpush2.msra.mxu0 %v4447
  %4587 = vmatprep.subr.mxu0 0.0
  %4588 = vmatpush2.msra.mxu0 %v4446
  %4589 = vmatprep.subr.mxu0 0.0
  %4590 = vmatpush2.msra.mxu0 %v4445
  %4591 = vmatprep.subr.mxu0 0.0
  %4592 = vmatpush2.msra.mxu0 %v4444
  %4593 = vmatprep.subr.mxu0 0.0
  %4594 = vmatpush2.msra.mxu0 %v4443
  %4595 = vmatprep.subr.mxu0 0.0
  %4596 = vmatpush2.msra.mxu0 %v4442
  %4597 = vmatprep.subr.mxu0 0.0
  %4598 = vmatpush2.msra.mxu0 %v4441
  %4599 = vmatprep.subr.mxu0 0.0
  %4600 = vmatpush2.msra.mxu0 %v4440
  %4601 = vmatprep.subr.mxu0 0.0
  %4602 = vmatpush2.msra.mxu0 %v4439
  %4603 = vmatprep.subr.mxu0 0.0
  %4604 = vmatpush2.msra.mxu0 %v4438
  %4605 = vmatprep.subr.mxu0 0.0
  %4606 = vmatpush2.msra.mxu0 %v4437
  %4607 = vmatprep.subr.mxu0 0.0
  %4608 = vmatpush2.msra.mxu0 %v4436
  %4609 = vmatprep.subr.mxu0 0.0
  %4610 = vmatpush2.msra.mxu0 %v4435
  %4611 = vmatprep.subr.mxu0 0.0
  %4612 = vmatpush2.msra.mxu0 %v4434
  %4613 = vmatprep.subr.mxu0 0.0
  %4614 = vmatpush2.msra.mxu0 %v4433
  %4615 = vmatprep.mubr.f32.mxu0 %v4380
  %4616 = vmatmul.mubr.f32.gmra.mxu0 %v4378
  %v4617 = vpop.f32.mrf.mxu0
  %v4618 = vadd.f32 %v4548, %v4617
  %v4619 = vpop.f32.mrf.mxu0
  %4620 = vdwg.mxu0
  %4621 = vmatprep.subr.mxu0 0.0
  %4622 = vmatpush1.msra.mxu0 %v4464
  %4623 = vmatprep.subr.mxu0 0.0
  %4624 = vmatpush1.msra.mxu0 %v4463
  %4625 = vmatprep.subr.mxu0 0.0
  %4626 = vmatpush1.msra.mxu0 %v4462
  %4627 = vmatprep.subr.mxu0 0.0
  %4628 = vmatpush1.msra.mxu0 %v4461
  %4629 = vmatprep.subr.mxu0 0.0
  %4630 = vmatpush1.msra.mxu0 %v4460
  %4631 = vmatprep.subr.mxu0 0.0
  %4632 = vmatpush1.msra.mxu0 %v4459
  %4633 = vmatprep.subr.mxu0 0.0
  %4634 = vmatpush1.msra.mxu0 %v4458
  %4635 = vmatprep.subr.mxu0 0.0
  %4636 = vmatpush1.msra.mxu0 %v4457
  %4637 = vmatprep.subr.mxu0 0.0
  %4638 = vmatpush1.msra.mxu0 %v4456
  %4639 = vmatprep.subr.mxu0 0.0
  %4640 = vmatpush1.msra.mxu0 %v4455
  %4641 = vmatprep.subr.mxu0 0.0
  %4642 = vmatpush1.msra.mxu0 %v4454
  %4643 = vmatprep.subr.mxu0 0.0
  %4644 = vmatpush1.msra.mxu0 %v4453
  %4645 = vmatprep.subr.mxu0 0.0
  %4646 = vmatpush1.msra.mxu0 %v4452
  %4647 = vmatprep.subr.mxu0 0.0
  %4648 = vmatpush1.msra.mxu0 %v4451
  %4649 = vmatprep.subr.mxu0 0.0
  %4650 = vmatpush1.msra.mxu0 %v4450
  %4651 = vmatprep.subr.mxu0 0.0
  %4652 = vmatpush1.msra.mxu0 %v4449
  %4653 = vmatprep.subr.mxu0 0.0
  %4654 = vmatpush2.msra.mxu0 %v4480
  %4655 = vmatprep.subr.mxu0 0.0
  %4656 = vmatpush2.msra.mxu0 %v4479
  %4657 = vmatprep.subr.mxu0 0.0
  %4658 = vmatpush2.msra.mxu0 %v4478
  %4659 = vmatprep.subr.mxu0 0.0
  %4660 = vmatpush2.msra.mxu0 %v4477
  %4661 = vmatprep.subr.mxu0 0.0
  %4662 = vmatpush2.msra.mxu0 %v4476
  %4663 = vmatprep.subr.mxu0 0.0
  %4664 = vmatpush2.msra.mxu0 %v4475
  %4665 = vmatprep.subr.mxu0 0.0
  %4666 = vmatpush2.msra.mxu0 %v4474
  %4667 = vmatprep.subr.mxu0 0.0
  %4668 = vmatpush2.msra.mxu0 %v4473
  %4669 = vmatprep.subr.mxu0 0.0
  %4670 = vmatpush2.msra.mxu0 %v4472
  %4671 = vmatprep.subr.mxu0 0.0
  %4672 = vmatpush2.msra.mxu0 %v4471
  %4673 = vmatprep.subr.mxu0 0.0
  %4674 = vmatpush2.msra.mxu0 %v4470
  %4675 = vmatprep.subr.mxu0 0.0
  %4676 = vmatpush2.msra.mxu0 %v4469
  %4677 = vmatprep.subr.mxu0 0.0
  %4678 = vmatpush2.msra.mxu0 %v4468
  %4679 = vmatprep.subr.mxu0 0.0
  %4680 = vmatpush2.msra.mxu0 %v4467
  %4681 = vmatprep.subr.mxu0 0.0
  %4682 = vmatpush2.msra.mxu0 %v4466
  %4683 = vmatprep.subr.mxu0 0.0
  %4684 = vmatpush2.msra.mxu0 %v4465
  %4685 = vmatprep.mubr.f32.mxu0 %v4384
  %4686 = vmatmul.mubr.f32.gmra.mxu0 %v4382
  %v4687 = vpop.f32.mrf.mxu0
  %v4688 = vadd.f32 %v4618, %v4687
  %v4689 = vpop.f32.mrf.mxu0
  %4690 = vdwg.mxu0
  %vm4691 = vcmask 15360
  %4692 = vst.msk [vmem:[%s5] sm:$0xff] %vm4691, %v4688
  // Predicated region
  $region22: #{tpu_custom_call.1} parent=0 // pred_check
    _
  $region23: #{tpu_custom_call.1} parent=0 // pred_check_branch
    %4694 = sbr.rel (0) target = $region25
  $region24: #{tpu_custom_call.1} parent=0 // pred_region
    _
  $region25: #{tpu_custom_call.1} parent=0 // pred_fallthru
    _
  // Predicated region
  $region26: #{tpu_custom_call.1} parent=0 // pred_check
    _
  $region27: #{tpu_custom_call.1} parent=0 // pred_check_branch
    %4696 = sbr.rel (0) target = $region29
  $region28: #{tpu_custom_call.1} parent=0 // pred_region
    _
  $region29: #{tpu_custom_call.1} parent=0 // pred_fallthru
    _

</llo_original>
